<compile_context>
chip_gen: v5e
topology: v5e:2x2
jax: 0.10.0
libtpu: 0.0.40
codegen_flags: <defaults>
</compile_context>

<pallas_src>
import functools
import math

import jax
import jax.numpy as jnp
from jax import lax
from jax.experimental import pallas as pl
from jax.experimental.pallas import tpu as pltpu


# ----------------------------------------------------------------------------
# Recurrent LSTM steps (shared).  Packed-sequence semantics are reproduced by
# masking state updates with (t < length); padded outputs are zeroed like
# pad_packed_sequence.  Gate layout is grouped: [i | f | o | g] so the three
# sigmoid gates are one EUP dispatch.
# ----------------------------------------------------------------------------
def _lstm_steps(gin_ref, whh, lens, h0, c0, t0, t_chunk, H, y_ref=None):
    def step(t, carry):
        h, c = carry
        # gin_ref[t] already holds x_t @ W_ih + (b_ih + b_hh)
        g = gin_ref[t] + jnp.dot(h.astype(whh.dtype), whh,
                                 preferred_element_type=jnp.float32)
        sig = jax.nn.sigmoid(g[:, 0:3 * H])          # i | f | o, one dispatch
        i = sig[:, 0:H]
        f = sig[:, H:2 * H]
        o = sig[:, 2 * H:3 * H]
        gg = jnp.tanh(g[:, 3 * H:4 * H])
        c_new = f * c + i * gg
        h_new = o * jnp.tanh(c_new)
        mask = lens > (t0 + t)                       # (TB, 1) bool
        h = jnp.where(mask, h_new, h)
        c = jnp.where(mask, c_new, c)
        if y_ref is not None:
            y_ref[t] = jnp.where(mask, h_new,
                                 jnp.zeros_like(h_new)).astype(y_ref.dtype)
        return h, c

    # Partial unroll bounds vreg pressure at realistic sizes while keeping
    # LLO scheduling visibility.
    return lax.fori_loop(0, t_chunk, step, (h0, c0),
                         unroll=min(8, t_chunk))


# ----------------------------------------------------------------------------
# One LSTM layer as a chunked recurrent kernel with the input projection fused
# in.  Grid = (batch_blocks [parallel], time_chunks [arbitrary]).  h/c state
# is carried in the resident h_final / c_final output refs.
# ----------------------------------------------------------------------------
def _lstm_chunk_kernel(maxlen_ref, x_ref, wih_ref, b_ref, whh_ref, lens_ref,
                       h0_ref, c0_ref, *rest, t_chunk, emit_y):
    if emit_y:
        y_ref, hfin_ref, cfin_ref, gin_ref = rest
    else:
        hfin_ref, cfin_ref, gin_ref = rest
        y_ref = None

    H = hfin_ref.shape[-1]
    c_idx = pl.program_id(1)
    t0 = c_idx * t_chunk
    active = t0 < maxlen_ref[0]

    @pl.when(c_idx == 0)
    def _():
        hfin_ref[...] = h0_ref[...]
        cfin_ref[...] = c0_ref[...]

    @pl.when(active)
    def _():
        # Fused input projection for the whole chunk (MXU, bf16 operands,
        # f32 accumulation) into VMEM scratch -- never round-trips HBM.
        for t in range(t_chunk):
            gin_ref[t] = (jnp.dot(x_ref[t], wih_ref[...],
                                  preferred_element_type=jnp.float32)
                          + b_ref[...])
        h, c = _lstm_steps(gin_ref, whh_ref[...], lens_ref[...],
                           hfin_ref[...], cfin_ref[...],
                           t0, t_chunk, H, y_ref=y_ref)
        hfin_ref[...] = h
        cfin_ref[...] = c

    if emit_y:
        @pl.when(jnp.logical_not(active))
        def _():
            # Dead chunk (entirely past max(lengths)): emit zeros, skip compute.
            y_ref[...] = jnp.zeros_like(y_ref)


def _pick_batch_block(B):
    # Block shape constraint: TB must equal B or be a multiple of 8.
    # Two batch blocks let v7x's second TensorCore participate.
    if B % 16 == 0:
        return B // 2
    return B


def lstm_layer(max_len, x, w_ih_t, bias, w_hh_t, lens_col, h0, c0, *,
               t_chunk, emit_y):
    """x: (Tp, B, in_dim) bf16.  Returns (y_bf16?, h_final, c_final)."""
    Tp, B, in_dim = x.shape
    H = w_hh_t.shape[0]
    G = 4 * H
    tb = _pick_batch_block(B)
    n_bb = B // tb
    n_ch = Tp // t_chunk

    in_specs = [
        pl.BlockSpec((t_chunk, tb, in_dim), lambda b, c, ml: (c, b, 0)),
        pl.BlockSpec((in_dim, G), lambda b, c, ml: (0, 0)),
        pl.BlockSpec((1, G), lambda b, c, ml: (0, 0)),
        pl.BlockSpec((H, G), lambda b, c, ml: (0, 0)),
        pl.BlockSpec((tb, 1), lambda b, c, ml: (b, 0)),
        pl.BlockSpec((tb, H), lambda b, c, ml: (b, 0)),
        pl.BlockSpec((tb, H), lambda b, c, ml: (b, 0)),
    ]
    hc_spec = pl.BlockSpec((tb, H), lambda b, c, ml: (b, 0))
    hc_shape = jax.ShapeDtypeStruct((B, H), jnp.float32)

    if emit_y:
        out_shape = (jax.ShapeDtypeStruct((Tp, B, H), jnp.bfloat16),
                     hc_shape, hc_shape)
        out_specs = (pl.BlockSpec((t_chunk, tb, H), lambda b, c, ml: (c, b, 0)),
                     hc_spec, hc_spec)
    else:
        out_shape = (hc_shape, hc_shape)
        out_specs = (hc_spec, hc_spec)

    return pl.pallas_call(
        functools.partial(_lstm_chunk_kernel, t_chunk=t_chunk, emit_y=emit_y),
        out_shape=out_shape,
        grid_spec=pltpu.PrefetchScalarGridSpec(
            num_scalar_prefetch=1,
            grid=(n_bb, n_ch),
            in_specs=in_specs,
            out_specs=out_specs,
            scratch_shapes=[pltpu.VMEM((t_chunk, tb, G), jnp.float32)]),
        compiler_params=pltpu.CompilerParams(
            dimension_semantics=("parallel", "arbitrary"),
            vmem_limit_bytes=32 * 1024 * 1024),
    )(max_len, x, w_ih_t, bias, w_hh_t, lens_col, h0, c0)


# ----------------------------------------------------------------------------
# Decoder: Linear(nhid -> noutputs) + LogSoftmax(dim=1) on h_final only
# (h_final == output[length-1] per sequence due to length-masked updates).
# Output is lane-dense (padded to a multiple of 128); padded classes carry a
# -1e30 bias so they contribute nothing to the softmax normalization.
# TODO(synk): for large vocab, tile this kernel over the output dimension.
# ----------------------------------------------------------------------------
def _decode_kernel(h_ref, w_ref, b_ref, o_ref):
    logits = jnp.dot(h_ref[...].astype(w_ref.dtype), w_ref[...],
                     preferred_element_type=jnp.float32) + b_ref[...]
    m = jnp.max(logits, axis=-1, keepdims=True)
    z = logits - m
    lse = jnp.log(jnp.sum(jnp.exp(z), axis=-1, keepdims=True))
    o_ref[...] = z - lse


def decode(h_final, dec_w_t, dec_b):
    B = h_final.shape[0]
    NP = dec_w_t.shape[-1]
    return pl.pallas_call(
        _decode_kernel,
        out_shape=jax.ShapeDtypeStruct((B, NP), jnp.float32),
    )(h_final, dec_w_t, dec_b)


# ----------------------------------------------------------------------------
# Parameter construction (deterministic; xavier_uniform for dim>1 params,
# matching the module's __init__ for rnn_type='LSTM').  Weights are stored
# pre-transposed / pre-cast to bf16 once.  Internal gate layout groups the
# sigmoid gates first: [i | f | o | g] (weights are freshly sampled, so this
# is just a convention, not a permutation of reference weights).
# ----------------------------------------------------------------------------
def xavier_uniform(key, shape):
    fan_out, fan_in = shape[0], shape[1]
    limit = math.sqrt(6.0 / (fan_in + fan_out))
    return jax.random.uniform(key, shape, jnp.float32, -limit, limit)


def init_params(key, ntoken, noutputs, ninp, nhid, nlayers):
    keys = jax.random.split(key, 3 + 4 * nlayers)
    params = {"emb": xavier_uniform(keys[0], (ntoken, ninp))}   # nn.Embedding
    layers = []
    k = 1
    for _ in range(nlayers):
        in_dim = ninp if not layers else nhid
        w_ih = xavier_uniform(keys[k], (4 * nhid, in_dim)); k += 1
        w_hh = xavier_uniform(keys[k], (4 * nhid, nhid)); k += 1
        stdv = 1.0 / math.sqrt(nhid)
        b_ih = jax.random.uniform(keys[k], (4 * nhid,), jnp.float32, -stdv, stdv); k += 1
        b_hh = jax.random.uniform(keys[k], (4 * nhid,), jnp.float32, -stdv, stdv); k += 1
        layers.append(dict(
            w_ih_t=w_ih.T.astype(jnp.bfloat16),                 # (in_dim, 4H)
            w_hh_t=w_hh.T.astype(jnp.bfloat16),                 # (H, 4H)
            bias=(b_ih + b_hh).reshape(1, 4 * nhid)))           # f32
    params["layers"] = layers

    # Decoder, padded lane-dense to a multiple of 128 columns.
    nout_p = ((noutputs + 127) // 128) * 128
    dec_w = xavier_uniform(keys[k], (noutputs, nhid)); k += 1
    dec_w_t = jnp.zeros((nhid, nout_p), jnp.bfloat16)
    dec_w_t = dec_w_t.at[:, :noutputs].set(dec_w.T.astype(jnp.bfloat16))
    stdv = 1.0 / math.sqrt(nhid)
    dec_b_real = jax.random.uniform(keys[k], (noutputs,), jnp.float32, -stdv, stdv)
    dec_b = jnp.full((1, nout_p), -1e30, jnp.float32)
    dec_b = dec_b.at[0, :noutputs].set(dec_b_real)
    params["dec_w_t"] = dec_w_t
    params["dec_b"] = dec_b
    return params


# ----------------------------------------------------------------------------
# Full forward pass (embedding + packed multi-layer LSTM + decoder)
# ----------------------------------------------------------------------------
@functools.partial(jax.jit, static_argnames=("nlayers", "nhid", "noutputs"))
def rnn_model_forward(params, tokens, lengths, h0, c0, *,
                      nlayers, nhid, noutputs):
    T, B = tokens.shape
    # Encoder (embedding lookup) -- plain JAX gather; dropout = identity (eval).
    emb = params["emb"][tokens]                           # (T, B, ninp) f32
    lengths = lengths.astype(jnp.int32)
    lens_col = lengths.reshape(B, 1)
    max_len = jnp.max(lengths).reshape(1)                 # SMEM scalar prefetch

    # Time chunking: whole sequence in one grid step for small T, else chunks.
    t_chunk = T if T <= 16 else 16
    Tp = pl.cdiv(T, t_chunk) * t_chunk

    x = emb.astype(jnp.bfloat16)
    if Tp != T:
        x = jnp.pad(x, ((0, Tp - T), (0, 0), (0, 0)))     # pad small x, not gates

    h_finals, c_finals = [], []
    for l in range(nlayers):
        lp = params["layers"][l]
        emit_y = l < nlayers - 1
        outs = lstm_layer(max_len, x, lp["w_ih_t"], lp["bias"], lp["w_hh_t"],
                          lens_col, h0[l], c0[l],
                          t_chunk=t_chunk, emit_y=emit_y)
        if emit_y:
            x, h_f, c_f = outs          # y is bf16; inter-layer dropout = identity
        else:
            h_f, c_f = outs             # last layer never materializes (T,B,H)
        h_finals.append(h_f)
        c_finals.append(c_f)

    decoded_p = decode(h_finals[-1], params["dec_w_t"], params["dec_b"])
    decoded = decoded_p[:, :noutputs]

    hidden = (jnp.stack(h_finals, axis=0), jnp.stack(c_finals, axis=0))
    return decoded, hidden


if __name__ == "__main__":
    # Small shapes consistent with the module's forward.
    ntoken, noutputs, ninp, nhid, nlayers = 20, 5, 32, 32, 2
    T, B = 8, 2

    key = jax.random.PRNGKey(0)
    k_par, k_tok = jax.random.split(key)
    params = init_params(k_par, ntoken, noutputs, ninp, nhid, nlayers)

    tokens = jax.random.randint(k_tok, (T, B), 0, ntoken, dtype=jnp.int32)
    lengths = jnp.array([8, 5], dtype=jnp.int32)     # variable-length sequences

    # init_hidden(bsz) for LSTM -> zeros
    h0 = jnp.zeros((nlayers, B, nhid), jnp.float32)
    c0 = jnp.zeros((nlayers, B, nhid), jnp.float32)

    decoded, (h_n, c_n) = rnn_model_forward(
        params, tokens, lengths, h0, c0,
        nlayers=nlayers, nhid=nhid, noutputs=noutputs)
    jax.block_until_ready(decoded)
    jax.block_until_ready(h_n)
    jax.block_until_ready(c_n)

    assert decoded.shape == (B, noutputs)
    assert h_n.shape == (nlayers, B, nhid) and c_n.shape == (nlayers, B, nhid)
    assert bool(jnp.all(jnp.isfinite(decoded)))
    # log-softmax rows should (approximately) sum to 1 after exp
    assert bool(jnp.allclose(jnp.exp(decoded).sum(axis=1), 1.0, atol=1e-5))
    print("KERNEL_OK")
</pallas_src>

<mosaic_0001>
module attributes {stable_mosaic.version = 11 : i64} {
  func.func @_decode_kernel(%arg0: memref<2x32xf32, #tpu.memory_space<vmem>>, %arg1: memref<32x128xbf16, #tpu.memory_space<vmem>>, %arg2: memref<1x128xf32, #tpu.memory_space<vmem>>, %arg3: memref<2x128xf32, #tpu.memory_space<vmem>>) attributes {dimension_semantics = [], scalar_prefetch = 0 : i64, scratch_operands = 0 : i64, tpu.core_type = #tpu.core_type<tc>} {
    %c0 = arith.constant 0 : index
    %c0_0 = arith.constant 0 : index
    %0 = vector.load %arg0[%c0, %c0_0] : memref<2x32xf32, #tpu.memory_space<vmem>>, vector<2x32xf32>
    %1 = arith.truncf %0 : vector<2x32xf32> to vector<2x32xbf16>
    %c0_1 = arith.constant 0 : index
    %c0_2 = arith.constant 0 : index
    %2 = vector.load %arg1[%c0_1, %c0_2] : memref<32x128xbf16, #tpu.memory_space<vmem>>, vector<32x128xbf16>
    %cst = arith.constant dense<0.000000e+00> : vector<2x128xf32>
    %3 = tpu.matmul %1, %2, %cst {dimension_numbers = #tpu.dot_dimension_numbers<[1], [0], [0], [1], [0, 0, 1, 1], [], []>} : vector<2x32xbf16>, vector<32x128xbf16>, vector<2x128xf32> -> vector<2x128xf32>
    %c0_3 = arith.constant 0 : index
    %c0_4 = arith.constant 0 : index
    %4 = vector.load %arg2[%c0_3, %c0_4] : memref<1x128xf32, #tpu.memory_space<vmem>>, vector<1x128xf32>
    %5 = vector.broadcast %4 : vector<1x128xf32> to vector<2x128xf32>
    %6 = arith.addf %3, %5 : vector<2x128xf32>
    %cst_5 = arith.constant dense<0xFF800000> : vector<2xf32>
    %7 = vector.multi_reduction <maximumf>, %6, %cst_5 [1] : vector<2x128xf32> to vector<2xf32>
    %8 = vector.shape_cast %7 : vector<2xf32> to vector<2x1xf32>
    %9 = vector.broadcast %8 : vector<2x1xf32> to vector<2x128xf32>
    %10 = arith.subf %6, %9 : vector<2x128xf32>
    %11 = math.exp %10 : vector<2x128xf32>
    %cst_6 = arith.constant dense<0.000000e+00> : vector<2xf32>
    %12 = vector.multi_reduction <add>, %11, %cst_6 [1] : vector<2x128xf32> to vector<2xf32>
    %13 = vector.shape_cast %12 : vector<2xf32> to vector<2x1xf32>
    %14 = math.log %13 : vector<2x1xf32>
    %15 = vector.broadcast %14 : vector<2x1xf32> to vector<2x128xf32>
    %16 = arith.subf %10, %15 : vector<2x128xf32>
    %c0_7 = arith.constant 0 : index
    %c0_8 = arith.constant 0 : index
    %17 = vector.load %arg3[%c0_7, %c0_8] : memref<2x128xf32, #tpu.memory_space<vmem>>, vector<2x128xf32>
    tpu.vector_store %arg3[%c0_7, %c0_8], %16 {strides = array<i32>} : memref<2x128xf32, #tpu.memory_space<vmem>>, vector<2x128xf32>,
    return
  }
}

module attributes {stable_mosaic.version = 11 : i64} {
  func.func @_lstm_chunk_kernel(%arg0: i32, %arg1: i32, %arg2: memref<1xi32, #tpu.memory_space<smem>>, %arg3: memref<8x2x32xbf16, #tpu.memory_space<vmem>>, %arg4: memref<32x128xbf16, #tpu.memory_space<vmem>>, %arg5: memref<1x128xf32, #tpu.memory_space<vmem>>, %arg6: memref<32x128xbf16, #tpu.memory_space<vmem>>, %arg7: memref<2x1xi32, #tpu.memory_space<vmem>>, %arg8: memref<2x32xf32, #tpu.memory_space<vmem>>, %arg9: memref<2x32xf32, #tpu.memory_space<vmem>>, %arg10: memref<2x32xf32, #tpu.memory_space<vmem>>, %arg11: memref<2x32xf32, #tpu.memory_space<vmem>>, %arg12: memref<8x2x128xf32, #tpu.memory_space<vmem>>) attributes {dimension_semantics = [#tpu.dimension_semantics<parallel>, #tpu.dimension_semantics<arbitrary>], iteration_bounds = array<i64: 1, 1>, scalar_prefetch = 1 : i64, scratch_operands = 1 : i64, tpu.core_type = #tpu.core_type<tc>, window_params = [{transform_indices = @transform_0, window_bounds = array<i64: 8, 2, 32>}, {pipeline_mode = #tpu.pipeline_mode<synchronous>, transform_indices = @transform_1, window_bounds = array<i64: 32, 128>}, {pipeline_mode = #tpu.pipeline_mode<synchronous>, transform_indices = @transform_2, window_bounds = array<i64: 1, 128>}, {pipeline_mode = #tpu.pipeline_mode<synchronous>, transform_indices = @transform_3, window_bounds = array<i64: 32, 128>}, {transform_indices = @transform_4, window_bounds = array<i64: 2, 1>}, {transform_indices = @transform_5, window_bounds = array<i64: 2, 32>}, {transform_indices = @transform_6, window_bounds = array<i64: 2, 32>}, {transform_indices = @transform_7, window_bounds = array<i64: 2, 32>}, {transform_indices = @transform_8, window_bounds = array<i64: 2, 32>}]} {
    %c8_i32 = arith.constant 8 : i32
    %0 = arith.muli %arg1, %c8_i32 : i32
    %c0 = arith.constant 0 : index
    %1 = memref.load %arg2[%c0] : memref<1xi32, #tpu.memory_space<smem>>
    %2 = arith.cmpi slt, %0, %1 : i32
    %c0_i32 = arith.constant 0 : i32
    %3 = arith.cmpi eq, %arg1, %c0_i32 : i32
    %4 = arith.extui %3 : i1 to i32
    %c0_i32_0 = arith.constant 0 : i32
    %5 = arith.cmpi ne, %4, %c0_i32_0 : i32
    scf.if %5 {
      %c0_2 = arith.constant 0 : index
      %c0_3 = arith.constant 0 : index
      %8 = vector.load %arg8[%c0_2, %c0_3] : memref<2x32xf32, #tpu.memory_space<vmem>>, vector<2x32xf32>
      %c0_4 = arith.constant 0 : index
      %c0_5 = arith.constant 0 : index
      %9 = vector.load %arg10[%c0_4, %c0_5] : memref<2x32xf32, #tpu.memory_space<vmem>>, vector<2x32xf32>
      tpu.vector_store %arg10[%c0_4, %c0_5], %8 {strides = array<i32>} : memref<2x32xf32, #tpu.memory_space<vmem>>, vector<2x32xf32>,
      %c0_6 = arith.constant 0 : index
      %c0_7 = arith.constant 0 : index
      %10 = vector.load %arg9[%c0_6, %c0_7] : memref<2x32xf32, #tpu.memory_space<vmem>>, vector<2x32xf32>
      %c0_8 = arith.constant 0 : index
      %c0_9 = arith.constant 0 : index
      %11 = vector.load %arg11[%c0_8, %c0_9] : memref<2x32xf32, #tpu.memory_space<vmem>>, vector<2x32xf32>
      tpu.vector_store %arg11[%c0_8, %c0_9], %10 {strides = array<i32>} : memref<2x32xf32, #tpu.memory_space<vmem>>, vector<2x32xf32>,
    } else {
    }
    %6 = arith.extui %2 : i1 to i32
    %c0_i32_1 = arith.constant 0 : i32
    %7 = arith.cmpi ne, %6, %c0_i32_1 : i32
    scf.if %7 {
      %c0_2 = arith.constant 0 : index
      %c0_3 = arith.constant 0 : index
      %c0_4 = arith.constant 0 : index
      %8 = vector.load %arg3[%c0_2, %c0_3, %c0_4] : memref<8x2x32xbf16, #tpu.memory_space<vmem>>, vector<1x2x32xbf16>
      %9 = vector.shape_cast %8 : vector<1x2x32xbf16> to vector<2x32xbf16>
      %c0_5 = arith.constant 0 : index
      %c0_6 = arith.constant 0 : index
      %10 = vector.load %arg4[%c0_5, %c0_6] : memref<32x128xbf16, #tpu.memory_space<vmem>>, vector<32x128xbf16>
      %cst = arith.constant dense<0.000000e+00> : vector<2x128xf32>
      %11 = tpu.matmul %9, %10, %cst {dimension_numbers = #tpu.dot_dimension_numbers<[1], [0], [0], [1], [0, 0, 1, 1], [], []>} : vector<2x32xbf16>, vector<32x128xbf16>, vector<2x128xf32> -> vector<2x128xf32>
      %c0_7 = arith.constant 0 : index
      %c0_8 = arith.constant 0 : index
      %12 = vector.load %arg5[%c0_7, %c0_8] : memref<1x128xf32, #tpu.memory_space<vmem>>, vector<1x128xf32>
      %13 = vector.broadcast %12 : vector<1x128xf32> to vector<2x128xf32>
      %14 = arith.addf %11, %13 : vector<2x128xf32>
      %c0_9 = arith.constant 0 : index
      %c0_10 = arith.constant 0 : index
      %c0_11 = arith.constant 0 : index
      %15 = vector.load %arg12[%c0_9, %c0_10, %c0_11] : memref<8x2x128xf32, #tpu.memory_space<vmem>>, vector<1x2x128xf32>
      %16 = vector.shape_cast %15 : vector<1x2x128xf32> to vector<2x128xf32>
      %17 = vector.shape_cast %14 : vector<2x128xf32> to vector<1x2x128xf32>
      tpu.vector_store %arg12[%c0_9, %c0_10, %c0_11], %17 {strides = array<i32>} : memref<8x2x128xf32, #tpu.memory_space<vmem>>, vector<1x2x128xf32>,
      %c1 = arith.constant 1 : index
      %c0_12 = arith.constant 0 : index
      %c0_13 = arith.constant 0 : index
      %18 = vector.load %arg3[%c1, %c0_12, %c0_13] : memref<8x2x32xbf16, #tpu.memory_space<vmem>>, vector<1x2x32xbf16>
      %19 = vector.shape_cast %18 : vector<1x2x32xbf16> to vector<2x32xbf16>
      %c0_14 = arith.constant 0 : index
      %c0_15 = arith.constant 0 : index
      %20 = vector.load %arg4[%c0_14, %c0_15] : memref<32x128xbf16, #tpu.memory_space<vmem>>, vector<32x128xbf16>
      %cst_16 = arith.constant dense<0.000000e+00> : vector<2x128xf32>
      %21 = tpu.matmul %19, %20, %cst_16 {dimension_numbers = #tpu.dot_dimension_numbers<[1], [0], [0], [1], [0, 0, 1, 1], [], []>} : vector<2x32xbf16>, vector<32x128xbf16>, vector<2x128xf32> -> vector<2x128xf32>
      %c0_17 = arith.constant 0 : index
      %c0_18 = arith.constant 0 : index
      %22 = vector.load %arg5[%c0_17, %c0_18] : memref<1x128xf32, #tpu.memory_space<vmem>>, vector<1x128xf32>
      %23 = vector.broadcast %22 : vector<1x128xf32> to vector<2x128xf32>
      %24 = arith.addf %21, %23 : vector<2x128xf32>
      %c1_19 = arith.constant 1 : index
      %c0_20 = arith.constant 0 : index
      %c0_21 = arith.constant 0 : index
      %25 = vector.load %arg12[%c1_19, %c0_20, %c0_21] : memref<8x2x128xf32, #tpu.memory_space<vmem>>, vector<1x2x128xf32>
      %26 = vector.shape_cast %25 : vector<1x2x128xf32> to vector<2x128xf32>
      %27 = vector.shape_cast %24 : vector<2x128xf32> to vector<1x2x128xf32>
      tpu.vector_store %arg12[%c1_19, %c0_20, %c0_21], %27 {strides = array<i32>} : memref<8x2x128xf32, #tpu.memory_space<vmem>>, vector<1x2x128xf32>,
      %c2 = arith.constant 2 : index
      %c0_22 = arith.constant 0 : index
      %c0_23 = arith.constant 0 : index
      %28 = vector.load %arg3[%c2, %c0_22, %c0_23] : memref<8x2x32xbf16, #tpu.memory_space<vmem>>, vector<1x2x32xbf16>
      %29 = vector.shape_cast %28 : vector<1x2x32xbf16> to vector<2x32xbf16>
      %c0_24 = arith.constant 0 : index
      %c0_25 = arith.constant 0 : index
      %30 = vector.load %arg4[%c0_24, %c0_25] : memref<32x128xbf16, #tpu.memory_space<vmem>>, vector<32x128xbf16>
      %cst_26 = arith.constant dense<0.000000e+00> : vector<2x128xf32>
      %31 = tpu.matmul %29, %30, %cst_26 {dimension_numbers = #tpu.dot_dimension_numbers<[1], [0], [0], [1], [0, 0, 1, 1], [], []>} : vector<2x32xbf16>, vector<32x128xbf16>, vector<2x128xf32> -> vector<2x128xf32>
      %c0_27 = arith.constant 0 : index
      %c0_28 = arith.constant 0 : index
      %32 = vector.load %arg5[%c0_27, %c0_28] : memref<1x128xf32, #tpu.memory_space<vmem>>, vector<1x128xf32>
      %33 = vector.broadcast %32 : vector<1x128xf32> to vector<2x128xf32>
      %34 = arith.addf %31, %33 : vector<2x128xf32>
      %c2_29 = arith.constant 2 : index
      %c0_30 = arith.constant 0 : index
      %c0_31 = arith.constant 0 : index
      %35 = vector.load %arg12[%c2_29, %c0_30, %c0_31] : memref<8x2x128xf32, #tpu.memory_space<vmem>>, vector<1x2x128xf32>
      %36 = vector.shape_cast %35 : vector<1x2x128xf32> to vector<2x128xf32>
      %37 = vector.shape_cast %34 : vector<2x128xf32> to vector<1x2x128xf32>
      tpu.vector_store %arg12[%c2_29, %c0_30, %c0_31], %37 {strides = array<i32>} : memref<8x2x128xf32, #tpu.memory_space<vmem>>, vector<1x2x128xf32>,
      %c3 = arith.constant 3 : index
      %c0_32 = arith.constant 0 : index
      %c0_33 = arith.constant 0 : index
      %38 = vector.load %arg3[%c3, %c0_32, %c0_33] : memref<8x2x32xbf16, #tpu.memory_space<vmem>>, vector<1x2x32xbf16>
      %39 = vector.shape_cast %38 : vector<1x2x32xbf16> to vector<2x32xbf16>
      %c0_34 = arith.constant 0 : index
      %c0_35 = arith.constant 0 : index
      %40 = vector.load %arg4[%c0_34, %c0_35] : memref<32x128xbf16, #tpu.memory_space<vmem>>, vector<32x128xbf16>
      %cst_36 = arith.constant dense<0.000000e+00> : vector<2x128xf32>
      %41 = tpu.matmul %39, %40, %cst_36 {dimension_numbers = #tpu.dot_dimension_numbers<[1], [0], [0], [1], [0, 0, 1, 1], [], []>} : vector<2x32xbf16>, vector<32x128xbf16>, vector<2x128xf32> -> vector<2x128xf32>
      %c0_37 = arith.constant 0 : index
      %c0_38 = arith.constant 0 : index
      %42 = vector.load %arg5[%c0_37, %c0_38] : memref<1x128xf32, #tpu.memory_space<vmem>>, vector<1x128xf32>
      %43 = vector.broadcast %42 : vector<1x128xf32> to vector<2x128xf32>
      %44 = arith.addf %41, %43 : vector<2x128xf32>
      %c3_39 = arith.constant 3 : index
      %c0_40 = arith.constant 0 : index
      %c0_41 = arith.constant 0 : index
      %45 = vector.load %arg12[%c3_39, %c0_40, %c0_41] : memref<8x2x128xf32, #tpu.memory_space<vmem>>, vector<1x2x128xf32>
      %46 = vector.shape_cast %45 : vector<1x2x128xf32> to vector<2x128xf32>
      %47 = vector.shape_cast %44 : vector<2x128xf32> to vector<1x2x128xf32>
      tpu.vector_store %arg12[%c3_39, %c0_40, %c0_41], %47 {strides = array<i32>} : memref<8x2x128xf32, #tpu.memory_space<vmem>>, vector<1x2x128xf32>,
      %c4 = arith.constant 4 : index
      %c0_42 = arith.constant 0 : index
      %c0_43 = arith.constant 0 : index
      %48 = vector.load %arg3[%c4, %c0_42, %c0_43] : memref<8x2x32xbf16, #tpu.memory_space<vmem>>, vector<1x2x32xbf16>
      %49 = vector.shape_cast %48 : vector<1x2x32xbf16> to vector<2x32xbf16>
      %c0_44 = arith.constant 0 : index
      %c0_45 = arith.constant 0 : index
      %50 = vector.load %arg4[%c0_44, %c0_45] : memref<32x128xbf16, #tpu.memory_space<vmem>>, vector<32x128xbf16>
      %cst_46 = arith.constant dense<0.000000e+00> : vector<2x128xf32>
      %51 = tpu.matmul %49, %50, %cst_46 {dimension_numbers = #tpu.dot_dimension_numbers<[1], [0], [0], [1], [0, 0, 1, 1], [], []>} : vector<2x32xbf16>, vector<32x128xbf16>, vector<2x128xf32> -> vector<2x128xf32>
      %c0_47 = arith.constant 0 : index
      %c0_48 = arith.constant 0 : index
      %52 = vector.load %arg5[%c0_47, %c0_48] : memref<1x128xf32, #tpu.memory_space<vmem>>, vector<1x128xf32>
      %53 = vector.broadcast %52 : vector<1x128xf32> to vector<2x128xf32>
      %54 = arith.addf %51, %53 : vector<2x128xf32>
      %c4_49 = arith.constant 4 : index
      %c0_50 = arith.constant 0 : index
      %c0_51 = arith.constant 0 : index
      %55 = vector.load %arg12[%c4_49, %c0_50, %c0_51] : memref<8x2x128xf32, #tpu.memory_space<vmem>>, vector<1x2x128xf32>
      %56 = vector.shape_cast %55 : vector<1x2x128xf32> to vector<2x128xf32>
      %57 = vector.shape_cast %54 : vector<2x128xf32> to vector<1x2x128xf32>
      tpu.vector_store %arg12[%c4_49, %c0_50, %c0_51], %57 {strides = array<i32>} : memref<8x2x128xf32, #tpu.memory_space<vmem>>, vector<1x2x128xf32>,
      %c5 = arith.constant 5 : index
      %c0_52 = arith.constant 0 : index
      %c0_53 = arith.constant 0 : index
      %58 = vector.load %arg3[%c5, %c0_52, %c0_53] : memref<8x2x32xbf16, #tpu.memory_space<vmem>>, vector<1x2x32xbf16>
      %59 = vector.shape_cast %58 : vector<1x2x32xbf16> to vector<2x32xbf16>
      %c0_54 = arith.constant 0 : index
      %c0_55 = arith.constant 0 : index
      %60 = vector.load %arg4[%c0_54, %c0_55] : memref<32x128xbf16, #tpu.memory_space<vmem>>, vector<32x128xbf16>
      %cst_56 = arith.constant dense<0.000000e+00> : vector<2x128xf32>
      %61 = tpu.matmul %59, %60, %cst_56 {dimension_numbers = #tpu.dot_dimension_numbers<[1], [0], [0], [1], [0, 0, 1, 1], [], []>} : vector<2x32xbf16>, vector<32x128xbf16>, vector<2x128xf32> -> vector<2x128xf32>
      %c0_57 = arith.constant 0 : index
      %c0_58 = arith.constant 0 : index
      %62 = vector.load %arg5[%c0_57, %c0_58] : memref<1x128xf32, #tpu.memory_space<vmem>>, vector<1x128xf32>
      %63 = vector.broadcast %62 : vector<1x128xf32> to vector<2x128xf32>
      %64 = arith.addf %61, %63 : vector<2x128xf32>
      %c5_59 = arith.constant 5 : index
      %c0_60 = arith.constant 0 : index
      %c0_61 = arith.constant 0 : index
      %65 = vector.load %arg12[%c5_59, %c0_60, %c0_61] : memref<8x2x128xf32, #tpu.memory_space<vmem>>, vector<1x2x128xf32>
      %66 = vector.shape_cast %65 : vector<1x2x128xf32> to vector<2x128xf32>
      %67 = vector.shape_cast %64 : vector<2x128xf32> to vector<1x2x128xf32>
      tpu.vector_store %arg12[%c5_59, %c0_60, %c0_61], %67 {strides = array<i32>} : memref<8x2x128xf32, #tpu.memory_space<vmem>>, vector<1x2x128xf32>,
      %c6 = arith.constant 6 : index
      %c0_62 = arith.constant 0 : index
      %c0_63 = arith.constant 0 : index
      %68 = vector.load %arg3[%c6, %c0_62, %c0_63] : memref<8x2x32xbf16, #tpu.memory_space<vmem>>, vector<1x2x32xbf16>
      %69 = vector.shape_cast %68 : vector<1x2x32xbf16> to vector<2x32xbf16>
      %c0_64 = arith.constant 0 : index
      %c0_65 = arith.constant 0 : index
      %70 = vector.load %arg4[%c0_64, %c0_65] : memref<32x128xbf16, #tpu.memory_space<vmem>>, vector<32x128xbf16>
      %cst_66 = arith.constant dense<0.000000e+00> : vector<2x128xf32>
      %71 = tpu.matmul %69, %70, %cst_66 {dimension_numbers = #tpu.dot_dimension_numbers<[1], [0], [0], [1], [0, 0, 1, 1], [], []>} : vector<2x32xbf16>, vector<32x128xbf16>, vector<2x128xf32> -> vector<2x128xf32>
      %c0_67 = arith.constant 0 : index
      %c0_68 = arith.constant 0 : index
      %72 = vector.load %arg5[%c0_67, %c0_68] : memref<1x128xf32, #tpu.memory_space<vmem>>, vector<1x128xf32>
      %73 = vector.broadcast %72 : vector<1x128xf32> to vector<2x128xf32>
      %74 = arith.addf %71, %73 : vector<2x128xf32>
      %c6_69 = arith.constant 6 : index
      %c0_70 = arith.constant 0 : index
      %c0_71 = arith.constant 0 : index
      %75 = vector.load %arg12[%c6_69, %c0_70, %c0_71] : memref<8x2x128xf32, #tpu.memory_space<vmem>>, vector<1x2x128xf32>
      %76 = vector.shape_cast %75 : vector<1x2x128xf32> to vector<2x128xf32>
      %77 = vector.shape_cast %74 : vector<2x128xf32> to vector<1x2x128xf32>
      tpu.vector_store %arg12[%c6_69, %c0_70, %c0_71], %77 {strides = array<i32>} : memref<8x2x128xf32, #tpu.memory_space<vmem>>, vector<1x2x128xf32>,
      %c7 = arith.constant 7 : index
      %c0_72 = arith.constant 0 : index
      %c0_73 = arith.constant 0 : index
      %78 = vector.load %arg3[%c7, %c0_72, %c0_73] : memref<8x2x32xbf16, #tpu.memory_space<vmem>>, vector<1x2x32xbf16>
      %79 = vector.shape_cast %78 : vector<1x2x32xbf16> to vector<2x32xbf16>
      %c0_74 = arith.constant 0 : index
      %c0_75 = arith.constant 0 : index
      %80 = vector.load %arg4[%c0_74, %c0_75] : memref<32x128xbf16, #tpu.memory_space<vmem>>, vector<32x128xbf16>
      %cst_76 = arith.constant dense<0.000000e+00> : vector<2x128xf32>
      %81 = tpu.matmul %79, %80, %cst_76 {dimension_numbers = #tpu.dot_dimension_numbers<[1], [0], [0], [1], [0, 0, 1, 1], [], []>} : vector<2x32xbf16>, vector<32x128xbf16>, vector<2x128xf32> -> vector<2x128xf32>
      %c0_77 = arith.constant 0 : index
      %c0_78 = arith.constant 0 : index
      %82 = vector.load %arg5[%c0_77, %c0_78] : memref<1x128xf32, #tpu.memory_space<vmem>>, vector<1x128xf32>
      %83 = vector.broadcast %82 : vector<1x128xf32> to vector<2x128xf32>
      %84 = arith.addf %81, %83 : vector<2x128xf32>
      %c7_79 = arith.constant 7 : index
      %c0_80 = arith.constant 0 : index
      %c0_81 = arith.constant 0 : index
      %85 = vector.load %arg12[%c7_79, %c0_80, %c0_81] : memref<8x2x128xf32, #tpu.memory_space<vmem>>, vector<1x2x128xf32>
      %86 = vector.shape_cast %85 : vector<1x2x128xf32> to vector<2x128xf32>
      %87 = vector.shape_cast %84 : vector<2x128xf32> to vector<1x2x128xf32>
      tpu.vector_store %arg12[%c7_79, %c0_80, %c0_81], %87 {strides = array<i32>} : memref<8x2x128xf32, #tpu.memory_space<vmem>>, vector<1x2x128xf32>,
      %c0_82 = arith.constant 0 : index
      %c0_83 = arith.constant 0 : index
      %88 = vector.load %arg6[%c0_82, %c0_83] : memref<32x128xbf16, #tpu.memory_space<vmem>>, vector<32x128xbf16>
      %c0_84 = arith.constant 0 : index
      %c0_85 = arith.constant 0 : index
      %89 = vector.load %arg7[%c0_84, %c0_85] : memref<2x1xi32, #tpu.memory_space<vmem>>, vector<2x1xi32>
      %c0_86 = arith.constant 0 : index
      %c0_87 = arith.constant 0 : index
      %90 = vector.load %arg10[%c0_86, %c0_87] : memref<2x32xf32, #tpu.memory_space<vmem>>, vector<2x32xf32>
      %c0_88 = arith.constant 0 : index
      %c0_89 = arith.constant 0 : index
      %91 = vector.load %arg11[%c0_88, %c0_89] : memref<2x32xf32, #tpu.memory_space<vmem>>, vector<2x32xf32>
      %c0_i32_90 = arith.constant 0 : i32
      %92 = arith.index_cast %c0_i32_90 : i32 to index
      %c0_91 = arith.constant 0 : index
      %c0_92 = arith.constant 0 : index
      %93 = vector.load %arg12[%92, %c0_91, %c0_92] : memref<8x2x128xf32, #tpu.memory_space<vmem>>, vector<1x2x128xf32>
      %94 = vector.shape_cast %93 : vector<1x2x128xf32> to vector<2x128xf32>
      %95 = arith.truncf %90 : vector<2x32xf32> to vector<2x32xbf16>
      %cst_93 = arith.constant dense<0.000000e+00> : vector<2x128xf32>
      %96 = tpu.matmul %95, %88, %cst_93 {dimension_numbers = #tpu.dot_dimension_numbers<[1], [0], [0], [1], [0, 0, 1, 1], [], []>} : vector<2x32xbf16>, vector<32x128xbf16>, vector<2x128xf32> -> vector<2x128xf32>
      %97 = arith.addf %94, %96 : vector<2x128xf32>
      %98 = vector.extract_strided_slice %97 {offsets = [0, 0], sizes = [2, 96], strides = [1, 1]} : vector<2x128xf32> to vector<2x96xf32>
      %99 = arith.negf %98 : vector<2x96xf32>
      %100 = math.exp %99 : vector<2x96xf32>
      %cst_94 = arith.constant 1.000000e+00 : f32
      %101 = vector.broadcast %cst_94 : f32 to vector<2x96xf32>
      %102 = arith.addf %101, %100 : vector<2x96xf32>
      %103 = arith.divf %101, %102 : vector<2x96xf32>
      %104 = vector.extract_strided_slice %103 {offsets = [0, 0], sizes = [2, 32], strides = [1, 1]} : vector<2x96xf32> to vector<2x32xf32>
      %105 = vector.extract_strided_slice %103 {offsets = [0, 32], sizes = [2, 32], strides = [1, 1]} : vector<2x96xf32> to vector<2x32xf32>
      %106 = vector.extract_strided_slice %103 {offsets = [0, 64], sizes = [2, 32], strides = [1, 1]} : vector<2x96xf32> to vector<2x32xf32>
      %107 = vector.extract_strided_slice %97 {offsets = [0, 96], sizes = [2, 32], strides = [1, 1]} : vector<2x128xf32> to vector<2x32xf32>
      %108 = math.tanh %107 : vector<2x32xf32>
      %109 = arith.mulf %105, %91 : vector<2x32xf32>
      %110 = arith.mulf %104, %108 : vector<2x32xf32>
      %111 = arith.addf %109, %110 : vector<2x32xf32>
      %112 = math.tanh %111 : vector<2x32xf32>
      %113 = arith.mulf %106, %112 : vector<2x32xf32>
      %114 = arith.addi %0, %c0_i32_90 : i32
      %115 = vector.broadcast %114 : i32 to vector<2x1xi32>
      %116 = arith.cmpi sgt, %89, %115 : vector<2x1xi32>
      %117 = vector.shape_cast %116 : vector<2x1xi1> to vector<2x1xi1>
      %118 = vector.broadcast %117 : vector<2x1xi1> to vector<2x32xi1>
      %119 = arith.select %118, %113, %90 : vector<2x32xi1>, vector<2x32xf32>
      %120 = vector.shape_cast %116 : vector<2x1xi1> to vector<2x1xi1>
      %121 = vector.broadcast %120 : vector<2x1xi1> to vector<2x32xi1>
      %122 = arith.select %121, %111, %91 : vector<2x32xi1>, vector<2x32xf32>
      %c1_i32 = arith.constant 1 : i32
      %123 = arith.index_cast %c1_i32 : i32 to index
      %c0_95 = arith.constant 0 : index
      %c0_96 = arith.constant 0 : index
      %124 = vector.load %arg12[%123, %c0_95, %c0_96] : memref<8x2x128xf32, #tpu.memory_space<vmem>>, vector<1x2x128xf32>
      %125 = vector.shape_cast %124 : vector<1x2x128xf32> to vector<2x128xf32>
      %126 = arith.truncf %119 : vector<2x32xf32> to vector<2x32xbf16>
      %cst_97 = arith.constant dense<0.000000e+00> : vector<2x128xf32>
      %127 = tpu.matmul %126, %88, %cst_97 {dimension_numbers = #tpu.dot_dimension_numbers<[1], [0], [0], [1], [0, 0, 1, 1], [], []>} : vector<2x32xbf16>, vector<32x128xbf16>, vector<2x128xf32> -> vector<2x128xf32>
      %128 = arith.addf %125, %127 : vector<2x128xf32>
      %129 = vector.extract_strided_slice %128 {offsets = [0, 0], sizes = [2, 96], strides = [1, 1]} : vector<2x128xf32> to vector<2x96xf32>
      %130 = arith.negf %129 : vector<2x96xf32>
      %131 = math.exp %130 : vector<2x96xf32>
      %cst_98 = arith.constant 1.000000e+00 : f32
      %132 = vector.broadcast %cst_98 : f32 to vector<2x96xf32>
      %133 = arith.addf %132, %131 : vector<2x96xf32>
      %134 = arith.divf %132, %133 : vector<2x96xf32>
      %135 = vector.extract_strided_slice %134 {offsets = [0, 0], sizes = [2, 32], strides = [1, 1]} : vector<2x96xf32> to vector<2x32xf32>
      %136 = vector.extract_strided_slice %134 {offsets = [0, 32], sizes = [2, 32], strides = [1, 1]} : vector<2x96xf32> to vector<2x32xf32>
      %137 = vector.extract_strided_slice %134 {offsets = [0, 64], sizes = [2, 32], strides = [1, 1]} : vector<2x96xf32> to vector<2x32xf32>
      %138 = vector.extract_strided_slice %128 {offsets = [0, 96], sizes = [2, 32], strides = [1, 1]} : vector<2x128xf32> to vector<2x32xf32>
      %139 = math.tanh %138 : vector<2x32xf32>
      %140 = arith.mulf %136, %122 : vector<2x32xf32>
      %141 = arith.mulf %135, %139 : vector<2x32xf32>
      %142 = arith.addf %140, %141 : vector<2x32xf32>
      %143 = math.tanh %142 : vector<2x32xf32>
      %144 = arith.mulf %137, %143 : vector<2x32xf32>
      %145 = arith.addi %0, %c1_i32 : i32
      %146 = vector.broadcast %145 : i32 to vector<2x1xi32>
      %147 = arith.cmpi sgt, %89, %146 : vector<2x1xi32>
      %148 = vector.shape_cast %147 : vector<2x1xi1> to vector<2x1xi1>
      %149 = vector.broadcast %148 : vector<2x1xi1> to vector<2x32xi1>
      %150 = arith.select %149, %144, %119 : vector<2x32xi1>, vector<2x32xf32>
      %151 = vector.shape_cast %147 : vector<2x1xi1> to vector<2x1xi1>
      %152 = vector.broadcast %151 : vector<2x1xi1> to vector<2x32xi1>
      %153 = arith.select %152, %142, %122 : vector<2x32xi1>, vector<2x32xf32>
      %c2_i32 = arith.constant 2 : i32
      %154 = arith.index_cast %c2_i32 : i32 to index
      %c0_99 = arith.constant 0 : index
      %c0_100 = arith.constant 0 : index
      %155 = vector.load %arg12[%154, %c0_99, %c0_100] : memref<8x2x128xf32, #tpu.memory_space<vmem>>, vector<1x2x128xf32>
      %156 = vector.shape_cast %155 : vector<1x2x128xf32> to vector<2x128xf32>
      %157 = arith.truncf %150 : vector<2x32xf32> to vector<2x32xbf16>
      %cst_101 = arith.constant dense<0.000000e+00> : vector<2x128xf32>
      %158 = tpu.matmul %157, %88, %cst_101 {dimension_numbers = #tpu.dot_dimension_numbers<[1], [0], [0], [1], [0, 0, 1, 1], [], []>} : vector<2x32xbf16>, vector<32x128xbf16>, vector<2x128xf32> -> vector<2x128xf32>
      %159 = arith.addf %156, %158 : vector<2x128xf32>
      %160 = vector.extract_strided_slice %159 {offsets = [0, 0], sizes = [2, 96], strides = [1, 1]} : vector<2x128xf32> to vector<2x96xf32>
      %161 = arith.negf %160 : vector<2x96xf32>
      %162 = math.exp %161 : vector<2x96xf32>
      %cst_102 = arith.constant 1.000000e+00 : f32
      %163 = vector.broadcast %cst_102 : f32 to vector<2x96xf32>
      %164 = arith.addf %163, %162 : vector<2x96xf32>
      %165 = arith.divf %163, %164 : vector<2x96xf32>
      %166 = vector.extract_strided_slice %165 {offsets = [0, 0], sizes = [2, 32], strides = [1, 1]} : vector<2x96xf32> to vector<2x32xf32>
      %167 = vector.extract_strided_slice %165 {offsets = [0, 32], sizes = [2, 32], strides = [1, 1]} : vector<2x96xf32> to vector<2x32xf32>
      %168 = vector.extract_strided_slice %165 {offsets = [0, 64], sizes = [2, 32], strides = [1, 1]} : vector<2x96xf32> to vector<2x32xf32>
      %169 = vector.extract_strided_slice %159 {offsets = [0, 96], sizes = [2, 32], strides = [1, 1]} : vector<2x128xf32> to vector<2x32xf32>
      %170 = math.tanh %169 : vector<2x32xf32>
      %171 = arith.mulf %167, %153 : vector<2x32xf32>
      %172 = arith.mulf %166, %170 : vector<2x32xf32>
      %173 = arith.addf %171, %172 : vector<2x32xf32>
      %174 = math.tanh %173 : vector<2x32xf32>
      %175 = arith.mulf %168, %174 : vector<2x32xf32>
      %176 = arith.addi %0, %c2_i32 : i32
      %177 = vector.broadcast %176 : i32 to vector<2x1xi32>
      %178 = arith.cmpi sgt, %89, %177 : vector<2x1xi32>
      %179 = vector.shape_cast %178 : vector<2x1xi1> to vector<2x1xi1>
      %180 = vector.broadcast %179 : vector<2x1xi1> to vector<2x32xi1>
      %181 = arith.select %180, %175, %150 : vector<2x32xi1>, vector<2x32xf32>
      %182 = vector.shape_cast %178 : vector<2x1xi1> to vector<2x1xi1>
      %183 = vector.broadcast %182 : vector<2x1xi1> to vector<2x32xi1>
      %184 = arith.select %183, %173, %153 : vector<2x32xi1>, vector<2x32xf32>
      %c3_i32 = arith.constant 3 : i32
      %185 = arith.index_cast %c3_i32 : i32 to index
      %c0_103 = arith.constant 0 : index
      %c0_104 = arith.constant 0 : index
      %186 = vector.load %arg12[%185, %c0_103, %c0_104] : memref<8x2x128xf32, #tpu.memory_space<vmem>>, vector<1x2x128xf32>
      %187 = vector.shape_cast %186 : vector<1x2x128xf32> to vector<2x128xf32>
      %188 = arith.truncf %181 : vector<2x32xf32> to vector<2x32xbf16>
      %cst_105 = arith.constant dense<0.000000e+00> : vector<2x128xf32>
      %189 = tpu.matmul %188, %88, %cst_105 {dimension_numbers = #tpu.dot_dimension_numbers<[1], [0], [0], [1], [0, 0, 1, 1], [], []>} : vector<2x32xbf16>, vector<32x128xbf16>, vector<2x128xf32> -> vector<2x128xf32>
      %190 = arith.addf %187, %189 : vector<2x128xf32>
      %191 = vector.extract_strided_slice %190 {offsets = [0, 0], sizes = [2, 96], strides = [1, 1]} : vector<2x128xf32> to vector<2x96xf32>
      %192 = arith.negf %191 : vector<2x96xf32>
      %193 = math.exp %192 : vector<2x96xf32>
      %cst_106 = arith.constant 1.000000e+00 : f32
      %194 = vector.broadcast %cst_106 : f32 to vector<2x96xf32>
      %195 = arith.addf %194, %193 : vector<2x96xf32>
      %196 = arith.divf %194, %195 : vector<2x96xf32>
      %197 = vector.extract_strided_slice %196 {offsets = [0, 0], sizes = [2, 32], strides = [1, 1]} : vector<2x96xf32> to vector<2x32xf32>
      %198 = vector.extract_strided_slice %196 {offsets = [0, 32], sizes = [2, 32], strides = [1, 1]} : vector<2x96xf32> to vector<2x32xf32>
      %199 = vector.extract_strided_slice %196 {offsets = [0, 64], sizes = [2, 32], strides = [1, 1]} : vector<2x96xf32> to vector<2x32xf32>
      %200 = vector.extract_strided_slice %190 {offsets = [0, 96], sizes = [2, 32], strides = [1, 1]} : vector<2x128xf32> to vector<2x32xf32>
      %201 = math.tanh %200 : vector<2x32xf32>
      %202 = arith.mulf %198, %184 : vector<2x32xf32>
      %203 = arith.mulf %197, %201 : vector<2x32xf32>
      %204 = arith.addf %202, %203 : vector<2x32xf32>
      %205 = math.tanh %204 : vector<2x32xf32>
      %206 = arith.mulf %199, %205 : vector<2x32xf32>
      %207 = arith.addi %0, %c3_i32 : i32
      %208 = vector.broadcast %207 : i32 to vector<2x1xi32>
      %209 = arith.cmpi sgt, %89, %208 : vector<2x1xi32>
      %210 = vector.shape_cast %209 : vector<2x1xi1> to vector<2x1xi1>
      %211 = vector.broadcast %210 : vector<2x1xi1> to vector<2x32xi1>
      %212 = arith.select %211, %206, %181 : vector<2x32xi1>, vector<2x32xf32>
      %213 = vector.shape_cast %209 : vector<2x1xi1> to vector<2x1xi1>
      %214 = vector.broadcast %213 : vector<2x1xi1> to vector<2x32xi1>
      %215 = arith.select %214, %204, %184 : vector<2x32xi1>, vector<2x32xf32>
      %c4_i32 = arith.constant 4 : i32
      %216 = arith.index_cast %c4_i32 : i32 to index
      %c0_107 = arith.constant 0 : index
      %c0_108 = arith.constant 0 : index
      %217 = vector.load %arg12[%216, %c0_107, %c0_108] : memref<8x2x128xf32, #tpu.memory_space<vmem>>, vector<1x2x128xf32>
      %218 = vector.shape_cast %217 : vector<1x2x128xf32> to vector<2x128xf32>
      %219 = arith.truncf %212 : vector<2x32xf32> to vector<2x32xbf16>
      %cst_109 = arith.constant dense<0.000000e+00> : vector<2x128xf32>
      %220 = tpu.matmul %219, %88, %cst_109 {dimension_numbers = #tpu.dot_dimension_numbers<[1], [0], [0], [1], [0, 0, 1, 1], [], []>} : vector<2x32xbf16>, vector<32x128xbf16>, vector<2x128xf32> -> vector<2x128xf32>
      %221 = arith.addf %218, %220 : vector<2x128xf32>
      %222 = vector.extract_strided_slice %221 {offsets = [0, 0], sizes = [2, 96], strides = [1, 1]} : vector<2x128xf32> to vector<2x96xf32>
      %223 = arith.negf %222 : vector<2x96xf32>
      %224 = math.exp %223 : vector<2x96xf32>
      %cst_110 = arith.constant 1.000000e+00 : f32
      %225 = vector.broadcast %cst_110 : f32 to vector<2x96xf32>
      %226 = arith.addf %225, %224 : vector<2x96xf32>
      %227 = arith.divf %225, %226 : vector<2x96xf32>
      %228 = vector.extract_strided_slice %227 {offsets = [0, 0], sizes = [2, 32], strides = [1, 1]} : vector<2x96xf32> to vector<2x32xf32>
      %229 = vector.extract_strided_slice %227 {offsets = [0, 32], sizes = [2, 32], strides = [1, 1]} : vector<2x96xf32> to vector<2x32xf32>
      %230 = vector.extract_strided_slice %227 {offsets = [0, 64], sizes = [2, 32], strides = [1, 1]} : vector<2x96xf32> to vector<2x32xf32>
      %231 = vector.extract_strided_slice %221 {offsets = [0, 96], sizes = [2, 32], strides = [1, 1]} : vector<2x128xf32> to vector<2x32xf32>
      %232 = math.tanh %231 : vector<2x32xf32>
      %233 = arith.mulf %229, %215 : vector<2x32xf32>
      %234 = arith.mulf %228, %232 : vector<2x32xf32>
      %235 = arith.addf %233, %234 : vector<2x32xf32>
      %236 = math.tanh %235 : vector<2x32xf32>
      %237 = arith.mulf %230, %236 : vector<2x32xf32>
      %238 = arith.addi %0, %c4_i32 : i32
      %239 = vector.broadcast %238 : i32 to vector<2x1xi32>
      %240 = arith.cmpi sgt, %89, %239 : vector<2x1xi32>
      %241 = vector.shape_cast %240 : vector<2x1xi1> to vector<2x1xi1>
      %242 = vector.broadcast %241 : vector<2x1xi1> to vector<2x32xi1>
      %243 = arith.select %242, %237, %212 : vector<2x32xi1>, vector<2x32xf32>
      %244 = vector.shape_cast %240 : vector<2x1xi1> to vector<2x1xi1>
      %245 = vector.broadcast %244 : vector<2x1xi1> to vector<2x32xi1>
      %246 = arith.select %245, %235, %215 : vector<2x32xi1>, vector<2x32xf32>
      %c5_i32 = arith.constant 5 : i32
      %247 = arith.index_cast %c5_i32 : i32 to index
      %c0_111 = arith.constant 0 : index
      %c0_112 = arith.constant 0 : index
      %248 = vector.load %arg12[%247, %c0_111, %c0_112] : memref<8x2x128xf32, #tpu.memory_space<vmem>>, vector<1x2x128xf32>
      %249 = vector.shape_cast %248 : vector<1x2x128xf32> to vector<2x128xf32>
      %250 = arith.truncf %243 : vector<2x32xf32> to vector<2x32xbf16>
      %cst_113 = arith.constant dense<0.000000e+00> : vector<2x128xf32>
      %251 = tpu.matmul %250, %88, %cst_113 {dimension_numbers = #tpu.dot_dimension_numbers<[1], [0], [0], [1], [0, 0, 1, 1], [], []>} : vector<2x32xbf16>, vector<32x128xbf16>, vector<2x128xf32> -> vector<2x128xf32>
      %252 = arith.addf %249, %251 : vector<2x128xf32>
      %253 = vector.extract_strided_slice %252 {offsets = [0, 0], sizes = [2, 96], strides = [1, 1]} : vector<2x128xf32> to vector<2x96xf32>
      %254 = arith.negf %253 : vector<2x96xf32>
      %255 = math.exp %254 : vector<2x96xf32>
      %cst_114 = arith.constant 1.000000e+00 : f32
      %256 = vector.broadcast %cst_114 : f32 to vector<2x96xf32>
      %257 = arith.addf %256, %255 : vector<2x96xf32>
      %258 = arith.divf %256, %257 : vector<2x96xf32>
      %259 = vector.extract_strided_slice %258 {offsets = [0, 0], sizes = [2, 32], strides = [1, 1]} : vector<2x96xf32> to vector<2x32xf32>
      %260 = vector.extract_strided_slice %258 {offsets = [0, 32], sizes = [2, 32], strides = [1, 1]} : vector<2x96xf32> to vector<2x32xf32>
      %261 = vector.extract_strided_slice %258 {offsets = [0, 64], sizes = [2, 32], strides = [1, 1]} : vector<2x96xf32> to vector<2x32xf32>
      %262 = vector.extract_strided_slice %252 {offsets = [0, 96], sizes = [2, 32], strides = [1, 1]} : vector<2x128xf32> to vector<2x32xf32>
      %263 = math.tanh %262 : vector<2x32xf32>
      %264 = arith.mulf %260, %246 : vector<2x32xf32>
      %265 = arith.mulf %259, %263 : vector<2x32xf32>
      %266 = arith.addf %264, %265 : vector<2x32xf32>
      %267 = math.tanh %266 : vector<2x32xf32>
      %268 = arith.mulf %261, %267 : vector<2x32xf32>
      %269 = arith.addi %0, %c5_i32 : i32
      %270 = vector.broadcast %269 : i32 to vector<2x1xi32>
      %271 = arith.cmpi sgt, %89, %270 : vector<2x1xi32>
      %272 = vector.shape_cast %271 : vector<2x1xi1> to vector<2x1xi1>
      %273 = vector.broadcast %272 : vector<2x1xi1> to vector<2x32xi1>
      %274 = arith.select %273, %268, %243 : vector<2x32xi1>, vector<2x32xf32>
      %275 = vector.shape_cast %271 : vector<2x1xi1> to vector<2x1xi1>
      %276 = vector.broadcast %275 : vector<2x1xi1> to vector<2x32xi1>
      %277 = arith.select %276, %266, %246 : vector<2x32xi1>, vector<2x32xf32>
      %c6_i32 = arith.constant 6 : i32
      %278 = arith.index_cast %c6_i32 : i32 to index
      %c0_115 = arith.constant 0 : index
      %c0_116 = arith.constant 0 : index
      %279 = vector.load %arg12[%278, %c0_115, %c0_116] : memref<8x2x128xf32, #tpu.memory_space<vmem>>, vector<1x2x128xf32>
      %280 = vector.shape_cast %279 : vector<1x2x128xf32> to vector<2x128xf32>
      %281 = arith.truncf %274 : vector<2x32xf32> to vector<2x32xbf16>
      %cst_117 = arith.constant dense<0.000000e+00> : vector<2x128xf32>
      %282 = tpu.matmul %281, %88, %cst_117 {dimension_numbers = #tpu.dot_dimension_numbers<[1], [0], [0], [1], [0, 0, 1, 1], [], []>} : vector<2x32xbf16>, vector<32x128xbf16>, vector<2x128xf32> -> vector<2x128xf32>
      %283 = arith.addf %280, %282 : vector<2x128xf32>
      %284 = vector.extract_strided_slice %283 {offsets = [0, 0], sizes = [2, 96], strides = [1, 1]} : vector<2x128xf32> to vector<2x96xf32>
      %285 = arith.negf %284 : vector<2x96xf32>
      %286 = math.exp %285 : vector<2x96xf32>
      %cst_118 = arith.constant 1.000000e+00 : f32
      %287 = vector.broadcast %cst_118 : f32 to vector<2x96xf32>
      %288 = arith.addf %287, %286 : vector<2x96xf32>
      %289 = arith.divf %287, %288 : vector<2x96xf32>
      %290 = vector.extract_strided_slice %289 {offsets = [0, 0], sizes = [2, 32], strides = [1, 1]} : vector<2x96xf32> to vector<2x32xf32>
      %291 = vector.extract_strided_slice %289 {offsets = [0, 32], sizes = [2, 32], strides = [1, 1]} : vector<2x96xf32> to vector<2x32xf32>
      %292 = vector.extract_strided_slice %289 {offsets = [0, 64], sizes = [2, 32], strides = [1, 1]} : vector<2x96xf32> to vector<2x32xf32>
      %293 = vector.extract_strided_slice %283 {offsets = [0, 96], sizes = [2, 32], strides = [1, 1]} : vector<2x128xf32> to vector<2x32xf32>
      %294 = math.tanh %293 : vector<2x32xf32>
      %295 = arith.mulf %291, %277 : vector<2x32xf32>
      %296 = arith.mulf %290, %294 : vector<2x32xf32>
      %297 = arith.addf %295, %296 : vector<2x32xf32>
      %298 = math.tanh %297 : vector<2x32xf32>
      %299 = arith.mulf %292, %298 : vector<2x32xf32>
      %300 = arith.addi %0, %c6_i32 : i32
      %301 = vector.broadcast %300 : i32 to vector<2x1xi32>
      %302 = arith.cmpi sgt, %89, %301 : vector<2x1xi32>
      %303 = vector.shape_cast %302 : vector<2x1xi1> to vector<2x1xi1>
      %304 = vector.broadcast %303 : vector<2x1xi1> to vector<2x32xi1>
      %305 = arith.select %304, %299, %274 : vector<2x32xi1>, vector<2x32xf32>
      %306 = vector.shape_cast %302 : vector<2x1xi1> to vector<2x1xi1>
      %307 = vector.broadcast %306 : vector<2x1xi1> to vector<2x32xi1>
      %308 = arith.select %307, %297, %277 : vector<2x32xi1>, vector<2x32xf32>
      %c7_i32 = arith.constant 7 : i32
      %309 = arith.index_cast %c7_i32 : i32 to index
      %c0_119 = arith.constant 0 : index
      %c0_120 = arith.constant 0 : index
      %310 = vector.load %arg12[%309, %c0_119, %c0_120] : memref<8x2x128xf32, #tpu.memory_space<vmem>>, vector<1x2x128xf32>
      %311 = vector.shape_cast %310 : vector<1x2x128xf32> to vector<2x128xf32>
      %312 = arith.truncf %305 : vector<2x32xf32> to vector<2x32xbf16>
      %cst_121 = arith.constant dense<0.000000e+00> : vector<2x128xf32>
      %313 = tpu.matmul %312, %88, %cst_121 {dimension_numbers = #tpu.dot_dimension_numbers<[1], [0], [0], [1], [0, 0, 1, 1], [], []>} : vector<2x32xbf16>, vector<32x128xbf16>, vector<2x128xf32> -> vector<2x128xf32>
      %314 = arith.addf %311, %313 : vector<2x128xf32>
      %315 = vector.extract_strided_slice %314 {offsets = [0, 0], sizes = [2, 96], strides = [1, 1]} : vector<2x128xf32> to vector<2x96xf32>
      %316 = arith.negf %315 : vector<2x96xf32>
      %317 = math.exp %316 : vector<2x96xf32>
      %cst_122 = arith.constant 1.000000e+00 : f32
      %318 = vector.broadcast %cst_122 : f32 to vector<2x96xf32>
      %319 = arith.addf %318, %317 : vector<2x96xf32>
      %320 = arith.divf %318, %319 : vector<2x96xf32>
      %321 = vector.extract_strided_slice %320 {offsets = [0, 0], sizes = [2, 32], strides = [1, 1]} : vector<2x96xf32> to vector<2x32xf32>
      %322 = vector.extract_strided_slice %320 {offsets = [0, 32], sizes = [2, 32], strides = [1, 1]} : vector<2x96xf32> to vector<2x32xf32>
      %323 = vector.extract_strided_slice %320 {offsets = [0, 64], sizes = [2, 32], strides = [1, 1]} : vector<2x96xf32> to vector<2x32xf32>
      %324 = vector.extract_strided_slice %314 {offsets = [0, 96], sizes = [2, 32], strides = [1, 1]} : vector<2x128xf32> to vector<2x32xf32>
      %325 = math.tanh %324 : vector<2x32xf32>
      %326 = arith.mulf %322, %308 : vector<2x32xf32>
      %327 = arith.mulf %321, %325 : vector<2x32xf32>
      %328 = arith.addf %326, %327 : vector<2x32xf32>
      %329 = math.tanh %328 : vector<2x32xf32>
      %330 = arith.mulf %323, %329 : vector<2x32xf32>
      %331 = arith.addi %0, %c7_i32 : i32
      %332 = vector.broadcast %331 : i32 to vector<2x1xi32>
      %333 = arith.cmpi sgt, %89, %332 : vector<2x1xi32>
      %334 = vector.shape_cast %333 : vector<2x1xi1> to vector<2x1xi1>
      %335 = vector.broadcast %334 : vector<2x1xi1> to vector<2x32xi1>
      %336 = arith.select %335, %330, %305 : vector<2x32xi1>, vector<2x32xf32>
      %337 = vector.shape_cast %333 : vector<2x1xi1> to vector<2x1xi1>
      %338 = vector.broadcast %337 : vector<2x1xi1> to vector<2x32xi1>
      %339 = arith.select %338, %328, %308 : vector<2x32xi1>, vector<2x32xf32>
      %c8_i32_123 = arith.constant 8 : i32
      %c0_124 = arith.constant 0 : index
      %c0_125 = arith.constant 0 : index
      %340 = vector.load %arg10[%c0_124, %c0_125] : memref<2x32xf32, #tpu.memory_space<vmem>>, vector<2x32xf32>
      tpu.vector_store %arg10[%c0_124, %c0_125], %336 {strides = array<i32>} : memref<2x32xf32, #tpu.memory_space<vmem>>, vector<2x32xf32>,
      %c0_126 = arith.constant 0 : index
      %c0_127 = arith.constant 0 : index
      %341 = vector.load %arg11[%c0_126, %c0_127] : memref<2x32xf32, #tpu.memory_space<vmem>>, vector<2x32xf32>
      tpu.vector_store %arg11[%c0_126, %c0_127], %339 {strides = array<i32>} : memref<2x32xf32, #tpu.memory_space<vmem>>, vector<2x32xf32>,
    } else {
    }
    return
  }
  func.func @transform_0(%arg0: i32, %arg1: i32, %arg2: memref<1xi32, #tpu.memory_space<smem>>) -> (i32, i32, i32) {
    %c0_i32 = arith.constant 0 : i32
    %c0_i32_0 = arith.constant 0 : i32
    return %arg1, %arg0, %c0_i32 : i32, i32, i32
  }
  func.func @transform_1(%arg0: i32, %arg1: i32, %arg2: memref<1xi32, #tpu.memory_space<smem>>) -> (i32, i32) {
    %c0_i32 = arith.constant 0 : i32
    %c0_i32_0 = arith.constant 0 : i32
    %c0_i32_1 = arith.constant 0 : i32
    return %c0_i32, %c0_i32_0 : i32, i32
  }
  func.func @transform_2(%arg0: i32, %arg1: i32, %arg2: memref<1xi32, #tpu.memory_space<smem>>) -> (i32, i32) {
    %c0_i32 = arith.constant 0 : i32
    %c0_i32_0 = arith.constant 0 : i32
    %c0_i32_1 = arith.constant 0 : i32
    return %c0_i32, %c0_i32_0 : i32, i32
  }
  func.func @transform_3(%arg0: i32, %arg1: i32, %arg2: memref<1xi32, #tpu.memory_space<smem>>) -> (i32, i32) {
    %c0_i32 = arith.constant 0 : i32
    %c0_i32_0 = arith.constant 0 : i32
    %c0_i32_1 = arith.constant 0 : i32
    return %c0_i32, %c0_i32_0 : i32, i32
  }
  func.func @transform_4(%arg0: i32, %arg1: i32, %arg2: memref<1xi32, #tpu.memory_space<smem>>) -> (i32, i32) {
    %c0_i32 = arith.constant 0 : i32
    %c0_i32_0 = arith.constant 0 : i32
    return %arg0, %c0_i32 : i32, i32
  }
  func.func @transform_5(%arg0: i32, %arg1: i32, %arg2: memref<1xi32, #tpu.memory_space<smem>>) -> (i32, i32) {
    %c0_i32 = arith.constant 0 : i32
    %c0_i32_0 = arith.constant 0 : i32
    return %arg0, %c0_i32 : i32, i32
  }
  func.func @transform_6(%arg0: i32, %arg1: i32, %arg2: memref<1xi32, #tpu.memory_space<smem>>) -> (i32, i32) {
    %c0_i32 = arith.constant 0 : i32
    %c0_i32_0 = arith.constant 0 : i32
    return %arg0, %c0_i32 : i32, i32
  }
  func.func @transform_7(%arg0: i32, %arg1: i32, %arg2: memref<1xi32, #tpu.memory_space<smem>>) -> (i32, i32) {
    %c0_i32 = arith.constant 0 : i32
    %c0_i32_0 = arith.constant 0 : i32
    return %arg0, %c0_i32 : i32, i32
  }
  func.func @transform_8(%arg0: i32, %arg1: i32, %arg2: memref<1xi32, #tpu.memory_space<smem>>) -> (i32, i32) {
    %c0_i32 = arith.constant 0 : i32
    %c0_i32_0 = arith.constant 0 : i32
    return %arg0, %c0_i32 : i32, i32
  }
}

module attributes {stable_mosaic.version = 11 : i64} {
  func.func @_lstm_chunk_kernel(%arg0: i32, %arg1: i32, %arg2: memref<1xi32, #tpu.memory_space<smem>>, %arg3: memref<8x2x32xbf16, #tpu.memory_space<vmem>>, %arg4: memref<32x128xbf16, #tpu.memory_space<vmem>>, %arg5: memref<1x128xf32, #tpu.memory_space<vmem>>, %arg6: memref<32x128xbf16, #tpu.memory_space<vmem>>, %arg7: memref<2x1xi32, #tpu.memory_space<vmem>>, %arg8: memref<2x32xf32, #tpu.memory_space<vmem>>, %arg9: memref<2x32xf32, #tpu.memory_space<vmem>>, %arg10: memref<8x2x32xbf16, #tpu.memory_space<vmem>>, %arg11: memref<2x32xf32, #tpu.memory_space<vmem>>, %arg12: memref<2x32xf32, #tpu.memory_space<vmem>>, %arg13: memref<8x2x128xf32, #tpu.memory_space<vmem>>) attributes {dimension_semantics = [#tpu.dimension_semantics<parallel>, #tpu.dimension_semantics<arbitrary>], iteration_bounds = array<i64: 1, 1>, scalar_prefetch = 1 : i64, scratch_operands = 1 : i64, tpu.core_type = #tpu.core_type<tc>, window_params = [{transform_indices = @transform_0, window_bounds = array<i64: 8, 2, 32>}, {pipeline_mode = #tpu.pipeline_mode<synchronous>, transform_indices = @transform_1, window_bounds = array<i64: 32, 128>}, {pipeline_mode = #tpu.pipeline_mode<synchronous>, transform_indices = @transform_2, window_bounds = array<i64: 1, 128>}, {pipeline_mode = #tpu.pipeline_mode<synchronous>, transform_indices = @transform_3, window_bounds = array<i64: 32, 128>}, {transform_indices = @transform_4, window_bounds = array<i64: 2, 1>}, {transform_indices = @transform_5, window_bounds = array<i64: 2, 32>}, {transform_indices = @transform_6, window_bounds = array<i64: 2, 32>}, {transform_indices = @transform_7, window_bounds = array<i64: 8, 2, 32>}, {transform_indices = @transform_8, window_bounds = array<i64: 2, 32>}, {transform_indices = @transform_9, window_bounds = array<i64: 2, 32>}]} {
    %c8_i32 = arith.constant 8 : i32
    %0 = arith.muli %arg1, %c8_i32 : i32
    %c0 = arith.constant 0 : index
    %1 = memref.load %arg2[%c0] : memref<1xi32, #tpu.memory_space<smem>>
    %2 = arith.cmpi slt, %0, %1 : i32
    %c0_i32 = arith.constant 0 : i32
    %3 = arith.cmpi eq, %arg1, %c0_i32 : i32
    %4 = arith.extui %3 : i1 to i32
    %c0_i32_0 = arith.constant 0 : i32
    %5 = arith.cmpi ne, %4, %c0_i32_0 : i32
    scf.if %5 {
      %c0_3 = arith.constant 0 : index
      %c0_4 = arith.constant 0 : index
      %11 = vector.load %arg8[%c0_3, %c0_4] : memref<2x32xf32, #tpu.memory_space<vmem>>, vector<2x32xf32>
      %c0_5 = arith.constant 0 : index
      %c0_6 = arith.constant 0 : index
      %12 = vector.load %arg11[%c0_5, %c0_6] : memref<2x32xf32, #tpu.memory_space<vmem>>, vector<2x32xf32>
      tpu.vector_store %arg11[%c0_5, %c0_6], %11 {strides = array<i32>} : memref<2x32xf32, #tpu.memory_space<vmem>>, vector<2x32xf32>,
      %c0_7 = arith.constant 0 : index
      %c0_8 = arith.constant 0 : index
      %13 = vector.load %arg9[%c0_7, %c0_8] : memref<2x32xf32, #tpu.memory_space<vmem>>, vector<2x32xf32>
      %c0_9 = arith.constant 0 : index
      %c0_10 = arith.constant 0 : index
      %14 = vector.load %arg12[%c0_9, %c0_10] : memref<2x32xf32, #tpu.memory_space<vmem>>, vector<2x32xf32>
      tpu.vector_store %arg12[%c0_9, %c0_10], %13 {strides = array<i32>} : memref<2x32xf32, #tpu.memory_space<vmem>>, vector<2x32xf32>,
    } else {
    }
    %6 = arith.extui %2 : i1 to i32
    %c0_i32_1 = arith.constant 0 : i32
    %7 = arith.cmpi ne, %6, %c0_i32_1 : i32
    scf.if %7 {
      %c0_3 = arith.constant 0 : index
      %c0_4 = arith.constant 0 : index
      %c0_5 = arith.constant 0 : index
      %11 = vector.load %arg3[%c0_3, %c0_4, %c0_5] : memref<8x2x32xbf16, #tpu.memory_space<vmem>>, vector<1x2x32xbf16>
      %12 = vector.shape_cast %11 : vector<1x2x32xbf16> to vector<2x32xbf16>
      %c0_6 = arith.constant 0 : index
      %c0_7 = arith.constant 0 : index
      %13 = vector.load %arg4[%c0_6, %c0_7] : memref<32x128xbf16, #tpu.memory_space<vmem>>, vector<32x128xbf16>
      %cst = arith.constant dense<0.000000e+00> : vector<2x128xf32>
      %14 = tpu.matmul %12, %13, %cst {dimension_numbers = #tpu.dot_dimension_numbers<[1], [0], [0], [1], [0, 0, 1, 1], [], []>} : vector<2x32xbf16>, vector<32x128xbf16>, vector<2x128xf32> -> vector<2x128xf32>
      %c0_8 = arith.constant 0 : index
      %c0_9 = arith.constant 0 : index
      %15 = vector.load %arg5[%c0_8, %c0_9] : memref<1x128xf32, #tpu.memory_space<vmem>>, vector<1x128xf32>
      %16 = vector.broadcast %15 : vector<1x128xf32> to vector<2x128xf32>
      %17 = arith.addf %14, %16 : vector<2x128xf32>
      %c0_10 = arith.constant 0 : index
      %c0_11 = arith.constant 0 : index
      %c0_12 = arith.constant 0 : index
      %18 = vector.load %arg13[%c0_10, %c0_11, %c0_12] : memref<8x2x128xf32, #tpu.memory_space<vmem>>, vector<1x2x128xf32>
      %19 = vector.shape_cast %18 : vector<1x2x128xf32> to vector<2x128xf32>
      %20 = vector.shape_cast %17 : vector<2x128xf32> to vector<1x2x128xf32>
      tpu.vector_store %arg13[%c0_10, %c0_11, %c0_12], %20 {strides = array<i32>} : memref<8x2x128xf32, #tpu.memory_space<vmem>>, vector<1x2x128xf32>,
      %c1 = arith.constant 1 : index
      %c0_13 = arith.constant 0 : index
      %c0_14 = arith.constant 0 : index
      %21 = vector.load %arg3[%c1, %c0_13, %c0_14] : memref<8x2x32xbf16, #tpu.memory_space<vmem>>, vector<1x2x32xbf16>
      %22 = vector.shape_cast %21 : vector<1x2x32xbf16> to vector<2x32xbf16>
      %c0_15 = arith.constant 0 : index
      %c0_16 = arith.constant 0 : index
      %23 = vector.load %arg4[%c0_15, %c0_16] : memref<32x128xbf16, #tpu.memory_space<vmem>>, vector<32x128xbf16>
      %cst_17 = arith.constant dense<0.000000e+00> : vector<2x128xf32>
      %24 = tpu.matmul %22, %23, %cst_17 {dimension_numbers = #tpu.dot_dimension_numbers<[1], [0], [0], [1], [0, 0, 1, 1], [], []>} : vector<2x32xbf16>, vector<32x128xbf16>, vector<2x128xf32> -> vector<2x128xf32>
      %c0_18 = arith.constant 0 : index
      %c0_19 = arith.constant 0 : index
      %25 = vector.load %arg5[%c0_18, %c0_19] : memref<1x128xf32, #tpu.memory_space<vmem>>, vector<1x128xf32>
      %26 = vector.broadcast %25 : vector<1x128xf32> to vector<2x128xf32>
      %27 = arith.addf %24, %26 : vector<2x128xf32>
      %c1_20 = arith.constant 1 : index
      %c0_21 = arith.constant 0 : index
      %c0_22 = arith.constant 0 : index
      %28 = vector.load %arg13[%c1_20, %c0_21, %c0_22] : memref<8x2x128xf32, #tpu.memory_space<vmem>>, vector<1x2x128xf32>
      %29 = vector.shape_cast %28 : vector<1x2x128xf32> to vector<2x128xf32>
      %30 = vector.shape_cast %27 : vector<2x128xf32> to vector<1x2x128xf32>
      tpu.vector_store %arg13[%c1_20, %c0_21, %c0_22], %30 {strides = array<i32>} : memref<8x2x128xf32, #tpu.memory_space<vmem>>, vector<1x2x128xf32>,
      %c2 = arith.constant 2 : index
      %c0_23 = arith.constant 0 : index
      %c0_24 = arith.constant 0 : index
      %31 = vector.load %arg3[%c2, %c0_23, %c0_24] : memref<8x2x32xbf16, #tpu.memory_space<vmem>>, vector<1x2x32xbf16>
      %32 = vector.shape_cast %31 : vector<1x2x32xbf16> to vector<2x32xbf16>
      %c0_25 = arith.constant 0 : index
      %c0_26 = arith.constant 0 : index
      %33 = vector.load %arg4[%c0_25, %c0_26] : memref<32x128xbf16, #tpu.memory_space<vmem>>, vector<32x128xbf16>
      %cst_27 = arith.constant dense<0.000000e+00> : vector<2x128xf32>
      %34 = tpu.matmul %32, %33, %cst_27 {dimension_numbers = #tpu.dot_dimension_numbers<[1], [0], [0], [1], [0, 0, 1, 1], [], []>} : vector<2x32xbf16>, vector<32x128xbf16>, vector<2x128xf32> -> vector<2x128xf32>
      %c0_28 = arith.constant 0 : index
      %c0_29 = arith.constant 0 : index
      %35 = vector.load %arg5[%c0_28, %c0_29] : memref<1x128xf32, #tpu.memory_space<vmem>>, vector<1x128xf32>
      %36 = vector.broadcast %35 : vector<1x128xf32> to vector<2x128xf32>
      %37 = arith.addf %34, %36 : vector<2x128xf32>
      %c2_30 = arith.constant 2 : index
      %c0_31 = arith.constant 0 : index
      %c0_32 = arith.constant 0 : index
      %38 = vector.load %arg13[%c2_30, %c0_31, %c0_32] : memref<8x2x128xf32, #tpu.memory_space<vmem>>, vector<1x2x128xf32>
      %39 = vector.shape_cast %38 : vector<1x2x128xf32> to vector<2x128xf32>
      %40 = vector.shape_cast %37 : vector<2x128xf32> to vector<1x2x128xf32>
      tpu.vector_store %arg13[%c2_30, %c0_31, %c0_32], %40 {strides = array<i32>} : memref<8x2x128xf32, #tpu.memory_space<vmem>>, vector<1x2x128xf32>,
      %c3 = arith.constant 3 : index
      %c0_33 = arith.constant 0 : index
      %c0_34 = arith.constant 0 : index
      %41 = vector.load %arg3[%c3, %c0_33, %c0_34] : memref<8x2x32xbf16, #tpu.memory_space<vmem>>, vector<1x2x32xbf16>
      %42 = vector.shape_cast %41 : vector<1x2x32xbf16> to vector<2x32xbf16>
      %c0_35 = arith.constant 0 : index
      %c0_36 = arith.constant 0 : index
      %43 = vector.load %arg4[%c0_35, %c0_36] : memref<32x128xbf16, #tpu.memory_space<vmem>>, vector<32x128xbf16>
      %cst_37 = arith.constant dense<0.000000e+00> : vector<2x128xf32>
      %44 = tpu.matmul %42, %43, %cst_37 {dimension_numbers = #tpu.dot_dimension_numbers<[1], [0], [0], [1], [0, 0, 1, 1], [], []>} : vector<2x32xbf16>, vector<32x128xbf16>, vector<2x128xf32> -> vector<2x128xf32>
      %c0_38 = arith.constant 0 : index
      %c0_39 = arith.constant 0 : index
      %45 = vector.load %arg5[%c0_38, %c0_39] : memref<1x128xf32, #tpu.memory_space<vmem>>, vector<1x128xf32>
      %46 = vector.broadcast %45 : vector<1x128xf32> to vector<2x128xf32>
      %47 = arith.addf %44, %46 : vector<2x128xf32>
      %c3_40 = arith.constant 3 : index
      %c0_41 = arith.constant 0 : index
      %c0_42 = arith.constant 0 : index
      %48 = vector.load %arg13[%c3_40, %c0_41, %c0_42] : memref<8x2x128xf32, #tpu.memory_space<vmem>>, vector<1x2x128xf32>
      %49 = vector.shape_cast %48 : vector<1x2x128xf32> to vector<2x128xf32>
      %50 = vector.shape_cast %47 : vector<2x128xf32> to vector<1x2x128xf32>
      tpu.vector_store %arg13[%c3_40, %c0_41, %c0_42], %50 {strides = array<i32>} : memref<8x2x128xf32, #tpu.memory_space<vmem>>, vector<1x2x128xf32>,
      %c4 = arith.constant 4 : index
      %c0_43 = arith.constant 0 : index
      %c0_44 = arith.constant 0 : index
      %51 = vector.load %arg3[%c4, %c0_43, %c0_44] : memref<8x2x32xbf16, #tpu.memory_space<vmem>>, vector<1x2x32xbf16>
      %52 = vector.shape_cast %51 : vector<1x2x32xbf16> to vector<2x32xbf16>
      %c0_45 = arith.constant 0 : index
      %c0_46 = arith.constant 0 : index
      %53 = vector.load %arg4[%c0_45, %c0_46] : memref<32x128xbf16, #tpu.memory_space<vmem>>, vector<32x128xbf16>
      %cst_47 = arith.constant dense<0.000000e+00> : vector<2x128xf32>
      %54 = tpu.matmul %52, %53, %cst_47 {dimension_numbers = #tpu.dot_dimension_numbers<[1], [0], [0], [1], [0, 0, 1, 1], [], []>} : vector<2x32xbf16>, vector<32x128xbf16>, vector<2x128xf32> -> vector<2x128xf32>
      %c0_48 = arith.constant 0 : index
      %c0_49 = arith.constant 0 : index
      %55 = vector.load %arg5[%c0_48, %c0_49] : memref<1x128xf32, #tpu.memory_space<vmem>>, vector<1x128xf32>
      %56 = vector.broadcast %55 : vector<1x128xf32> to vector<2x128xf32>
      %57 = arith.addf %54, %56 : vector<2x128xf32>
      %c4_50 = arith.constant 4 : index
      %c0_51 = arith.constant 0 : index
      %c0_52 = arith.constant 0 : index
      %58 = vector.load %arg13[%c4_50, %c0_51, %c0_52] : memref<8x2x128xf32, #tpu.memory_space<vmem>>, vector<1x2x128xf32>
      %59 = vector.shape_cast %58 : vector<1x2x128xf32> to vector<2x128xf32>
      %60 = vector.shape_cast %57 : vector<2x128xf32> to vector<1x2x128xf32>
      tpu.vector_store %arg13[%c4_50, %c0_51, %c0_52], %60 {strides = array<i32>} : memref<8x2x128xf32, #tpu.memory_space<vmem>>, vector<1x2x128xf32>,
      %c5 = arith.constant 5 : index
      %c0_53 = arith.constant 0 : index
      %c0_54 = arith.constant 0 : index
      %61 = vector.load %arg3[%c5, %c0_53, %c0_54] : memref<8x2x32xbf16, #tpu.memory_space<vmem>>, vector<1x2x32xbf16>
      %62 = vector.shape_cast %61 : vector<1x2x32xbf16> to vector<2x32xbf16>
      %c0_55 = arith.constant 0 : index
      %c0_56 = arith.constant 0 : index
      %63 = vector.load %arg4[%c0_55, %c0_56] : memref<32x128xbf16, #tpu.memory_space<vmem>>, vector<32x128xbf16>
      %cst_57 = arith.constant dense<0.000000e+00> : vector<2x128xf32>
      %64 = tpu.matmul %62, %63, %cst_57 {dimension_numbers = #tpu.dot_dimension_numbers<[1], [0], [0], [1], [0, 0, 1, 1], [], []>} : vector<2x32xbf16>, vector<32x128xbf16>, vector<2x128xf32> -> vector<2x128xf32>
      %c0_58 = arith.constant 0 : index
      %c0_59 = arith.constant 0 : index
      %65 = vector.load %arg5[%c0_58, %c0_59] : memref<1x128xf32, #tpu.memory_space<vmem>>, vector<1x128xf32>
      %66 = vector.broadcast %65 : vector<1x128xf32> to vector<2x128xf32>
      %67 = arith.addf %64, %66 : vector<2x128xf32>
      %c5_60 = arith.constant 5 : index
      %c0_61 = arith.constant 0 : index
      %c0_62 = arith.constant 0 : index
      %68 = vector.load %arg13[%c5_60, %c0_61, %c0_62] : memref<8x2x128xf32, #tpu.memory_space<vmem>>, vector<1x2x128xf32>
      %69 = vector.shape_cast %68 : vector<1x2x128xf32> to vector<2x128xf32>
      %70 = vector.shape_cast %67 : vector<2x128xf32> to vector<1x2x128xf32>
      tpu.vector_store %arg13[%c5_60, %c0_61, %c0_62], %70 {strides = array<i32>} : memref<8x2x128xf32, #tpu.memory_space<vmem>>, vector<1x2x128xf32>,
      %c6 = arith.constant 6 : index
      %c0_63 = arith.constant 0 : index
      %c0_64 = arith.constant 0 : index
      %71 = vector.load %arg3[%c6, %c0_63, %c0_64] : memref<8x2x32xbf16, #tpu.memory_space<vmem>>, vector<1x2x32xbf16>
      %72 = vector.shape_cast %71 : vector<1x2x32xbf16> to vector<2x32xbf16>
      %c0_65 = arith.constant 0 : index
      %c0_66 = arith.constant 0 : index
      %73 = vector.load %arg4[%c0_65, %c0_66] : memref<32x128xbf16, #tpu.memory_space<vmem>>, vector<32x128xbf16>
      %cst_67 = arith.constant dense<0.000000e+00> : vector<2x128xf32>
      %74 = tpu.matmul %72, %73, %cst_67 {dimension_numbers = #tpu.dot_dimension_numbers<[1], [0], [0], [1], [0, 0, 1, 1], [], []>} : vector<2x32xbf16>, vector<32x128xbf16>, vector<2x128xf32> -> vector<2x128xf32>
      %c0_68 = arith.constant 0 : index
      %c0_69 = arith.constant 0 : index
      %75 = vector.load %arg5[%c0_68, %c0_69] : memref<1x128xf32, #tpu.memory_space<vmem>>, vector<1x128xf32>
      %76 = vector.broadcast %75 : vector<1x128xf32> to vector<2x128xf32>
      %77 = arith.addf %74, %76 : vector<2x128xf32>
      %c6_70 = arith.constant 6 : index
      %c0_71 = arith.constant 0 : index
      %c0_72 = arith.constant 0 : index
      %78 = vector.load %arg13[%c6_70, %c0_71, %c0_72] : memref<8x2x128xf32, #tpu.memory_space<vmem>>, vector<1x2x128xf32>
      %79 = vector.shape_cast %78 : vector<1x2x128xf32> to vector<2x128xf32>
      %80 = vector.shape_cast %77 : vector<2x128xf32> to vector<1x2x128xf32>
      tpu.vector_store %arg13[%c6_70, %c0_71, %c0_72], %80 {strides = array<i32>} : memref<8x2x128xf32, #tpu.memory_space<vmem>>, vector<1x2x128xf32>,
      %c7 = arith.constant 7 : index
      %c0_73 = arith.constant 0 : index
      %c0_74 = arith.constant 0 : index
      %81 = vector.load %arg3[%c7, %c0_73, %c0_74] : memref<8x2x32xbf16, #tpu.memory_space<vmem>>, vector<1x2x32xbf16>
      %82 = vector.shape_cast %81 : vector<1x2x32xbf16> to vector<2x32xbf16>
      %c0_75 = arith.constant 0 : index
      %c0_76 = arith.constant 0 : index
      %83 = vector.load %arg4[%c0_75, %c0_76] : memref<32x128xbf16, #tpu.memory_space<vmem>>, vector<32x128xbf16>
      %cst_77 = arith.constant dense<0.000000e+00> : vector<2x128xf32>
      %84 = tpu.matmul %82, %83, %cst_77 {dimension_numbers = #tpu.dot_dimension_numbers<[1], [0], [0], [1], [0, 0, 1, 1], [], []>} : vector<2x32xbf16>, vector<32x128xbf16>, vector<2x128xf32> -> vector<2x128xf32>
      %c0_78 = arith.constant 0 : index
      %c0_79 = arith.constant 0 : index
      %85 = vector.load %arg5[%c0_78, %c0_79] : memref<1x128xf32, #tpu.memory_space<vmem>>, vector<1x128xf32>
      %86 = vector.broadcast %85 : vector<1x128xf32> to vector<2x128xf32>
      %87 = arith.addf %84, %86 : vector<2x128xf32>
      %c7_80 = arith.constant 7 : index
      %c0_81 = arith.constant 0 : index
      %c0_82 = arith.constant 0 : index
      %88 = vector.load %arg13[%c7_80, %c0_81, %c0_82] : memref<8x2x128xf32, #tpu.memory_space<vmem>>, vector<1x2x128xf32>
      %89 = vector.shape_cast %88 : vector<1x2x128xf32> to vector<2x128xf32>
      %90 = vector.shape_cast %87 : vector<2x128xf32> to vector<1x2x128xf32>
      tpu.vector_store %arg13[%c7_80, %c0_81, %c0_82], %90 {strides = array<i32>} : memref<8x2x128xf32, #tpu.memory_space<vmem>>, vector<1x2x128xf32>,
      %c0_83 = arith.constant 0 : index
      %c0_84 = arith.constant 0 : index
      %91 = vector.load %arg6[%c0_83, %c0_84] : memref<32x128xbf16, #tpu.memory_space<vmem>>, vector<32x128xbf16>
      %c0_85 = arith.constant 0 : index
      %c0_86 = arith.constant 0 : index
      %92 = vector.load %arg7[%c0_85, %c0_86] : memref<2x1xi32, #tpu.memory_space<vmem>>, vector<2x1xi32>
      %c0_87 = arith.constant 0 : index
      %c0_88 = arith.constant 0 : index
      %93 = vector.load %arg11[%c0_87, %c0_88] : memref<2x32xf32, #tpu.memory_space<vmem>>, vector<2x32xf32>
      %c0_89 = arith.constant 0 : index
      %c0_90 = arith.constant 0 : index
      %94 = vector.load %arg12[%c0_89, %c0_90] : memref<2x32xf32, #tpu.memory_space<vmem>>, vector<2x32xf32>
      %c0_i32_91 = arith.constant 0 : i32
      %95 = arith.index_cast %c0_i32_91 : i32 to index
      %c0_92 = arith.constant 0 : index
      %c0_93 = arith.constant 0 : index
      %96 = vector.load %arg13[%95, %c0_92, %c0_93] : memref<8x2x128xf32, #tpu.memory_space<vmem>>, vector<1x2x128xf32>
      %97 = vector.shape_cast %96 : vector<1x2x128xf32> to vector<2x128xf32>
      %98 = arith.truncf %93 : vector<2x32xf32> to vector<2x32xbf16>
      %cst_94 = arith.constant dense<0.000000e+00> : vector<2x128xf32>
      %99 = tpu.matmul %98, %91, %cst_94 {dimension_numbers = #tpu.dot_dimension_numbers<[1], [0], [0], [1], [0, 0, 1, 1], [], []>} : vector<2x32xbf16>, vector<32x128xbf16>, vector<2x128xf32> -> vector<2x128xf32>
      %100 = arith.addf %97, %99 : vector<2x128xf32>
      %101 = vector.extract_strided_slice %100 {offsets = [0, 0], sizes = [2, 96], strides = [1, 1]} : vector<2x128xf32> to vector<2x96xf32>
      %102 = arith.negf %101 : vector<2x96xf32>
      %103 = math.exp %102 : vector<2x96xf32>
      %cst_95 = arith.constant 1.000000e+00 : f32
      %104 = vector.broadcast %cst_95 : f32 to vector<2x96xf32>
      %105 = arith.addf %104, %103 : vector<2x96xf32>
      %106 = arith.divf %104, %105 : vector<2x96xf32>
      %107 = vector.extract_strided_slice %106 {offsets = [0, 0], sizes = [2, 32], strides = [1, 1]} : vector<2x96xf32> to vector<2x32xf32>
      %108 = vector.extract_strided_slice %106 {offsets = [0, 32], sizes = [2, 32], strides = [1, 1]} : vector<2x96xf32> to vector<2x32xf32>
      %109 = vector.extract_strided_slice %106 {offsets = [0, 64], sizes = [2, 32], strides = [1, 1]} : vector<2x96xf32> to vector<2x32xf32>
      %110 = vector.extract_strided_slice %100 {offsets = [0, 96], sizes = [2, 32], strides = [1, 1]} : vector<2x128xf32> to vector<2x32xf32>
      %111 = math.tanh %110 : vector<2x32xf32>
      %112 = arith.mulf %108, %94 : vector<2x32xf32>
      %113 = arith.mulf %107, %111 : vector<2x32xf32>
      %114 = arith.addf %112, %113 : vector<2x32xf32>
      %115 = math.tanh %114 : vector<2x32xf32>
      %116 = arith.mulf %109, %115 : vector<2x32xf32>
      %117 = arith.addi %0, %c0_i32_91 : i32
      %118 = vector.broadcast %117 : i32 to vector<2x1xi32>
      %119 = arith.cmpi sgt, %92, %118 : vector<2x1xi32>
      %120 = vector.shape_cast %119 : vector<2x1xi1> to vector<2x1xi1>
      %121 = vector.broadcast %120 : vector<2x1xi1> to vector<2x32xi1>
      %122 = arith.select %121, %116, %93 : vector<2x32xi1>, vector<2x32xf32>
      %123 = vector.shape_cast %119 : vector<2x1xi1> to vector<2x1xi1>
      %124 = vector.broadcast %123 : vector<2x1xi1> to vector<2x32xi1>
      %125 = arith.select %124, %114, %94 : vector<2x32xi1>, vector<2x32xf32>
      %cst_96 = arith.constant 0.000000e+00 : f32
      %126 = vector.broadcast %cst_96 : f32 to vector<2x32xf32>
      %127 = vector.shape_cast %119 : vector<2x1xi1> to vector<2x1xi1>
      %128 = vector.broadcast %127 : vector<2x1xi1> to vector<2x32xi1>
      %129 = arith.select %128, %116, %126 : vector<2x32xi1>, vector<2x32xf32>
      %130 = arith.truncf %129 : vector<2x32xf32> to vector<2x32xbf16>
      %131 = arith.index_cast %c0_i32_91 : i32 to index
      %c0_97 = arith.constant 0 : index
      %c0_98 = arith.constant 0 : index
      %132 = vector.load %arg10[%131, %c0_97, %c0_98] : memref<8x2x32xbf16, #tpu.memory_space<vmem>>, vector<1x2x32xbf16>
      %133 = vector.shape_cast %132 : vector<1x2x32xbf16> to vector<2x32xbf16>
      %134 = vector.shape_cast %130 : vector<2x32xbf16> to vector<1x2x32xbf16>
      tpu.vector_store %arg10[%131, %c0_97, %c0_98], %134 {strides = array<i32>} : memref<8x2x32xbf16, #tpu.memory_space<vmem>>, vector<1x2x32xbf16>,
      %c1_i32 = arith.constant 1 : i32
      %135 = arith.index_cast %c1_i32 : i32 to index
      %c0_99 = arith.constant 0 : index
      %c0_100 = arith.constant 0 : index
      %136 = vector.load %arg13[%135, %c0_99, %c0_100] : memref<8x2x128xf32, #tpu.memory_space<vmem>>, vector<1x2x128xf32>
      %137 = vector.shape_cast %136 : vector<1x2x128xf32> to vector<2x128xf32>
      %138 = arith.truncf %122 : vector<2x32xf32> to vector<2x32xbf16>
      %cst_101 = arith.constant dense<0.000000e+00> : vector<2x128xf32>
      %139 = tpu.matmul %138, %91, %cst_101 {dimension_numbers = #tpu.dot_dimension_numbers<[1], [0], [0], [1], [0, 0, 1, 1], [], []>} : vector<2x32xbf16>, vector<32x128xbf16>, vector<2x128xf32> -> vector<2x128xf32>
      %140 = arith.addf %137, %139 : vector<2x128xf32>
      %141 = vector.extract_strided_slice %140 {offsets = [0, 0], sizes = [2, 96], strides = [1, 1]} : vector<2x128xf32> to vector<2x96xf32>
      %142 = arith.negf %141 : vector<2x96xf32>
      %143 = math.exp %142 : vector<2x96xf32>
      %cst_102 = arith.constant 1.000000e+00 : f32
      %144 = vector.broadcast %cst_102 : f32 to vector<2x96xf32>
      %145 = arith.addf %144, %143 : vector<2x96xf32>
      %146 = arith.divf %144, %145 : vector<2x96xf32>
      %147 = vector.extract_strided_slice %146 {offsets = [0, 0], sizes = [2, 32], strides = [1, 1]} : vector<2x96xf32> to vector<2x32xf32>
      %148 = vector.extract_strided_slice %146 {offsets = [0, 32], sizes = [2, 32], strides = [1, 1]} : vector<2x96xf32> to vector<2x32xf32>
      %149 = vector.extract_strided_slice %146 {offsets = [0, 64], sizes = [2, 32], strides = [1, 1]} : vector<2x96xf32> to vector<2x32xf32>
      %150 = vector.extract_strided_slice %140 {offsets = [0, 96], sizes = [2, 32], strides = [1, 1]} : vector<2x128xf32> to vector<2x32xf32>
      %151 = math.tanh %150 : vector<2x32xf32>
      %152 = arith.mulf %148, %125 : vector<2x32xf32>
      %153 = arith.mulf %147, %151 : vector<2x32xf32>
      %154 = arith.addf %152, %153 : vector<2x32xf32>
      %155 = math.tanh %154 : vector<2x32xf32>
      %156 = arith.mulf %149, %155 : vector<2x32xf32>
      %157 = arith.addi %0, %c1_i32 : i32
      %158 = vector.broadcast %157 : i32 to vector<2x1xi32>
      %159 = arith.cmpi sgt, %92, %158 : vector<2x1xi32>
      %160 = vector.shape_cast %159 : vector<2x1xi1> to vector<2x1xi1>
      %161 = vector.broadcast %160 : vector<2x1xi1> to vector<2x32xi1>
      %162 = arith.select %161, %156, %122 : vector<2x32xi1>, vector<2x32xf32>
      %163 = vector.shape_cast %159 : vector<2x1xi1> to vector<2x1xi1>
      %164 = vector.broadcast %163 : vector<2x1xi1> to vector<2x32xi1>
      %165 = arith.select %164, %154, %125 : vector<2x32xi1>, vector<2x32xf32>
      %cst_103 = arith.constant 0.000000e+00 : f32
      %166 = vector.broadcast %cst_103 : f32 to vector<2x32xf32>
      %167 = vector.shape_cast %159 : vector<2x1xi1> to vector<2x1xi1>
      %168 = vector.broadcast %167 : vector<2x1xi1> to vector<2x32xi1>
      %169 = arith.select %168, %156, %166 : vector<2x32xi1>, vector<2x32xf32>
      %170 = arith.truncf %169 : vector<2x32xf32> to vector<2x32xbf16>
      %171 = arith.index_cast %c1_i32 : i32 to index
      %c0_104 = arith.constant 0 : index
      %c0_105 = arith.constant 0 : index
      %172 = vector.load %arg10[%171, %c0_104, %c0_105] : memref<8x2x32xbf16, #tpu.memory_space<vmem>>, vector<1x2x32xbf16>
      %173 = vector.shape_cast %172 : vector<1x2x32xbf16> to vector<2x32xbf16>
      %174 = vector.shape_cast %170 : vector<2x32xbf16> to vector<1x2x32xbf16>
      tpu.vector_store %arg10[%171, %c0_104, %c0_105], %174 {strides = array<i32>} : memref<8x2x32xbf16, #tpu.memory_space<vmem>>, vector<1x2x32xbf16>,
      %c2_i32 = arith.constant 2 : i32
      %175 = arith.index_cast %c2_i32 : i32 to index
      %c0_106 = arith.constant 0 : index
      %c0_107 = arith.constant 0 : index
      %176 = vector.load %arg13[%175, %c0_106, %c0_107] : memref<8x2x128xf32, #tpu.memory_space<vmem>>, vector<1x2x128xf32>
      %177 = vector.shape_cast %176 : vector<1x2x128xf32> to vector<2x128xf32>
      %178 = arith.truncf %162 : vector<2x32xf32> to vector<2x32xbf16>
      %cst_108 = arith.constant dense<0.000000e+00> : vector<2x128xf32>
      %179 = tpu.matmul %178, %91, %cst_108 {dimension_numbers = #tpu.dot_dimension_numbers<[1], [0], [0], [1], [0, 0, 1, 1], [], []>} : vector<2x32xbf16>, vector<32x128xbf16>, vector<2x128xf32> -> vector<2x128xf32>
      %180 = arith.addf %177, %179 : vector<2x128xf32>
      %181 = vector.extract_strided_slice %180 {offsets = [0, 0], sizes = [2, 96], strides = [1, 1]} : vector<2x128xf32> to vector<2x96xf32>
      %182 = arith.negf %181 : vector<2x96xf32>
      %183 = math.exp %182 : vector<2x96xf32>
      %cst_109 = arith.constant 1.000000e+00 : f32
      %184 = vector.broadcast %cst_109 : f32 to vector<2x96xf32>
      %185 = arith.addf %184, %183 : vector<2x96xf32>
      %186 = arith.divf %184, %185 : vector<2x96xf32>
      %187 = vector.extract_strided_slice %186 {offsets = [0, 0], sizes = [2, 32], strides = [1, 1]} : vector<2x96xf32> to vector<2x32xf32>
      %188 = vector.extract_strided_slice %186 {offsets = [0, 32], sizes = [2, 32], strides = [1, 1]} : vector<2x96xf32> to vector<2x32xf32>
      %189 = vector.extract_strided_slice %186 {offsets = [0, 64], sizes = [2, 32], strides = [1, 1]} : vector<2x96xf32> to vector<2x32xf32>
      %190 = vector.extract_strided_slice %180 {offsets = [0, 96], sizes = [2, 32], strides = [1, 1]} : vector<2x128xf32> to vector<2x32xf32>
      %191 = math.tanh %190 : vector<2x32xf32>
      %192 = arith.mulf %188, %165 : vector<2x32xf32>
      %193 = arith.mulf %187, %191 : vector<2x32xf32>
      %194 = arith.addf %192, %193 : vector<2x32xf32>
      %195 = math.tanh %194 : vector<2x32xf32>
      %196 = arith.mulf %189, %195 : vector<2x32xf32>
      %197 = arith.addi %0, %c2_i32 : i32
      %198 = vector.broadcast %197 : i32 to vector<2x1xi32>
      %199 = arith.cmpi sgt, %92, %198 : vector<2x1xi32>
      %200 = vector.shape_cast %199 : vector<2x1xi1> to vector<2x1xi1>
      %201 = vector.broadcast %200 : vector<2x1xi1> to vector<2x32xi1>
      %202 = arith.select %201, %196, %162 : vector<2x32xi1>, vector<2x32xf32>
      %203 = vector.shape_cast %199 : vector<2x1xi1> to vector<2x1xi1>
      %204 = vector.broadcast %203 : vector<2x1xi1> to vector<2x32xi1>
      %205 = arith.select %204, %194, %165 : vector<2x32xi1>, vector<2x32xf32>
      %cst_110 = arith.constant 0.000000e+00 : f32
      %206 = vector.broadcast %cst_110 : f32 to vector<2x32xf32>
      %207 = vector.shape_cast %199 : vector<2x1xi1> to vector<2x1xi1>
      %208 = vector.broadcast %207 : vector<2x1xi1> to vector<2x32xi1>
      %209 = arith.select %208, %196, %206 : vector<2x32xi1>, vector<2x32xf32>
      %210 = arith.truncf %209 : vector<2x32xf32> to vector<2x32xbf16>
      %211 = arith.index_cast %c2_i32 : i32 to index
      %c0_111 = arith.constant 0 : index
      %c0_112 = arith.constant 0 : index
      %212 = vector.load %arg10[%211, %c0_111, %c0_112] : memref<8x2x32xbf16, #tpu.memory_space<vmem>>, vector<1x2x32xbf16>
      %213 = vector.shape_cast %212 : vector<1x2x32xbf16> to vector<2x32xbf16>
      %214 = vector.shape_cast %210 : vector<2x32xbf16> to vector<1x2x32xbf16>
      tpu.vector_store %arg10[%211, %c0_111, %c0_112], %214 {strides = array<i32>} : memref<8x2x32xbf16, #tpu.memory_space<vmem>>, vector<1x2x32xbf16>,
      %c3_i32 = arith.constant 3 : i32
      %215 = arith.index_cast %c3_i32 : i32 to index
      %c0_113 = arith.constant 0 : index
      %c0_114 = arith.constant 0 : index
      %216 = vector.load %arg13[%215, %c0_113, %c0_114] : memref<8x2x128xf32, #tpu.memory_space<vmem>>, vector<1x2x128xf32>
      %217 = vector.shape_cast %216 : vector<1x2x128xf32> to vector<2x128xf32>
      %218 = arith.truncf %202 : vector<2x32xf32> to vector<2x32xbf16>
      %cst_115 = arith.constant dense<0.000000e+00> : vector<2x128xf32>
      %219 = tpu.matmul %218, %91, %cst_115 {dimension_numbers = #tpu.dot_dimension_numbers<[1], [0], [0], [1], [0, 0, 1, 1], [], []>} : vector<2x32xbf16>, vector<32x128xbf16>, vector<2x128xf32> -> vector<2x128xf32>
      %220 = arith.addf %217, %219 : vector<2x128xf32>
      %221 = vector.extract_strided_slice %220 {offsets = [0, 0], sizes = [2, 96], strides = [1, 1]} : vector<2x128xf32> to vector<2x96xf32>
      %222 = arith.negf %221 : vector<2x96xf32>
      %223 = math.exp %222 : vector<2x96xf32>
      %cst_116 = arith.constant 1.000000e+00 : f32
      %224 = vector.broadcast %cst_116 : f32 to vector<2x96xf32>
      %225 = arith.addf %224, %223 : vector<2x96xf32>
      %226 = arith.divf %224, %225 : vector<2x96xf32>
      %227 = vector.extract_strided_slice %226 {offsets = [0, 0], sizes = [2, 32], strides = [1, 1]} : vector<2x96xf32> to vector<2x32xf32>
      %228 = vector.extract_strided_slice %226 {offsets = [0, 32], sizes = [2, 32], strides = [1, 1]} : vector<2x96xf32> to vector<2x32xf32>
      %229 = vector.extract_strided_slice %226 {offsets = [0, 64], sizes = [2, 32], strides = [1, 1]} : vector<2x96xf32> to vector<2x32xf32>
      %230 = vector.extract_strided_slice %220 {offsets = [0, 96], sizes = [2, 32], strides = [1, 1]} : vector<2x128xf32> to vector<2x32xf32>
      %231 = math.tanh %230 : vector<2x32xf32>
      %232 = arith.mulf %228, %205 : vector<2x32xf32>
      %233 = arith.mulf %227, %231 : vector<2x32xf32>
      %234 = arith.addf %232, %233 : vector<2x32xf32>
      %235 = math.tanh %234 : vector<2x32xf32>
      %236 = arith.mulf %229, %235 : vector<2x32xf32>
      %237 = arith.addi %0, %c3_i32 : i32
      %238 = vector.broadcast %237 : i32 to vector<2x1xi32>
      %239 = arith.cmpi sgt, %92, %238 : vector<2x1xi32>
      %240 = vector.shape_cast %239 : vector<2x1xi1> to vector<2x1xi1>
      %241 = vector.broadcast %240 : vector<2x1xi1> to vector<2x32xi1>
      %242 = arith.select %241, %236, %202 : vector<2x32xi1>, vector<2x32xf32>
      %243 = vector.shape_cast %239 : vector<2x1xi1> to vector<2x1xi1>
      %244 = vector.broadcast %243 : vector<2x1xi1> to vector<2x32xi1>
      %245 = arith.select %244, %234, %205 : vector<2x32xi1>, vector<2x32xf32>
      %cst_117 = arith.constant 0.000000e+00 : f32
      %246 = vector.broadcast %cst_117 : f32 to vector<2x32xf32>
      %247 = vector.shape_cast %239 : vector<2x1xi1> to vector<2x1xi1>
      %248 = vector.broadcast %247 : vector<2x1xi1> to vector<2x32xi1>
      %249 = arith.select %248, %236, %246 : vector<2x32xi1>, vector<2x32xf32>
      %250 = arith.truncf %249 : vector<2x32xf32> to vector<2x32xbf16>
      %251 = arith.index_cast %c3_i32 : i32 to index
      %c0_118 = arith.constant 0 : index
      %c0_119 = arith.constant 0 : index
      %252 = vector.load %arg10[%251, %c0_118, %c0_119] : memref<8x2x32xbf16, #tpu.memory_space<vmem>>, vector<1x2x32xbf16>
      %253 = vector.shape_cast %252 : vector<1x2x32xbf16> to vector<2x32xbf16>
      %254 = vector.shape_cast %250 : vector<2x32xbf16> to vector<1x2x32xbf16>
      tpu.vector_store %arg10[%251, %c0_118, %c0_119], %254 {strides = array<i32>} : memref<8x2x32xbf16, #tpu.memory_space<vmem>>, vector<1x2x32xbf16>,
      %c4_i32 = arith.constant 4 : i32
      %255 = arith.index_cast %c4_i32 : i32 to index
      %c0_120 = arith.constant 0 : index
      %c0_121 = arith.constant 0 : index
      %256 = vector.load %arg13[%255, %c0_120, %c0_121] : memref<8x2x128xf32, #tpu.memory_space<vmem>>, vector<1x2x128xf32>
      %257 = vector.shape_cast %256 : vector<1x2x128xf32> to vector<2x128xf32>
      %258 = arith.truncf %242 : vector<2x32xf32> to vector<2x32xbf16>
      %cst_122 = arith.constant dense<0.000000e+00> : vector<2x128xf32>
      %259 = tpu.matmul %258, %91, %cst_122 {dimension_numbers = #tpu.dot_dimension_numbers<[1], [0], [0], [1], [0, 0, 1, 1], [], []>} : vector<2x32xbf16>, vector<32x128xbf16>, vector<2x128xf32> -> vector<2x128xf32>
      %260 = arith.addf %257, %259 : vector<2x128xf32>
      %261 = vector.extract_strided_slice %260 {offsets = [0, 0], sizes = [2, 96], strides = [1, 1]} : vector<2x128xf32> to vector<2x96xf32>
      %262 = arith.negf %261 : vector<2x96xf32>
      %263 = math.exp %262 : vector<2x96xf32>
      %cst_123 = arith.constant 1.000000e+00 : f32
      %264 = vector.broadcast %cst_123 : f32 to vector<2x96xf32>
      %265 = arith.addf %264, %263 : vector<2x96xf32>
      %266 = arith.divf %264, %265 : vector<2x96xf32>
      %267 = vector.extract_strided_slice %266 {offsets = [0, 0], sizes = [2, 32], strides = [1, 1]} : vector<2x96xf32> to vector<2x32xf32>
      %268 = vector.extract_strided_slice %266 {offsets = [0, 32], sizes = [2, 32], strides = [1, 1]} : vector<2x96xf32> to vector<2x32xf32>
      %269 = vector.extract_strided_slice %266 {offsets = [0, 64], sizes = [2, 32], strides = [1, 1]} : vector<2x96xf32> to vector<2x32xf32>
      %270 = vector.extract_strided_slice %260 {offsets = [0, 96], sizes = [2, 32], strides = [1, 1]} : vector<2x128xf32> to vector<2x32xf32>
      %271 = math.tanh %270 : vector<2x32xf32>
      %272 = arith.mulf %268, %245 : vector<2x32xf32>
      %273 = arith.mulf %267, %271 : vector<2x32xf32>
      %274 = arith.addf %272, %273 : vector<2x32xf32>
      %275 = math.tanh %274 : vector<2x32xf32>
      %276 = arith.mulf %269, %275 : vector<2x32xf32>
      %277 = arith.addi %0, %c4_i32 : i32
      %278 = vector.broadcast %277 : i32 to vector<2x1xi32>
      %279 = arith.cmpi sgt, %92, %278 : vector<2x1xi32>
      %280 = vector.shape_cast %279 : vector<2x1xi1> to vector<2x1xi1>
      %281 = vector.broadcast %280 : vector<2x1xi1> to vector<2x32xi1>
      %282 = arith.select %281, %276, %242 : vector<2x32xi1>, vector<2x32xf32>
      %283 = vector.shape_cast %279 : vector<2x1xi1> to vector<2x1xi1>
      %284 = vector.broadcast %283 : vector<2x1xi1> to vector<2x32xi1>
      %285 = arith.select %284, %274, %245 : vector<2x32xi1>, vector<2x32xf32>
      %cst_124 = arith.constant 0.000000e+00 : f32
      %286 = vector.broadcast %cst_124 : f32 to vector<2x32xf32>
      %287 = vector.shape_cast %279 : vector<2x1xi1> to vector<2x1xi1>
      %288 = vector.broadcast %287 : vector<2x1xi1> to vector<2x32xi1>
      %289 = arith.select %288, %276, %286 : vector<2x32xi1>, vector<2x32xf32>
      %290 = arith.truncf %289 : vector<2x32xf32> to vector<2x32xbf16>
      %291 = arith.index_cast %c4_i32 : i32 to index
      %c0_125 = arith.constant 0 : index
      %c0_126 = arith.constant 0 : index
      %292 = vector.load %arg10[%291, %c0_125, %c0_126] : memref<8x2x32xbf16, #tpu.memory_space<vmem>>, vector<1x2x32xbf16>
      %293 = vector.shape_cast %292 : vector<1x2x32xbf16> to vector<2x32xbf16>
      %294 = vector.shape_cast %290 : vector<2x32xbf16> to vector<1x2x32xbf16>
      tpu.vector_store %arg10[%291, %c0_125, %c0_126], %294 {strides = array<i32>} : memref<8x2x32xbf16, #tpu.memory_space<vmem>>, vector<1x2x32xbf16>,
      %c5_i32 = arith.constant 5 : i32
      %295 = arith.index_cast %c5_i32 : i32 to index
      %c0_127 = arith.constant 0 : index
      %c0_128 = arith.constant 0 : index
      %296 = vector.load %arg13[%295, %c0_127, %c0_128] : memref<8x2x128xf32, #tpu.memory_space<vmem>>, vector<1x2x128xf32>
      %297 = vector.shape_cast %296 : vector<1x2x128xf32> to vector<2x128xf32>
      %298 = arith.truncf %282 : vector<2x32xf32> to vector<2x32xbf16>
      %cst_129 = arith.constant dense<0.000000e+00> : vector<2x128xf32>
      %299 = tpu.matmul %298, %91, %cst_129 {dimension_numbers = #tpu.dot_dimension_numbers<[1], [0], [0], [1], [0, 0, 1, 1], [], []>} : vector<2x32xbf16>, vector<32x128xbf16>, vector<2x128xf32> -> vector<2x128xf32>
      %300 = arith.addf %297, %299 : vector<2x128xf32>
      %301 = vector.extract_strided_slice %300 {offsets = [0, 0], sizes = [2, 96], strides = [1, 1]} : vector<2x128xf32> to vector<2x96xf32>
      %302 = arith.negf %301 : vector<2x96xf32>
      %303 = math.exp %302 : vector<2x96xf32>
      %cst_130 = arith.constant 1.000000e+00 : f32
      %304 = vector.broadcast %cst_130 : f32 to vector<2x96xf32>
      %305 = arith.addf %304, %303 : vector<2x96xf32>
      %306 = arith.divf %304, %305 : vector<2x96xf32>
      %307 = vector.extract_strided_slice %306 {offsets = [0, 0], sizes = [2, 32], strides = [1, 1]} : vector<2x96xf32> to vector<2x32xf32>
      %308 = vector.extract_strided_slice %306 {offsets = [0, 32], sizes = [2, 32], strides = [1, 1]} : vector<2x96xf32> to vector<2x32xf32>
      %309 = vector.extract_strided_slice %306 {offsets = [0, 64], sizes = [2, 32], strides = [1, 1]} : vector<2x96xf32> to vector<2x32xf32>
      %310 = vector.extract_strided_slice %300 {offsets = [0, 96], sizes = [2, 32], strides = [1, 1]} : vector<2x128xf32> to vector<2x32xf32>
      %311 = math.tanh %310 : vector<2x32xf32>
      %312 = arith.mulf %308, %285 : vector<2x32xf32>
      %313 = arith.mulf %307, %311 : vector<2x32xf32>
      %314 = arith.addf %312, %313 : vector<2x32xf32>
      %315 = math.tanh %314 : vector<2x32xf32>
      %316 = arith.mulf %309, %315 : vector<2x32xf32>
      %317 = arith.addi %0, %c5_i32 : i32
      %318 = vector.broadcast %317 : i32 to vector<2x1xi32>
      %319 = arith.cmpi sgt, %92, %318 : vector<2x1xi32>
      %320 = vector.shape_cast %319 : vector<2x1xi1> to vector<2x1xi1>
      %321 = vector.broadcast %320 : vector<2x1xi1> to vector<2x32xi1>
      %322 = arith.select %321, %316, %282 : vector<2x32xi1>, vector<2x32xf32>
      %323 = vector.shape_cast %319 : vector<2x1xi1> to vector<2x1xi1>
      %324 = vector.broadcast %323 : vector<2x1xi1> to vector<2x32xi1>
      %325 = arith.select %324, %314, %285 : vector<2x32xi1>, vector<2x32xf32>
      %cst_131 = arith.constant 0.000000e+00 : f32
      %326 = vector.broadcast %cst_131 : f32 to vector<2x32xf32>
      %327 = vector.shape_cast %319 : vector<2x1xi1> to vector<2x1xi1>
      %328 = vector.broadcast %327 : vector<2x1xi1> to vector<2x32xi1>
      %329 = arith.select %328, %316, %326 : vector<2x32xi1>, vector<2x32xf32>
      %330 = arith.truncf %329 : vector<2x32xf32> to vector<2x32xbf16>
      %331 = arith.index_cast %c5_i32 : i32 to index
      %c0_132 = arith.constant 0 : index
      %c0_133 = arith.constant 0 : index
      %332 = vector.load %arg10[%331, %c0_132, %c0_133] : memref<8x2x32xbf16, #tpu.memory_space<vmem>>, vector<1x2x32xbf16>
      %333 = vector.shape_cast %332 : vector<1x2x32xbf16> to vector<2x32xbf16>
      %334 = vector.shape_cast %330 : vector<2x32xbf16> to vector<1x2x32xbf16>
      tpu.vector_store %arg10[%331, %c0_132, %c0_133], %334 {strides = array<i32>} : memref<8x2x32xbf16, #tpu.memory_space<vmem>>, vector<1x2x32xbf16>,
      %c6_i32 = arith.constant 6 : i32
      %335 = arith.index_cast %c6_i32 : i32 to index
      %c0_134 = arith.constant 0 : index
      %c0_135 = arith.constant 0 : index
      %336 = vector.load %arg13[%335, %c0_134, %c0_135] : memref<8x2x128xf32, #tpu.memory_space<vmem>>, vector<1x2x128xf32>
      %337 = vector.shape_cast %336 : vector<1x2x128xf32> to vector<2x128xf32>
      %338 = arith.truncf %322 : vector<2x32xf32> to vector<2x32xbf16>
      %cst_136 = arith.constant dense<0.000000e+00> : vector<2x128xf32>
      %339 = tpu.matmul %338, %91, %cst_136 {dimension_numbers = #tpu.dot_dimension_numbers<[1], [0], [0], [1], [0, 0, 1, 1], [], []>} : vector<2x32xbf16>, vector<32x128xbf16>, vector<2x128xf32> -> vector<2x128xf32>
      %340 = arith.addf %337, %339 : vector<2x128xf32>
      %341 = vector.extract_strided_slice %340 {offsets = [0, 0], sizes = [2, 96], strides = [1, 1]} : vector<2x128xf32> to vector<2x96xf32>
      %342 = arith.negf %341 : vector<2x96xf32>
      %343 = math.exp %342 : vector<2x96xf32>
      %cst_137 = arith.constant 1.000000e+00 : f32
      %344 = vector.broadcast %cst_137 : f32 to vector<2x96xf32>
      %345 = arith.addf %344, %343 : vector<2x96xf32>
      %346 = arith.divf %344, %345 : vector<2x96xf32>
      %347 = vector.extract_strided_slice %346 {offsets = [0, 0], sizes = [2, 32], strides = [1, 1]} : vector<2x96xf32> to vector<2x32xf32>
      %348 = vector.extract_strided_slice %346 {offsets = [0, 32], sizes = [2, 32], strides = [1, 1]} : vector<2x96xf32> to vector<2x32xf32>
      %349 = vector.extract_strided_slice %346 {offsets = [0, 64], sizes = [2, 32], strides = [1, 1]} : vector<2x96xf32> to vector<2x32xf32>
      %350 = vector.extract_strided_slice %340 {offsets = [0, 96], sizes = [2, 32], strides = [1, 1]} : vector<2x128xf32> to vector<2x32xf32>
      %351 = math.tanh %350 : vector<2x32xf32>
      %352 = arith.mulf %348, %325 : vector<2x32xf32>
      %353 = arith.mulf %347, %351 : vector<2x32xf32>
      %354 = arith.addf %352, %353 : vector<2x32xf32>
      %355 = math.tanh %354 : vector<2x32xf32>
      %356 = arith.mulf %349, %355 : vector<2x32xf32>
      %357 = arith.addi %0, %c6_i32 : i32
      %358 = vector.broadcast %357 : i32 to vector<2x1xi32>
      %359 = arith.cmpi sgt, %92, %358 : vector<2x1xi32>
      %360 = vector.shape_cast %359 : vector<2x1xi1> to vector<2x1xi1>
      %361 = vector.broadcast %360 : vector<2x1xi1> to vector<2x32xi1>
      %362 = arith.select %361, %356, %322 : vector<2x32xi1>, vector<2x32xf32>
      %363 = vector.shape_cast %359 : vector<2x1xi1> to vector<2x1xi1>
      %364 = vector.broadcast %363 : vector<2x1xi1> to vector<2x32xi1>
      %365 = arith.select %364, %354, %325 : vector<2x32xi1>, vector<2x32xf32>
      %cst_138 = arith.constant 0.000000e+00 : f32
      %366 = vector.broadcast %cst_138 : f32 to vector<2x32xf32>
      %367 = vector.shape_cast %359 : vector<2x1xi1> to vector<2x1xi1>
      %368 = vector.broadcast %367 : vector<2x1xi1> to vector<2x32xi1>
      %369 = arith.select %368, %356, %366 : vector<2x32xi1>, vector<2x32xf32>
      %370 = arith.truncf %369 : vector<2x32xf32> to vector<2x32xbf16>
      %371 = arith.index_cast %c6_i32 : i32 to index
      %c0_139 = arith.constant 0 : index
      %c0_140 = arith.constant 0 : index
      %372 = vector.load %arg10[%371, %c0_139, %c0_140] : memref<8x2x32xbf16, #tpu.memory_space<vmem>>, vector<1x2x32xbf16>
      %373 = vector.shape_cast %372 : vector<1x2x32xbf16> to vector<2x32xbf16>
      %374 = vector.shape_cast %370 : vector<2x32xbf16> to vector<1x2x32xbf16>
      tpu.vector_store %arg10[%371, %c0_139, %c0_140], %374 {strides = array<i32>} : memref<8x2x32xbf16, #tpu.memory_space<vmem>>, vector<1x2x32xbf16>,
      %c7_i32 = arith.constant 7 : i32
      %375 = arith.index_cast %c7_i32 : i32 to index
      %c0_141 = arith.constant 0 : index
      %c0_142 = arith.constant 0 : index
      %376 = vector.load %arg13[%375, %c0_141, %c0_142] : memref<8x2x128xf32, #tpu.memory_space<vmem>>, vector<1x2x128xf32>
      %377 = vector.shape_cast %376 : vector<1x2x128xf32> to vector<2x128xf32>
      %378 = arith.truncf %362 : vector<2x32xf32> to vector<2x32xbf16>
      %cst_143 = arith.constant dense<0.000000e+00> : vector<2x128xf32>
      %379 = tpu.matmul %378, %91, %cst_143 {dimension_numbers = #tpu.dot_dimension_numbers<[1], [0], [0], [1], [0, 0, 1, 1], [], []>} : vector<2x32xbf16>, vector<32x128xbf16>, vector<2x128xf32> -> vector<2x128xf32>
      %380 = arith.addf %377, %379 : vector<2x128xf32>
      %381 = vector.extract_strided_slice %380 {offsets = [0, 0], sizes = [2, 96], strides = [1, 1]} : vector<2x128xf32> to vector<2x96xf32>
      %382 = arith.negf %381 : vector<2x96xf32>
      %383 = math.exp %382 : vector<2x96xf32>
      %cst_144 = arith.constant 1.000000e+00 : f32
      %384 = vector.broadcast %cst_144 : f32 to vector<2x96xf32>
      %385 = arith.addf %384, %383 : vector<2x96xf32>
      %386 = arith.divf %384, %385 : vector<2x96xf32>
      %387 = vector.extract_strided_slice %386 {offsets = [0, 0], sizes = [2, 32], strides = [1, 1]} : vector<2x96xf32> to vector<2x32xf32>
      %388 = vector.extract_strided_slice %386 {offsets = [0, 32], sizes = [2, 32], strides = [1, 1]} : vector<2x96xf32> to vector<2x32xf32>
      %389 = vector.extract_strided_slice %386 {offsets = [0, 64], sizes = [2, 32], strides = [1, 1]} : vector<2x96xf32> to vector<2x32xf32>
      %390 = vector.extract_strided_slice %380 {offsets = [0, 96], sizes = [2, 32], strides = [1, 1]} : vector<2x128xf32> to vector<2x32xf32>
      %391 = math.tanh %390 : vector<2x32xf32>
      %392 = arith.mulf %388, %365 : vector<2x32xf32>
      %393 = arith.mulf %387, %391 : vector<2x32xf32>
      %394 = arith.addf %392, %393 : vector<2x32xf32>
      %395 = math.tanh %394 : vector<2x32xf32>
      %396 = arith.mulf %389, %395 : vector<2x32xf32>
      %397 = arith.addi %0, %c7_i32 : i32
      %398 = vector.broadcast %397 : i32 to vector<2x1xi32>
      %399 = arith.cmpi sgt, %92, %398 : vector<2x1xi32>
      %400 = vector.shape_cast %399 : vector<2x1xi1> to vector<2x1xi1>
      %401 = vector.broadcast %400 : vector<2x1xi1> to vector<2x32xi1>
      %402 = arith.select %401, %396, %362 : vector<2x32xi1>, vector<2x32xf32>
      %403 = vector.shape_cast %399 : vector<2x1xi1> to vector<2x1xi1>
      %404 = vector.broadcast %403 : vector<2x1xi1> to vector<2x32xi1>
      %405 = arith.select %404, %394, %365 : vector<2x32xi1>, vector<2x32xf32>
      %cst_145 = arith.constant 0.000000e+00 : f32
      %406 = vector.broadcast %cst_145 : f32 to vector<2x32xf32>
      %407 = vector.shape_cast %399 : vector<2x1xi1> to vector<2x1xi1>
      %408 = vector.broadcast %407 : vector<2x1xi1> to vector<2x32xi1>
      %409 = arith.select %408, %396, %406 : vector<2x32xi1>, vector<2x32xf32>
      %410 = arith.truncf %409 : vector<2x32xf32> to vector<2x32xbf16>
      %411 = arith.index_cast %c7_i32 : i32 to index
      %c0_146 = arith.constant 0 : index
      %c0_147 = arith.constant 0 : index
      %412 = vector.load %arg10[%411, %c0_146, %c0_147] : memref<8x2x32xbf16, #tpu.memory_space<vmem>>, vector<1x2x32xbf16>
      %413 = vector.shape_cast %412 : vector<1x2x32xbf16> to vector<2x32xbf16>
      %414 = vector.shape_cast %410 : vector<2x32xbf16> to vector<1x2x32xbf16>
      tpu.vector_store %arg10[%411, %c0_146, %c0_147], %414 {strides = array<i32>} : memref<8x2x32xbf16, #tpu.memory_space<vmem>>, vector<1x2x32xbf16>,
      %c8_i32_148 = arith.constant 8 : i32
      %c0_149 = arith.constant 0 : index
      %c0_150 = arith.constant 0 : index
      %415 = vector.load %arg11[%c0_149, %c0_150] : memref<2x32xf32, #tpu.memory_space<vmem>>, vector<2x32xf32>
      tpu.vector_store %arg11[%c0_149, %c0_150], %402 {strides = array<i32>} : memref<2x32xf32, #tpu.memory_space<vmem>>, vector<2x32xf32>,
      %c0_151 = arith.constant 0 : index
      %c0_152 = arith.constant 0 : index
      %416 = vector.load %arg12[%c0_151, %c0_152] : memref<2x32xf32, #tpu.memory_space<vmem>>, vector<2x32xf32>
      tpu.vector_store %arg12[%c0_151, %c0_152], %405 {strides = array<i32>} : memref<2x32xf32, #tpu.memory_space<vmem>>, vector<2x32xf32>,
    } else {
    }
    %true = arith.constant true
    %8 = arith.xori %2, %true : i1
    %9 = arith.extui %8 : i1 to i32
    %c0_i32_2 = arith.constant 0 : i32
    %10 = arith.cmpi ne, %9, %c0_i32_2 : i32
    scf.if %10 {
      %cst = arith.constant 0.000000e+00 : bf16
      %11 = vector.broadcast %cst : bf16 to vector<8x2x32xbf16>
      %c0_3 = arith.constant 0 : index
      %c0_4 = arith.constant 0 : index
      %c0_5 = arith.constant 0 : index
      %12 = vector.load %arg10[%c0_3, %c0_4, %c0_5] : memref<8x2x32xbf16, #tpu.memory_space<vmem>>, vector<8x2x32xbf16>
      tpu.vector_store %arg10[%c0_3, %c0_4, %c0_5], %11 {strides = array<i32>} : memref<8x2x32xbf16, #tpu.memory_space<vmem>>, vector<8x2x32xbf16>,
    } else {
    }
    return
  }
  func.func @transform_0(%arg0: i32, %arg1: i32, %arg2: memref<1xi32, #tpu.memory_space<smem>>) -> (i32, i32, i32) {
    %c0_i32 = arith.constant 0 : i32
    %c0_i32_0 = arith.constant 0 : i32
    return %arg1, %arg0, %c0_i32 : i32, i32, i32
  }
  func.func @transform_1(%arg0: i32, %arg1: i32, %arg2: memref<1xi32, #tpu.memory_space<smem>>) -> (i32, i32) {
    %c0_i32 = arith.constant 0 : i32
    %c0_i32_0 = arith.constant 0 : i32
    %c0_i32_1 = arith.constant 0 : i32
    return %c0_i32, %c0_i32_0 : i32, i32
  }
  func.func @transform_2(%arg0: i32, %arg1: i32, %arg2: memref<1xi32, #tpu.memory_space<smem>>) -> (i32, i32) {
    %c0_i32 = arith.constant 0 : i32
    %c0_i32_0 = arith.constant 0 : i32
    %c0_i32_1 = arith.constant 0 : i32
    return %c0_i32, %c0_i32_0 : i32, i32
  }
  func.func @transform_3(%arg0: i32, %arg1: i32, %arg2: memref<1xi32, #tpu.memory_space<smem>>) -> (i32, i32) {
    %c0_i32 = arith.constant 0 : i32
    %c0_i32_0 = arith.constant 0 : i32
    %c0_i32_1 = arith.constant 0 : i32
    return %c0_i32, %c0_i32_0 : i32, i32
  }
  func.func @transform_4(%arg0: i32, %arg1: i32, %arg2: memref<1xi32, #tpu.memory_space<smem>>) -> (i32, i32) {
    %c0_i32 = arith.constant 0 : i32
    %c0_i32_0 = arith.constant 0 : i32
    return %arg0, %c0_i32 : i32, i32
  }
  func.func @transform_5(%arg0: i32, %arg1: i32, %arg2: memref<1xi32, #tpu.memory_space<smem>>) -> (i32, i32) {
    %c0_i32 = arith.constant 0 : i32
    %c0_i32_0 = arith.constant 0 : i32
    return %arg0, %c0_i32 : i32, i32
  }
  func.func @transform_6(%arg0: i32, %arg1: i32, %arg2: memref<1xi32, #tpu.memory_space<smem>>) -> (i32, i32) {
    %c0_i32 = arith.constant 0 : i32
    %c0_i32_0 = arith.constant 0 : i32
    return %arg0, %c0_i32 : i32, i32
  }
  func.func @transform_7(%arg0: i32, %arg1: i32, %arg2: memref<1xi32, #tpu.memory_space<smem>>) -> (i32, i32, i32) {
    %c0_i32 = arith.constant 0 : i32
    %c0_i32_0 = arith.constant 0 : i32
    return %arg1, %arg0, %c0_i32 : i32, i32, i32
  }
  func.func @transform_8(%arg0: i32, %arg1: i32, %arg2: memref<1xi32, #tpu.memory_space<smem>>) -> (i32, i32) {
    %c0_i32 = arith.constant 0 : i32
    %c0_i32_0 = arith.constant 0 : i32
    return %arg0, %c0_i32 : i32, i32
  }
  func.func @transform_9(%arg0: i32, %arg1: i32, %arg2: memref<1xi32, #tpu.memory_space<smem>>) -> (i32, i32) {
    %c0_i32 = arith.constant 0 : i32
    %c0_i32_0 = arith.constant 0 : i32
    return %arg0, %c0_i32 : i32, i32
  }
}

</mosaic_0001>

<llo_original>
// kernel: rnn_model_forward.5
$region0: #{rnn_model_forward.5}
  #allocation0 [shape = 'u32[]', space=smem, size = 0x4, offset = 0x4, fixed_abs, tag = 'smem constant byte address 0x4 - core index']
  #allocation1 [shape = 'u32[72,128]{1,0:T(1,128)}', space=vmem, size = 0x9000, scoped, tag = 'internal scratch']
  %s0 = inlined_call_operand.vmem [shape: f32[2,32], index: 0, kind: input, shape index: {}]
  %s1 = inlined_call_operand.vmem [shape: bf16[32,128], index: 1, kind: input, shape index: {}]
  %s2 = inlined_call_operand.vmem [shape: f32[1,128], index: 2, kind: input, shape index: {}]
  %s3 = inlined_call_operand.hbm [shape: f32[2,128], index: 3, kind: output, shape index: {}]
  %s4 = sld [smem:[#allocation0]]
  $region22: #{rnn_model_forward.5} parent=0
    _
  %s6 = ssub.s32 1, %s4
  %s7 = scalar_select 0, %s6, %s4
  $region1: #{rnn_model_forward.5} parent=0
    #allocation2 [shape = 'u8[1024]{0}', space=vmem, size = 0x400, scoped, tag = 'output window, operand 0, single buffered']
    #allocation3 [shape = 's32[1]{0}', space=sflag, size = 0x4, scoped, tag = 'scoped memory for rnn_model_forward.5']
    %8 = vsyncpa [#allocation3], 0
    // Predicated region
    $region2: #{rnn_model_forward.5} parent=1 // pred_check
      _
    $region3: #{rnn_model_forward.5} parent=1 // pred_check_branch
      %10 = sbr.rel (0) target = $region5
    $region4: #{rnn_model_forward.5} parent=1 // pred_region
      _
    $region5: #{rnn_model_forward.5} parent=1 // pred_fallthru
      _
    // Predicated region
    $region6: #{rnn_model_forward.5} parent=1 // pred_check
      _
    $region7: #{rnn_model_forward.5} parent=1 // pred_check_branch
      %12 = sbr.rel (0) target = $region9
    $region8: #{rnn_model_forward.5} parent=1 // pred_region
      _
    $region9: #{rnn_model_forward.5} parent=1 // pred_fallthru
      _
    // Predicated region
    $region10: #{rnn_model_forward.5} parent=1 // pred_check
      _
    $region11: #{rnn_model_forward.5} parent=1 // pred_check_branch
      %14 = sbr.rel (0) target = $region13
    $region12: #{rnn_model_forward.5} parent=1 // pred_region
      _
    $region13: #{rnn_model_forward.5} parent=1 // pred_fallthru
      _
    %v16 = vld [vmem:[%s0] sm:$0x3]
    %v17 = vpack.c.bf16 %v16, %v16
    %v18 = vld [vmem:[%s1] sm:$0xf]
    %v19 = vld [vmem:[%s1 + $0x4] sm:$0xf]
    %v20 = vld [vmem:[%s1 + $0x8] sm:$0xf]
    %v21 = vld [vmem:[%s1 + $0xc] sm:$0xf]
    %v22 = vld [vmem:[%s2] sm:$0x1]
    %v24 = vperm.slane %v22, 0
    %v30 = vunpack.c.l.b16 %v18
    %v31 = vunpack.c.l.b16 %v19
    %v32 = vunpack.c.l.b16 %v20
    %v33 = vunpack.c.l.b16 %v21
    %v34 = vpack.c.b16 %v31, %v30
    %v35 = vpack.c.b16 %v33, %v32
    %vm38 = vcmask 261120
    %v40 = vsel %vm38, %v17, 0
    %42 = vmatpush.bf16.msra.mxu0 0
    %43 = vmatpush.bf16.msra.mxu0 0
    %44 = vmatpush.bf16.msra.mxu0 0
    %45 = vmatpush.bf16.msra.mxu0 0
    %46 = vmatpush.bf16.msra.mxu0 0
    %47 = vmatpush.bf16.msra.mxu0 0
    %48 = vmatpush.bf16.msra.mxu0 %v35
    %49 = vmatpush.bf16.msra.mxu0 %v34
    %50 = vmatmul.bf16.gmra.mxu0 %v40
    %v51 = vpop.f32.mrf.mxu0
    %v52 = vadd.f32 %v24, %v51
    %v53 = vpop.f32.mrf.mxu0
    %54 = vdwg.mxu0
    %vm55 = vcmask 1041408
    %v56 = vsel %vm55, %v52, -inf
    %57 = vmax.xlane.f32.xlu0 %v56
    %v58 = vpop.xlane.xlu0 %57
    %v59 = vsub.f32 %v52, %v58
    %v60 = vmul.f32 %v59, 1.442695
    %v61 = vpow.pop %v60
    %v62 = vsel %vm55, %v61, 0.0
    %63 = vadd.xlane.f32.xlu0 %v62
    %v64 = vpop.xlane.xlu0 %63
    %v65 = vlog2.pop %v64
    %v66 = vmul.f32 %v65, 0.6931472
    %v67 = vsub.f32 %v59, %v66
    %68 = vst [vmem:[#allocation2] sm:$0x3] %v67
    // Predicated region
    $region14: #{rnn_model_forward.5} parent=1 // pred_check
      _
    $region15: #{rnn_model_forward.5} parent=1 // pred_check_branch
      %70 = sbr.rel (0) target = $region17
    $region16: #{rnn_model_forward.5} parent=1 // pred_region
      %72 = vsyncadd [#allocation3], 0
      %s74 = sshll.u32 [#allocation2], 4
      %s75 = int_to_ptr.vmem [resolvable:$true] %s74
      %s76 = sshll.u32 %s3, 4
      %s77 = int_to_ptr.hbm [resolvable:$true] %s76
      %79 = dma.vmem_to_hbm [thread:$0]  %s75, 32, %s77, [#allocation3]
    $region17: #{rnn_model_forward.5} parent=1 // pred_fallthru
      _
    // Predicated region
    $region18: #{rnn_model_forward.5} parent=1 // pred_check
      _
    $region19: #{rnn_model_forward.5} parent=1 // pred_check_branch
      %81 = sbr.rel (0) target = $region21
    $region20: #{rnn_model_forward.5} parent=1 // pred_region
      %83 = dma.done [#allocation3], 32
    $region21: #{rnn_model_forward.5} parent=1 // pred_fallthru
      _
    %84 = vsyncpa [#allocation3], 1

// kernel: rnn_model_forward.4
$region0: #{rnn_model_forward.4}
  #allocation0 [shape = 'u32[]', space=smem, size = 0x4, offset = 0x4, fixed_abs, tag = 'smem constant byte address 0x4 - core index']
  #allocation1 [shape = 'u32[72,128]{1,0:T(1,128)}', space=vmem, size = 0x9000, scoped, tag = 'internal scratch']
  #allocation2 [shape = 'f32[8,2,128]{2,1,0:T(2,128)}', space=vmem, size = 0x2000, scoped, tag = 'scratch operand']
  #allocation3 [shape = 's32[1]{0}', space=sflag, size = 0x4, scoped, tag = 'scoped memory for rnn_model_forward.4']
  #allocation4 [shape = 's32[1]{0:T(128)S(6)}', space=smem, size = 0x200, scoped, tag = 'prefetched SMEM operand 0']
  %s0 = inlined_call_operand.<no memory space> [shape: s32[1], index: 0, kind: input, shape index: {}]
  %s1 = inlined_call_operand.vmem [shape: bf16[8,2,32], index: 1, kind: input, shape index: {}]
  %s2 = inlined_call_operand.vmem [shape: bf16[32,128], index: 2, kind: input, shape index: {}]
  %s3 = inlined_call_operand.vmem [shape: f32[1,128], index: 3, kind: input, shape index: {}]
  %s4 = inlined_call_operand.vmem [shape: bf16[32,128], index: 4, kind: input, shape index: {}]
  %s5 = inlined_call_operand.vmem [shape: s32[2,1], index: 5, kind: input, shape index: {}]
  %s6 = inlined_call_operand.vmem [shape: f32[2,32], index: 6, kind: input, shape index: {}]
  %s7 = inlined_call_operand.vmem [shape: f32[2,32], index: 7, kind: input, shape index: {}]
  %s8 = inlined_call_operand.vmem [shape: f32[2,32], index: 8, kind: output, shape index: {0}]
  %s9 = inlined_call_operand.vmem [shape: f32[2,32], index: 9, kind: output, shape index: {1}]
  %10 = xla_tuple %s8, %s9
  %s11 = sld [smem:[#allocation0]]
  $region54: #{rnn_model_forward.4} parent=0
    _
  %s13 = ssub.s32 1, %s11
  %s14 = scalar_select 0, %s13, %s11
  %15 = sst [smem:[#allocation4]] %s0
  // Predicated region
  $region2: #{rnn_model_forward.4} parent=0 // pred_check
    _
  $region3: #{rnn_model_forward.4} parent=0 // pred_check_branch
    %17 = sbr.rel (0) target = $region5
  $region4: #{rnn_model_forward.4} parent=0 // pred_region
    _
  $region5: #{rnn_model_forward.4} parent=0 // pred_fallthru
    _
  // Predicated region
  $region6: #{rnn_model_forward.4} parent=0 // pred_check
    _
  $region7: #{rnn_model_forward.4} parent=0 // pred_check_branch
    %19 = sbr.rel (0) target = $region9
  $region8: #{rnn_model_forward.4} parent=0 // pred_region
    _
  $region9: #{rnn_model_forward.4} parent=0 // pred_fallthru
    _
  // Predicated region
  $region10: #{rnn_model_forward.4} parent=0 // pred_check
    _
  $region11: #{rnn_model_forward.4} parent=0 // pred_check_branch
    %21 = sbr.rel (0) target = $region13
  $region12: #{rnn_model_forward.4} parent=0 // pred_region
    _
  $region13: #{rnn_model_forward.4} parent=0 // pred_fallthru
    _
  // Predicated region
  $region14: #{rnn_model_forward.4} parent=0 // pred_check
    _
  $region15: #{rnn_model_forward.4} parent=0 // pred_check_branch
    %23 = sbr.rel (0) target = $region17
  $region16: #{rnn_model_forward.4} parent=0 // pred_region
    _
  $region17: #{rnn_model_forward.4} parent=0 // pred_fallthru
    _
  // Predicated region
  $region18: #{rnn_model_forward.4} parent=0 // pred_check
    _
  $region19: #{rnn_model_forward.4} parent=0 // pred_check_branch
    %25 = sbr.rel (0) target = $region21
  $region20: #{rnn_model_forward.4} parent=0 // pred_region
    _
  $region21: #{rnn_model_forward.4} parent=0 // pred_fallthru
    _
  // Predicated region
  $region22: #{rnn_model_forward.4} parent=0 // pred_check
    _
  $region23: #{rnn_model_forward.4} parent=0 // pred_check_branch
    %27 = sbr.rel (0) target = $region25
  $region24: #{rnn_model_forward.4} parent=0 // pred_region
    _
  $region25: #{rnn_model_forward.4} parent=0 // pred_fallthru
    _
  // Predicated region
  $region26: #{rnn_model_forward.4} parent=0 // pred_check
    _
  $region27: #{rnn_model_forward.4} parent=0 // pred_check_branch
    %29 = sbr.rel (0) target = $region29
  $region28: #{rnn_model_forward.4} parent=0 // pred_region
    _
  $region29: #{rnn_model_forward.4} parent=0 // pred_fallthru
    _
  %s31 = smul.u32 0, 8
  %s32 = sld [smem:[#allocation4]]
  %p33 = scmp.lt.s32.totalorder %s31, %s32
  %p34 = scmp.eq.s32.totalorder 0, 0
  // Predicated region
  $region30: #{rnn_model_forward.4} parent=0 // pred_check
    %p35 = pneg %p34
  $region31: #{rnn_model_forward.4} parent=0 // pred_check_branch
    %37 = sbr.rel (%p35) target = $region33
  $region32: #{rnn_model_forward.4} parent=0 // pred_region
    %v38 = vld [vmem:[%s6] sm:$0x3]
    %vm39 = vcmask 254976
    %40 = vst.msk [vmem:[%s8] sm:$0x3] %vm39, %v38
    %v41 = vld [vmem:[%s7] sm:$0x3]
    %42 = vst.msk [vmem:[%s9] sm:$0x3] %vm39, %v41
  $region33: #{rnn_model_forward.4} parent=0 // pred_fallthru
    _
  // Predicated region
  $region34: #{rnn_model_forward.4} parent=0 // pred_check
    %p43 = pneg %p33
  $region35: #{rnn_model_forward.4} parent=0 // pred_check_branch
    %45 = sbr.rel (%p43) target = $region37
  $region36: #{rnn_model_forward.4} parent=0 // pred_region
    %v46 = vld [vmem:[%s1] sm:$0x1]
    %v47 = vld [vmem:[%s2] sm:$0xf]
    %v48 = vld [vmem:[%s2 + $0x4] sm:$0xf]
    %v49 = vld [vmem:[%s2 + $0x8] sm:$0xf]
    %v50 = vld [vmem:[%s2 + $0xc] sm:$0xf]
    %v51 = vld [vmem:[%s3] sm:$0x1]
    %v53 = vperm.slane %v51, 0
    %v59 = vunpack.c.l.b16 %v47
    %v60 = vunpack.c.l.b16 %v48
    %v61 = vunpack.c.l.b16 %v49
    %v62 = vunpack.c.l.b16 %v50
    %v63 = vpack.c.b16 %v60, %v59
    %v64 = vpack.c.b16 %v62, %v61
    %vm67 = vcmask 261120
    %v69 = vsel %vm67, %v46, 0
    %71 = vmatpush.bf16.msra.mxu0 0
    %72 = vmatpush.bf16.msra.mxu0 0
    %73 = vmatpush.bf16.msra.mxu0 0
    %74 = vmatpush.bf16.msra.mxu0 0
    %75 = vmatpush.bf16.msra.mxu0 0
    %76 = vmatpush.bf16.msra.mxu0 0
    %77 = vmatpush.bf16.msra.mxu0 %v64
    %78 = vmatpush.bf16.msra.mxu0 %v63
    %79 = vmatmul.bf16.gmra.mxu0 %v69
    %v80 = vpop.f32.mrf.mxu0
    %v81 = vadd.f32 %v53, %v80
    %v82 = vpop.f32.mrf.mxu0
    %83 = vdwg.mxu0
    %84 = vst [vmem:[#allocation2] sm:$0x3] %v81
    %s85 = scalar_lea.vmem %s1, 1
    %v86 = vld [vmem:[%s85] sm:$0x1]
    %v87 = vld [vmem:[%s2] sm:$0xf]
    %v88 = vld [vmem:[%s2 + $0x4] sm:$0xf]
    %v89 = vld [vmem:[%s2 + $0x8] sm:$0xf]
    %v90 = vld [vmem:[%s2 + $0xc] sm:$0xf]
    %v91 = vld [vmem:[%s3] sm:$0x1]
    %v93 = vperm.slane %v91, 0
    %v99 = vunpack.c.l.b16 %v87
    %v100 = vunpack.c.l.b16 %v88
    %v101 = vunpack.c.l.b16 %v89
    %v102 = vunpack.c.l.b16 %v90
    %v103 = vpack.c.b16 %v100, %v99
    %v104 = vpack.c.b16 %v102, %v101
    %v108 = vsel %vm67, %v86, 0
    %110 = vmatpush.bf16.msra.mxu0 0
    %111 = vmatpush.bf16.msra.mxu0 0
    %112 = vmatpush.bf16.msra.mxu0 0
    %113 = vmatpush.bf16.msra.mxu0 0
    %114 = vmatpush.bf16.msra.mxu0 0
    %115 = vmatpush.bf16.msra.mxu0 0
    %116 = vmatpush.bf16.msra.mxu0 %v104
    %117 = vmatpush.bf16.msra.mxu0 %v103
    %118 = vmatmul.bf16.gmra.mxu0 %v108
    %v119 = vpop.f32.mrf.mxu0
    %v120 = vadd.f32 %v93, %v119
    %v121 = vpop.f32.mrf.mxu0
    %122 = vdwg.mxu0
    %s123 = scalar_lea.vmem [#allocation2], 2
    %124 = vst [vmem:[%s123] sm:$0x3] %v120
    %s125 = scalar_lea.vmem %s1, 2
    %v126 = vld [vmem:[%s125] sm:$0x1]
    %v127 = vld [vmem:[%s2] sm:$0xf]
    %v128 = vld [vmem:[%s2 + $0x4] sm:$0xf]
    %v129 = vld [vmem:[%s2 + $0x8] sm:$0xf]
    %v130 = vld [vmem:[%s2 + $0xc] sm:$0xf]
    %v131 = vld [vmem:[%s3] sm:$0x1]
    %v133 = vperm.slane %v131, 0
    %v139 = vunpack.c.l.b16 %v127
    %v140 = vunpack.c.l.b16 %v128
    %v141 = vunpack.c.l.b16 %v129
    %v142 = vunpack.c.l.b16 %v130
    %v143 = vpack.c.b16 %v140, %v139
    %v144 = vpack.c.b16 %v142, %v141
    %v148 = vsel %vm67, %v126, 0
    %150 = vmatpush.bf16.msra.mxu0 0
    %151 = vmatpush.bf16.msra.mxu0 0
    %152 = vmatpush.bf16.msra.mxu0 0
    %153 = vmatpush.bf16.msra.mxu0 0
    %154 = vmatpush.bf16.msra.mxu0 0
    %155 = vmatpush.bf16.msra.mxu0 0
    %156 = vmatpush.bf16.msra.mxu0 %v144
    %157 = vmatpush.bf16.msra.mxu0 %v143
    %158 = vmatmul.bf16.gmra.mxu0 %v148
    %v159 = vpop.f32.mrf.mxu0
    %v160 = vadd.f32 %v133, %v159
    %v161 = vpop.f32.mrf.mxu0
    %162 = vdwg.mxu0
    %s163 = scalar_lea.vmem [#allocation2], 4
    %164 = vst [vmem:[%s163] sm:$0x3] %v160
    %s165 = scalar_lea.vmem %s1, 3
    %v166 = vld [vmem:[%s165] sm:$0x1]
    %v167 = vld [vmem:[%s2] sm:$0xf]
    %v168 = vld [vmem:[%s2 + $0x4] sm:$0xf]
    %v169 = vld [vmem:[%s2 + $0x8] sm:$0xf]
    %v170 = vld [vmem:[%s2 + $0xc] sm:$0xf]
    %v171 = vld [vmem:[%s3] sm:$0x1]
    %v173 = vperm.slane %v171, 0
    %v179 = vunpack.c.l.b16 %v167
    %v180 = vunpack.c.l.b16 %v168
    %v181 = vunpack.c.l.b16 %v169
    %v182 = vunpack.c.l.b16 %v170
    %v183 = vpack.c.b16 %v180, %v179
    %v184 = vpack.c.b16 %v182, %v181
    %v188 = vsel %vm67, %v166, 0
    %190 = vmatpush.bf16.msra.mxu0 0
    %191 = vmatpush.bf16.msra.mxu0 0
    %192 = vmatpush.bf16.msra.mxu0 0
    %193 = vmatpush.bf16.msra.mxu0 0
    %194 = vmatpush.bf16.msra.mxu0 0
    %195 = vmatpush.bf16.msra.mxu0 0
    %196 = vmatpush.bf16.msra.mxu0 %v184
    %197 = vmatpush.bf16.msra.mxu0 %v183
    %198 = vmatmul.bf16.gmra.mxu0 %v188
    %v199 = vpop.f32.mrf.mxu0
    %v200 = vadd.f32 %v173, %v199
    %v201 = vpop.f32.mrf.mxu0
    %202 = vdwg.mxu0
    %s203 = scalar_lea.vmem [#allocation2], 6
    %204 = vst [vmem:[%s203] sm:$0x3] %v200
    %s205 = scalar_lea.vmem %s1, 4
    %v206 = vld [vmem:[%s205] sm:$0x1]
    %v207 = vld [vmem:[%s2] sm:$0xf]
    %v208 = vld [vmem:[%s2 + $0x4] sm:$0xf]
    %v209 = vld [vmem:[%s2 + $0x8] sm:$0xf]
    %v210 = vld [vmem:[%s2 + $0xc] sm:$0xf]
    %v211 = vld [vmem:[%s3] sm:$0x1]
    %v213 = vperm.slane %v211, 0
    %v219 = vunpack.c.l.b16 %v207
    %v220 = vunpack.c.l.b16 %v208
    %v221 = vunpack.c.l.b16 %v209
    %v222 = vunpack.c.l.b16 %v210
    %v223 = vpack.c.b16 %v220, %v219
    %v224 = vpack.c.b16 %v222, %v221
    %v228 = vsel %vm67, %v206, 0
    %230 = vmatpush.bf16.msra.mxu0 0
    %231 = vmatpush.bf16.msra.mxu0 0
    %232 = vmatpush.bf16.msra.mxu0 0
    %233 = vmatpush.bf16.msra.mxu0 0
    %234 = vmatpush.bf16.msra.mxu0 0
    %235 = vmatpush.bf16.msra.mxu0 0
    %236 = vmatpush.bf16.msra.mxu0 %v224
    %237 = vmatpush.bf16.msra.mxu0 %v223
    %238 = vmatmul.bf16.gmra.mxu0 %v228
    %v239 = vpop.f32.mrf.mxu0
    %v240 = vadd.f32 %v213, %v239
    %v241 = vpop.f32.mrf.mxu0
    %242 = vdwg.mxu0
    %s243 = scalar_lea.vmem [#allocation2], 8
    %244 = vst [vmem:[%s243] sm:$0x3] %v240
    %s245 = scalar_lea.vmem %s1, 5
    %v246 = vld [vmem:[%s245] sm:$0x1]
    %v247 = vld [vmem:[%s2] sm:$0xf]
    %v248 = vld [vmem:[%s2 + $0x4] sm:$0xf]
    %v249 = vld [vmem:[%s2 + $0x8] sm:$0xf]
    %v250 = vld [vmem:[%s2 + $0xc] sm:$0xf]
    %v251 = vld [vmem:[%s3] sm:$0x1]
    %v253 = vperm.slane %v251, 0
    %v259 = vunpack.c.l.b16 %v247
    %v260 = vunpack.c.l.b16 %v248
    %v261 = vunpack.c.l.b16 %v249
    %v262 = vunpack.c.l.b16 %v250
    %v263 = vpack.c.b16 %v260, %v259
    %v264 = vpack.c.b16 %v262, %v261
    %v268 = vsel %vm67, %v246, 0
    %270 = vmatpush.bf16.msra.mxu0 0
    %271 = vmatpush.bf16.msra.mxu0 0
    %272 = vmatpush.bf16.msra.mxu0 0
    %273 = vmatpush.bf16.msra.mxu0 0
    %274 = vmatpush.bf16.msra.mxu0 0
    %275 = vmatpush.bf16.msra.mxu0 0
    %276 = vmatpush.bf16.msra.mxu0 %v264
    %277 = vmatpush.bf16.msra.mxu0 %v263
    %278 = vmatmul.bf16.gmra.mxu0 %v268
    %v279 = vpop.f32.mrf.mxu0
    %v280 = vadd.f32 %v253, %v279
    %v281 = vpop.f32.mrf.mxu0
    %282 = vdwg.mxu0
    %s283 = scalar_lea.vmem [#allocation2], 10
    %284 = vst [vmem:[%s283] sm:$0x3] %v280
    %s285 = scalar_lea.vmem %s1, 6
    %v286 = vld [vmem:[%s285] sm:$0x1]
    %v287 = vld [vmem:[%s2] sm:$0xf]
    %v288 = vld [vmem:[%s2 + $0x4] sm:$0xf]
    %v289 = vld [vmem:[%s2 + $0x8] sm:$0xf]
    %v290 = vld [vmem:[%s2 + $0xc] sm:$0xf]
    %v291 = vld [vmem:[%s3] sm:$0x1]
    %v293 = vperm.slane %v291, 0
    %v299 = vunpack.c.l.b16 %v287
    %v300 = vunpack.c.l.b16 %v288
    %v301 = vunpack.c.l.b16 %v289
    %v302 = vunpack.c.l.b16 %v290
    %v303 = vpack.c.b16 %v300, %v299
    %v304 = vpack.c.b16 %v302, %v301
    %v308 = vsel %vm67, %v286, 0
    %310 = vmatpush.bf16.msra.mxu0 0
    %311 = vmatpush.bf16.msra.mxu0 0
    %312 = vmatpush.bf16.msra.mxu0 0
    %313 = vmatpush.bf16.msra.mxu0 0
    %314 = vmatpush.bf16.msra.mxu0 0
    %315 = vmatpush.bf16.msra.mxu0 0
    %316 = vmatpush.bf16.msra.mxu0 %v304
    %317 = vmatpush.bf16.msra.mxu0 %v303
    %318 = vmatmul.bf16.gmra.mxu0 %v308
    %v319 = vpop.f32.mrf.mxu0
    %v320 = vadd.f32 %v293, %v319
    %v321 = vpop.f32.mrf.mxu0
    %322 = vdwg.mxu0
    %s323 = scalar_lea.vmem [#allocation2], 12
    %324 = vst [vmem:[%s323] sm:$0x3] %v320
    %s325 = scalar_lea.vmem %s1, 7
    %v326 = vld [vmem:[%s325] sm:$0x1]
    %v327 = vld [vmem:[%s2] sm:$0xf]
    %v328 = vld [vmem:[%s2 + $0x4] sm:$0xf]
    %v329 = vld [vmem:[%s2 + $0x8] sm:$0xf]
    %v330 = vld [vmem:[%s2 + $0xc] sm:$0xf]
    %v331 = vld [vmem:[%s3] sm:$0x1]
    %v333 = vperm.slane %v331, 0
    %v339 = vunpack.c.l.b16 %v327
    %v340 = vunpack.c.l.b16 %v328
    %v341 = vunpack.c.l.b16 %v329
    %v342 = vunpack.c.l.b16 %v330
    %v343 = vpack.c.b16 %v340, %v339
    %v344 = vpack.c.b16 %v342, %v341
    %v348 = vsel %vm67, %v326, 0
    %350 = vmatpush.bf16.msra.mxu0 0
    %351 = vmatpush.bf16.msra.mxu0 0
    %352 = vmatpush.bf16.msra.mxu0 0
    %353 = vmatpush.bf16.msra.mxu0 0
    %354 = vmatpush.bf16.msra.mxu0 0
    %355 = vmatpush.bf16.msra.mxu0 0
    %356 = vmatpush.bf16.msra.mxu0 %v344
    %357 = vmatpush.bf16.msra.mxu0 %v343
    %358 = vmatmul.bf16.gmra.mxu0 %v348
    %v359 = vpop.f32.mrf.mxu0
    %v360 = vadd.f32 %v333, %v359
    %v361 = vpop.f32.mrf.mxu0
    %362 = vdwg.mxu0
    %s363 = scalar_lea.vmem [#allocation2], 14
    %364 = vst [vmem:[%s363] sm:$0x3] %v360
    %v365 = vld [vmem:[%s4] sm:$0xf]
    %v366 = vld [vmem:[%s4 + $0x4] sm:$0xf]
    %v367 = vld [vmem:[%s4 + $0x8] sm:$0xf]
    %v368 = vld [vmem:[%s4 + $0xc] sm:$0xf]
    %v369 = vld [vmem:[%s5] sm:$0x3]
    %v370 = vld [vmem:[%s8] sm:$0x3]
    %v371 = vld [vmem:[%s9] sm:$0x3]
    %v372 = vld [vmem:[#allocation2] sm:$0x3]
    %v373 = vpack.c.bf16 %v370, %v370
    %v378 = vunpack.c.l.b16 %v365
    %v379 = vunpack.c.l.b16 %v366
    %v380 = vunpack.c.l.b16 %v367
    %v381 = vunpack.c.l.b16 %v368
    %v382 = vpack.c.b16 %v379, %v378
    %v383 = vpack.c.b16 %v381, %v380
    %v387 = vsel %vm67, %v373, 0
    %389 = vmatpush.bf16.msra.mxu0 0
    %390 = vmatpush.bf16.msra.mxu0 0
    %391 = vmatpush.bf16.msra.mxu0 0
    %392 = vmatpush.bf16.msra.mxu0 0
    %393 = vmatpush.bf16.msra.mxu0 0
    %394 = vmatpush.bf16.msra.mxu0 0
    %395 = vmatpush.bf16.msra.mxu0 %v383
    %396 = vmatpush.bf16.msra.mxu0 %v382
    %397 = vmatmul.bf16.gmra.mxu0 %v387
    %v398 = vpop.f32.mrf.mxu0
    %v399 = vadd.f32 0.0, %v398
    %v400 = vpop.f32.mrf.mxu0
    %401 = vdwg.mxu0
    %v402 = vadd.f32 %v372, %v399
    %v403 = vxor.u32 %v402, 2147483648
    %v404 = vmul.f32 %v403, 1.442695
    %v405 = vpow.pop %v404
    %v406 = vadd.f32 %v405, 1.0
    %v407 = vrcp.pop %v406
    %v408 = vmul.f32 %v406, %v407
    %v409 = vsub.f32 1.0, %v408
    %v410 = vmul.f32 %v407, %v409
    %v411 = vadd.f32 %v407, %v410
    %vm412 = vweird.f32 %v406
    %vm413 = vweird.f32 %v407
    %vm414 = vmor %vm412, %vm413
    %v415 = vsel %vm414, %v407, %v411
    %v416 = vand.u32 2147483647, %v406
    %vm417 = vcmp.eq.f32.partialorder %v416, 8.507059e+37
    %v418 = vand.u32 %v406, 2147483648
    %v419 = vor.u32 1.1754944e-38, %v418
    %v420 = vsel %vm417, %v419, %v415
    %v421 = vmul.f32 1.0, %v420
    %v422 = vtanh.pop %v402
    %424 = vrot.lane.b32.xlu0 %v371, 32
    %v425 = vpop.permute.xlu0 %424
    %v427 = vmul.f32 %v421, %v425
    %429 = vrot.lane.b32.xlu0 %v422, 32
    %v430 = vpop.permute.xlu0 %429
    %v432 = vmul.f32 %v421, %v430
    %434 = vrot.lane.b32.xlu0 %v432, 32
    %v435 = vpop.permute.xlu0 %434
    %v437 = vadd.f32 %v427, %v435
    %v438 = vtanh.pop %v437
    %440 = vrot.lane.b32.xlu0 %v438, 32
    %v441 = vpop.permute.xlu0 %440
    %v443 = vmul.f32 %v421, %v441
    %v444 = vstv %s31
    %vm445 = vcmp.gt.s32.totalorder %v369, %v444
    %v446 = vsel %vm445, 1, 0
    %447 = vset.pattern.permute.xlu0 0
    %448 = vperm.xlu0 %447, %v446
    %v449 = vpop.permute.xlu0 %448
    %vm450 = vcmp.eq.s32.totalorder %v449, 1
    %452 = vrot.lane.b32.xlu0 %v370, 64
    %v453 = vpop.permute.xlu0 %452
    %v455 = vsel %vm450, %v443, %v453
    %v456 = vsel %vm450, %v437, %v425
    %v457 = vld [vmem:[%s123] sm:$0x3]
    %v458 = vpack.c.bf16 %v455, %v455
    %460 = vrot.lane.b32.xlu0 %v458, 64
    %v461 = vpop.permute.xlu0 %460
    %v463 = vsel %vm67, %v461, 0
    %465 = vmatpush.bf16.msra.mxu0 0
    %466 = vmatpush.bf16.msra.mxu0 0
    %467 = vmatpush.bf16.msra.mxu0 0
    %468 = vmatpush.bf16.msra.mxu0 0
    %469 = vmatpush.bf16.msra.mxu0 0
    %470 = vmatpush.bf16.msra.mxu0 0
    %471 = vmatpush.bf16.msra.mxu0 %v383
    %472 = vmatpush.bf16.msra.mxu0 %v382
    %473 = vmatmul.bf16.gmra.mxu0 %v463
    %v474 = vpop.f32.mrf.mxu0
    %v475 = vadd.f32 0.0, %v474
    %v476 = vpop.f32.mrf.mxu0
    %477 = vdwg.mxu0
    %v478 = vadd.f32 %v457, %v475
    %v479 = vxor.u32 %v478, 2147483648
    %v480 = vmul.f32 %v479, 1.442695
    %v481 = vpow.pop %v480
    %v482 = vadd.f32 %v481, 1.0
    %v483 = vrcp.pop %v482
    %v484 = vmul.f32 %v482, %v483
    %v485 = vsub.f32 1.0, %v484
    %v486 = vmul.f32 %v483, %v485
    %v487 = vadd.f32 %v483, %v486
    %vm488 = vweird.f32 %v482
    %vm489 = vweird.f32 %v483
    %vm490 = vmor %vm488, %vm489
    %v491 = vsel %vm490, %v483, %v487
    %v492 = vand.u32 2147483647, %v482
    %vm493 = vcmp.eq.f32.partialorder %v492, 8.507059e+37
    %v494 = vand.u32 %v482, 2147483648
    %v495 = vor.u32 1.1754944e-38, %v494
    %v496 = vsel %vm493, %v495, %v491
    %v497 = vmul.f32 1.0, %v496
    %v498 = vtanh.pop %v478
    %v499 = vmul.f32 %v497, %v456
    %501 = vrot.lane.b32.xlu0 %v498, 32
    %v502 = vpop.permute.xlu0 %501
    %v504 = vmul.f32 %v497, %v502
    %506 = vrot.lane.b32.xlu0 %v504, 32
    %v507 = vpop.permute.xlu0 %506
    %v509 = vadd.f32 %v499, %v507
    %v510 = vtanh.pop %v509
    %512 = vrot.lane.b32.xlu0 %v510, 32
    %v513 = vpop.permute.xlu0 %512
    %v515 = vmul.f32 %v497, %v513
    %s516 = sadd.s32 %s31, 1
    %v517 = vstv %s516
    %vm518 = vcmp.gt.s32.totalorder %v369, %v517
    %v519 = vsel %vm518, 1, 0
    %520 = vset.pattern.permute.xlu0 0
    %521 = vperm.xlu0 %520, %v519
    %v522 = vpop.permute.xlu0 %521
    %vm523 = vcmp.eq.s32.totalorder %v522, 1
    %v524 = vsel %vm523, %v515, %v455
    %v525 = vsel %vm523, %v509, %v456
    %v526 = vld [vmem:[%s163] sm:$0x3]
    %v527 = vpack.c.bf16 %v524, %v524
    %529 = vrot.lane.b32.xlu0 %v527, 64
    %v530 = vpop.permute.xlu0 %529
    %v532 = vsel %vm67, %v530, 0
    %534 = vmatpush.bf16.msra.mxu0 0
    %535 = vmatpush.bf16.msra.mxu0 0
    %536 = vmatpush.bf16.msra.mxu0 0
    %537 = vmatpush.bf16.msra.mxu0 0
    %538 = vmatpush.bf16.msra.mxu0 0
    %539 = vmatpush.bf16.msra.mxu0 0
    %540 = vmatpush.bf16.msra.mxu0 %v383
    %541 = vmatpush.bf16.msra.mxu0 %v382
    %542 = vmatmul.bf16.gmra.mxu0 %v532
    %v543 = vpop.f32.mrf.mxu0
    %v544 = vadd.f32 0.0, %v543
    %v545 = vpop.f32.mrf.mxu0
    %546 = vdwg.mxu0
    %v547 = vadd.f32 %v526, %v544
    %v548 = vxor.u32 %v547, 2147483648
    %v549 = vmul.f32 %v548, 1.442695
    %v550 = vpow.pop %v549
    %v551 = vadd.f32 %v550, 1.0
    %v552 = vrcp.pop %v551
    %v553 = vmul.f32 %v551, %v552
    %v554 = vsub.f32 1.0, %v553
    %v555 = vmul.f32 %v552, %v554
    %v556 = vadd.f32 %v552, %v555
    %vm557 = vweird.f32 %v551
    %vm558 = vweird.f32 %v552
    %vm559 = vmor %vm557, %vm558
    %v560 = vsel %vm559, %v552, %v556
    %v561 = vand.u32 2147483647, %v551
    %vm562 = vcmp.eq.f32.partialorder %v561, 8.507059e+37
    %v563 = vand.u32 %v551, 2147483648
    %v564 = vor.u32 1.1754944e-38, %v563
    %v565 = vsel %vm562, %v564, %v560
    %v566 = vmul.f32 1.0, %v565
    %v567 = vtanh.pop %v547
    %v568 = vmul.f32 %v566, %v525
    %570 = vrot.lane.b32.xlu0 %v567, 32
    %v571 = vpop.permute.xlu0 %570
    %v573 = vmul.f32 %v566, %v571
    %575 = vrot.lane.b32.xlu0 %v573, 32
    %v576 = vpop.permute.xlu0 %575
    %v578 = vadd.f32 %v568, %v576
    %v579 = vtanh.pop %v578
    %581 = vrot.lane.b32.xlu0 %v579, 32
    %v582 = vpop.permute.xlu0 %581
    %v584 = vmul.f32 %v566, %v582
    %s585 = sadd.s32 %s31, 2
    %v586 = vstv %s585
    %vm587 = vcmp.gt.s32.totalorder %v369, %v586
    %v588 = vsel %vm587, 1, 0
    %589 = vset.pattern.permute.xlu0 0
    %590 = vperm.xlu0 %589, %v588
    %v591 = vpop.permute.xlu0 %590
    %vm592 = vcmp.eq.s32.totalorder %v591, 1
    %v593 = vsel %vm592, %v584, %v524
    %v594 = vsel %vm592, %v578, %v525
    %v595 = vld [vmem:[%s203] sm:$0x3]
    %v596 = vpack.c.bf16 %v593, %v593
    %598 = vrot.lane.b32.xlu0 %v596, 64
    %v599 = vpop.permute.xlu0 %598
    %v601 = vsel %vm67, %v599, 0
    %603 = vmatpush.bf16.msra.mxu0 0
    %604 = vmatpush.bf16.msra.mxu0 0
    %605 = vmatpush.bf16.msra.mxu0 0
    %606 = vmatpush.bf16.msra.mxu0 0
    %607 = vmatpush.bf16.msra.mxu0 0
    %608 = vmatpush.bf16.msra.mxu0 0
    %609 = vmatpush.bf16.msra.mxu0 %v383
    %610 = vmatpush.bf16.msra.mxu0 %v382
    %611 = vmatmul.bf16.gmra.mxu0 %v601
    %v612 = vpop.f32.mrf.mxu0
    %v613 = vadd.f32 0.0, %v612
    %v614 = vpop.f32.mrf.mxu0
    %615 = vdwg.mxu0
    %v616 = vadd.f32 %v595, %v613
    %v617 = vxor.u32 %v616, 2147483648
    %v618 = vmul.f32 %v617, 1.442695
    %v619 = vpow.pop %v618
    %v620 = vadd.f32 %v619, 1.0
    %v621 = vrcp.pop %v620
    %v622 = vmul.f32 %v620, %v621
    %v623 = vsub.f32 1.0, %v622
    %v624 = vmul.f32 %v621, %v623
    %v625 = vadd.f32 %v621, %v624
    %vm626 = vweird.f32 %v620
    %vm627 = vweird.f32 %v621
    %vm628 = vmor %vm626, %vm627
    %v629 = vsel %vm628, %v621, %v625
    %v630 = vand.u32 2147483647, %v620
    %vm631 = vcmp.eq.f32.partialorder %v630, 8.507059e+37
    %v632 = vand.u32 %v620, 2147483648
    %v633 = vor.u32 1.1754944e-38, %v632
    %v634 = vsel %vm631, %v633, %v629
    %v635 = vmul.f32 1.0, %v634
    %v636 = vtanh.pop %v616
    %v637 = vmul.f32 %v635, %v594
    %639 = vrot.lane.b32.xlu0 %v636, 32
    %v640 = vpop.permute.xlu0 %639
    %v642 = vmul.f32 %v635, %v640
    %644 = vrot.lane.b32.xlu0 %v642, 32
    %v645 = vpop.permute.xlu0 %644
    %v647 = vadd.f32 %v637, %v645
    %v648 = vtanh.pop %v647
    %650 = vrot.lane.b32.xlu0 %v648, 32
    %v651 = vpop.permute.xlu0 %650
    %v653 = vmul.f32 %v635, %v651
    %s654 = sadd.s32 %s31, 3
    %v655 = vstv %s654
    %vm656 = vcmp.gt.s32.totalorder %v369, %v655
    %v657 = vsel %vm656, 1, 0
    %658 = vset.pattern.permute.xlu0 0
    %659 = vperm.xlu0 %658, %v657
    %v660 = vpop.permute.xlu0 %659
    %vm661 = vcmp.eq.s32.totalorder %v660, 1
    %v662 = vsel %vm661, %v653, %v593
    %v663 = vsel %vm661, %v647, %v594
    %v664 = vld [vmem:[%s243] sm:$0x3]
    %v665 = vpack.c.bf16 %v662, %v662
    %667 = vrot.lane.b32.xlu0 %v665, 64
    %v668 = vpop.permute.xlu0 %667
    %v670 = vsel %vm67, %v668, 0
    %672 = vmatpush.bf16.msra.mxu0 0
    %673 = vmatpush.bf16.msra.mxu0 0
    %674 = vmatpush.bf16.msra.mxu0 0
    %675 = vmatpush.bf16.msra.mxu0 0
    %676 = vmatpush.bf16.msra.mxu0 0
    %677 = vmatpush.bf16.msra.mxu0 0
    %678 = vmatpush.bf16.msra.mxu0 %v383
    %679 = vmatpush.bf16.msra.mxu0 %v382
    %680 = vmatmul.bf16.gmra.mxu0 %v670
    %v681 = vpop.f32.mrf.mxu0
    %v682 = vadd.f32 0.0, %v681
    %v683 = vpop.f32.mrf.mxu0
    %684 = vdwg.mxu0
    %v685 = vadd.f32 %v664, %v682
    %v686 = vxor.u32 %v685, 2147483648
    %v687 = vmul.f32 %v686, 1.442695
    %v688 = vpow.pop %v687
    %v689 = vadd.f32 %v688, 1.0
    %v690 = vrcp.pop %v689
    %v691 = vmul.f32 %v689, %v690
    %v692 = vsub.f32 1.0, %v691
    %v693 = vmul.f32 %v690, %v692
    %v694 = vadd.f32 %v690, %v693
    %vm695 = vweird.f32 %v689
    %vm696 = vweird.f32 %v690
    %vm697 = vmor %vm695, %vm696
    %v698 = vsel %vm697, %v690, %v694
    %v699 = vand.u32 2147483647, %v689
    %vm700 = vcmp.eq.f32.partialorder %v699, 8.507059e+37
    %v701 = vand.u32 %v689, 2147483648
    %v702 = vor.u32 1.1754944e-38, %v701
    %v703 = vsel %vm700, %v702, %v698
    %v704 = vmul.f32 1.0, %v703
    %v705 = vtanh.pop %v685
    %v706 = vmul.f32 %v704, %v663
    %708 = vrot.lane.b32.xlu0 %v705, 32
    %v709 = vpop.permute.xlu0 %708
    %v711 = vmul.f32 %v704, %v709
    %713 = vrot.lane.b32.xlu0 %v711, 32
    %v714 = vpop.permute.xlu0 %713
    %v716 = vadd.f32 %v706, %v714
    %v717 = vtanh.pop %v716
    %719 = vrot.lane.b32.xlu0 %v717, 32
    %v720 = vpop.permute.xlu0 %719
    %v722 = vmul.f32 %v704, %v720
    %s723 = sadd.s32 %s31, 4
    %v724 = vstv %s723
    %vm725 = vcmp.gt.s32.totalorder %v369, %v724
    %v726 = vsel %vm725, 1, 0
    %727 = vset.pattern.permute.xlu0 0
    %728 = vperm.xlu0 %727, %v726
    %v729 = vpop.permute.xlu0 %728
    %vm730 = vcmp.eq.s32.totalorder %v729, 1
    %v731 = vsel %vm730, %v722, %v662
    %v732 = vsel %vm730, %v716, %v663
    %v733 = vld [vmem:[%s283] sm:$0x3]
    %v734 = vpack.c.bf16 %v731, %v731
    %736 = vrot.lane.b32.xlu0 %v734, 64
    %v737 = vpop.permute.xlu0 %736
    %v739 = vsel %vm67, %v737, 0
    %741 = vmatpush.bf16.msra.mxu0 0
    %742 = vmatpush.bf16.msra.mxu0 0
    %743 = vmatpush.bf16.msra.mxu0 0
    %744 = vmatpush.bf16.msra.mxu0 0
    %745 = vmatpush.bf16.msra.mxu0 0
    %746 = vmatpush.bf16.msra.mxu0 0
    %747 = vmatpush.bf16.msra.mxu0 %v383
    %748 = vmatpush.bf16.msra.mxu0 %v382
    %749 = vmatmul.bf16.gmra.mxu0 %v739
    %v750 = vpop.f32.mrf.mxu0
    %v751 = vadd.f32 0.0, %v750
    %v752 = vpop.f32.mrf.mxu0
    %753 = vdwg.mxu0
    %v754 = vadd.f32 %v733, %v751
    %v755 = vxor.u32 %v754, 2147483648
    %v756 = vmul.f32 %v755, 1.442695
    %v757 = vpow.pop %v756
    %v758 = vadd.f32 %v757, 1.0
    %v759 = vrcp.pop %v758
    %v760 = vmul.f32 %v758, %v759
    %v761 = vsub.f32 1.0, %v760
    %v762 = vmul.f32 %v759, %v761
    %v763 = vadd.f32 %v759, %v762
    %vm764 = vweird.f32 %v758
    %vm765 = vweird.f32 %v759
    %vm766 = vmor %vm764, %vm765
    %v767 = vsel %vm766, %v759, %v763
    %v768 = vand.u32 2147483647, %v758
    %vm769 = vcmp.eq.f32.partialorder %v768, 8.507059e+37
    %v770 = vand.u32 %v758, 2147483648
    %v771 = vor.u32 1.1754944e-38, %v770
    %v772 = vsel %vm769, %v771, %v767
    %v773 = vmul.f32 1.0, %v772
    %v774 = vtanh.pop %v754
    %v775 = vmul.f32 %v773, %v732
    %777 = vrot.lane.b32.xlu0 %v774, 32
    %v778 = vpop.permute.xlu0 %777
    %v780 = vmul.f32 %v773, %v778
    %782 = vrot.lane.b32.xlu0 %v780, 32
    %v783 = vpop.permute.xlu0 %782
    %v785 = vadd.f32 %v775, %v783
    %v786 = vtanh.pop %v785
    %788 = vrot.lane.b32.xlu0 %v786, 32
    %v789 = vpop.permute.xlu0 %788
    %v791 = vmul.f32 %v773, %v789
    %s792 = sadd.s32 %s31, 5
    %v793 = vstv %s792
    %vm794 = vcmp.gt.s32.totalorder %v369, %v793
    %v795 = vsel %vm794, 1, 0
    %796 = vset.pattern.permute.xlu0 0
    %797 = vperm.xlu0 %796, %v795
    %v798 = vpop.permute.xlu0 %797
    %vm799 = vcmp.eq.s32.totalorder %v798, 1
    %v800 = vsel %vm799, %v791, %v731
    %v801 = vsel %vm799, %v785, %v732
    %v802 = vld [vmem:[%s323] sm:$0x3]
    %v803 = vpack.c.bf16 %v800, %v800
    %805 = vrot.lane.b32.xlu0 %v803, 64
    %v806 = vpop.permute.xlu0 %805
    %v808 = vsel %vm67, %v806, 0
    %810 = vmatpush.bf16.msra.mxu0 0
    %811 = vmatpush.bf16.msra.mxu0 0
    %812 = vmatpush.bf16.msra.mxu0 0
    %813 = vmatpush.bf16.msra.mxu0 0
    %814 = vmatpush.bf16.msra.mxu0 0
    %815 = vmatpush.bf16.msra.mxu0 0
    %816 = vmatpush.bf16.msra.mxu0 %v383
    %817 = vmatpush.bf16.msra.mxu0 %v382
    %818 = vmatmul.bf16.gmra.mxu0 %v808
    %v819 = vpop.f32.mrf.mxu0
    %v820 = vadd.f32 0.0, %v819
    %v821 = vpop.f32.mrf.mxu0
    %822 = vdwg.mxu0
    %v823 = vadd.f32 %v802, %v820
    %v824 = vxor.u32 %v823, 2147483648
    %v825 = vmul.f32 %v824, 1.442695
    %v826 = vpow.pop %v825
    %v827 = vadd.f32 %v826, 1.0
    %v828 = vrcp.pop %v827
    %v829 = vmul.f32 %v827, %v828
    %v830 = vsub.f32 1.0, %v829
    %v831 = vmul.f32 %v828, %v830
    %v832 = vadd.f32 %v828, %v831
    %vm833 = vweird.f32 %v827
    %vm834 = vweird.f32 %v828
    %vm835 = vmor %vm833, %vm834
    %v836 = vsel %vm835, %v828, %v832
    %v837 = vand.u32 2147483647, %v827
    %vm838 = vcmp.eq.f32.partialorder %v837, 8.507059e+37
    %v839 = vand.u32 %v827, 2147483648
    %v840 = vor.u32 1.1754944e-38, %v839
    %v841 = vsel %vm838, %v840, %v836
    %v842 = vmul.f32 1.0, %v841
    %v843 = vtanh.pop %v823
    %v844 = vmul.f32 %v842, %v801
    %846 = vrot.lane.b32.xlu0 %v843, 32
    %v847 = vpop.permute.xlu0 %846
    %v849 = vmul.f32 %v842, %v847
    %851 = vrot.lane.b32.xlu0 %v849, 32
    %v852 = vpop.permute.xlu0 %851
    %v854 = vadd.f32 %v844, %v852
    %v855 = vtanh.pop %v854
    %857 = vrot.lane.b32.xlu0 %v855, 32
    %v858 = vpop.permute.xlu0 %857
    %v860 = vmul.f32 %v842, %v858
    %s861 = sadd.s32 %s31, 6
    %v862 = vstv %s861
    %vm863 = vcmp.gt.s32.totalorder %v369, %v862
    %v864 = vsel %vm863, 1, 0
    %865 = vset.pattern.permute.xlu0 0
    %866 = vperm.xlu0 %865, %v864
    %v867 = vpop.permute.xlu0 %866
    %vm868 = vcmp.eq.s32.totalorder %v867, 1
    %v869 = vsel %vm868, %v860, %v800
    %v870 = vsel %vm868, %v854, %v801
    %v871 = vld [vmem:[%s363] sm:$0x3]
    %v872 = vpack.c.bf16 %v869, %v869
    %874 = vrot.lane.b32.xlu0 %v872, 64
    %v875 = vpop.permute.xlu0 %874
    %v877 = vsel %vm67, %v875, 0
    %879 = vmatpush.bf16.msra.mxu0 0
    %880 = vmatpush.bf16.msra.mxu0 0
    %881 = vmatpush.bf16.msra.mxu0 0
    %882 = vmatpush.bf16.msra.mxu0 0
    %883 = vmatpush.bf16.msra.mxu0 0
    %884 = vmatpush.bf16.msra.mxu0 0
    %885 = vmatpush.bf16.msra.mxu0 %v383
    %886 = vmatpush.bf16.msra.mxu0 %v382
    %887 = vmatmul.bf16.gmra.mxu0 %v877
    %v888 = vpop.f32.mrf.mxu0
    %v889 = vadd.f32 0.0, %v888
    %v890 = vpop.f32.mrf.mxu0
    %891 = vdwg.mxu0
    %v892 = vadd.f32 %v871, %v889
    %v893 = vxor.u32 %v892, 2147483648
    %v894 = vmul.f32 %v893, 1.442695
    %v895 = vpow.pop %v894
    %v896 = vadd.f32 %v895, 1.0
    %v897 = vrcp.pop %v896
    %v898 = vmul.f32 %v896, %v897
    %v899 = vsub.f32 1.0, %v898
    %v900 = vmul.f32 %v897, %v899
    %v901 = vadd.f32 %v897, %v900
    %vm902 = vweird.f32 %v896
    %vm903 = vweird.f32 %v897
    %vm904 = vmor %vm902, %vm903
    %v905 = vsel %vm904, %v897, %v901
    %v906 = vand.u32 2147483647, %v896
    %vm907 = vcmp.eq.f32.partialorder %v906, 8.507059e+37
    %v908 = vand.u32 %v896, 2147483648
    %v909 = vor.u32 1.1754944e-38, %v908
    %v910 = vsel %vm907, %v909, %v905
    %v911 = vmul.f32 1.0, %v910
    %v912 = vtanh.pop %v892
    %v913 = vmul.f32 %v911, %v870
    %915 = vrot.lane.b32.xlu0 %v912, 32
    %v916 = vpop.permute.xlu0 %915
    %v918 = vmul.f32 %v911, %v916
    %920 = vrot.lane.b32.xlu0 %v918, 32
    %v921 = vpop.permute.xlu0 %920
    %v923 = vadd.f32 %v913, %v921
    %v924 = vtanh.pop %v923
    %926 = vrot.lane.b32.xlu0 %v924, 32
    %v927 = vpop.permute.xlu0 %926
    %v929 = vmul.f32 %v911, %v927
    %s930 = sadd.s32 %s31, 7
    %v931 = vstv %s930
    %vm932 = vcmp.gt.s32.totalorder %v369, %v931
    %v933 = vsel %vm932, 1, 0
    %934 = vset.pattern.permute.xlu0 0
    %935 = vperm.xlu0 %934, %v933
    %v936 = vpop.permute.xlu0 %935
    %vm937 = vcmp.eq.s32.totalorder %v936, 1
    %v938 = vsel %vm937, %v929, %v869
    %v939 = vsel %vm937, %v923, %v870
    %941 = vrot.lane.b32.xlu0 %v938, 64
    %v942 = vpop.permute.xlu0 %941
    %vm944 = vcmask 254976
    %945 = vst.msk [vmem:[%s8] sm:$0x3] %vm944, %v942
    %947 = vrot.lane.b32.xlu0 %v939, 96
    %v948 = vpop.permute.xlu0 %947
    %950 = vst.msk [vmem:[%s9] sm:$0x3] %vm944, %v948
  $region37: #{rnn_model_forward.4} parent=0 // pred_fallthru
    _
  // Predicated region
  $region38: #{rnn_model_forward.4} parent=0 // pred_check
    _
  $region39: #{rnn_model_forward.4} parent=0 // pred_check_branch
    %952 = sbr.rel (0) target = $region41
  $region40: #{rnn_model_forward.4} parent=0 // pred_region
    _
  $region41: #{rnn_model_forward.4} parent=0 // pred_fallthru
    _
  // Predicated region
  $region42: #{rnn_model_forward.4} parent=0 // pred_check
    _
  $region43: #{rnn_model_forward.4} parent=0 // pred_check_branch
    %954 = sbr.rel (0) target = $region45
  $region44: #{rnn_model_forward.4} parent=0 // pred_region
    _
  $region45: #{rnn_model_forward.4} parent=0 // pred_fallthru
    _
  // Predicated region
  $region46: #{rnn_model_forward.4} parent=0 // pred_check
    _
  $region47: #{rnn_model_forward.4} parent=0 // pred_check_branch
    %956 = sbr.rel (0) target = $region49
  $region48: #{rnn_model_forward.4} parent=0 // pred_region
    _
  $region49: #{rnn_model_forward.4} parent=0 // pred_fallthru
    _
  // Predicated region
  $region50: #{rnn_model_forward.4} parent=0 // pred_check
    _
  $region51: #{rnn_model_forward.4} parent=0 // pred_check_branch
    %958 = sbr.rel (0) target = $region53
  $region52: #{rnn_model_forward.4} parent=0 // pred_region
    _
  $region53: #{rnn_model_forward.4} parent=0 // pred_fallthru
    _

// kernel: rnn_model_forward.3
$region0: #{rnn_model_forward.3}
  #allocation0 [shape = 'u32[]', space=smem, size = 0x4, offset = 0x4, fixed_abs, tag = 'smem constant byte address 0x4 - core index']
  #allocation1 [shape = 'u32[72,128]{1,0:T(1,128)}', space=vmem, size = 0x9000, scoped, tag = 'internal scratch']
  #allocation2 [shape = 'f32[8,2,128]{2,1,0:T(2,128)}', space=vmem, size = 0x2000, scoped, tag = 'scratch operand']
  #allocation3 [shape = 's32[1]{0}', space=sflag, size = 0x4, scoped, tag = 'scoped memory for rnn_model_forward.3']
  #allocation4 [shape = 's32[1]{0:T(128)S(6)}', space=smem, size = 0x200, scoped, tag = 'prefetched SMEM operand 0']
  %s0 = inlined_call_operand.<no memory space> [shape: s32[1], index: 0, kind: input, shape index: {}]
  %s1 = inlined_call_operand.vmem [shape: bf16[8,2,32], index: 1, kind: input, shape index: {}]
  %s2 = inlined_call_operand.vmem [shape: bf16[32,128], index: 2, kind: input, shape index: {}]
  %s3 = inlined_call_operand.vmem [shape: f32[1,128], index: 3, kind: input, shape index: {}]
  %s4 = inlined_call_operand.vmem [shape: bf16[32,128], index: 4, kind: input, shape index: {}]
  %s5 = inlined_call_operand.vmem [shape: s32[2,1], index: 5, kind: input, shape index: {}]
  %s6 = inlined_call_operand.vmem [shape: f32[2,32], index: 6, kind: input, shape index: {}]
  %s7 = inlined_call_operand.vmem [shape: f32[2,32], index: 7, kind: input, shape index: {}]
  %s8 = inlined_call_operand.vmem [shape: bf16[8,2,32], index: 8, kind: output, shape index: {0}]
  %s9 = inlined_call_operand.vmem [shape: f32[2,32], index: 9, kind: output, shape index: {1}]
  %s10 = inlined_call_operand.vmem [shape: f32[2,32], index: 10, kind: output, shape index: {2}]
  %11 = xla_tuple %s8, %s9, %s10
  %s12 = sld [smem:[#allocation0]]
  $region66: #{rnn_model_forward.3} parent=0
    _
  %s14 = ssub.s32 1, %s12
  %s15 = scalar_select 0, %s14, %s12
  %16 = sst [smem:[#allocation4]] %s0
  // Predicated region
  $region2: #{rnn_model_forward.3} parent=0 // pred_check
    _
  $region3: #{rnn_model_forward.3} parent=0 // pred_check_branch
    %18 = sbr.rel (0) target = $region5
  $region4: #{rnn_model_forward.3} parent=0 // pred_region
    _
  $region5: #{rnn_model_forward.3} parent=0 // pred_fallthru
    _
  // Predicated region
  $region6: #{rnn_model_forward.3} parent=0 // pred_check
    _
  $region7: #{rnn_model_forward.3} parent=0 // pred_check_branch
    %20 = sbr.rel (0) target = $region9
  $region8: #{rnn_model_forward.3} parent=0 // pred_region
    _
  $region9: #{rnn_model_forward.3} parent=0 // pred_fallthru
    _
  // Predicated region
  $region10: #{rnn_model_forward.3} parent=0 // pred_check
    _
  $region11: #{rnn_model_forward.3} parent=0 // pred_check_branch
    %22 = sbr.rel (0) target = $region13
  $region12: #{rnn_model_forward.3} parent=0 // pred_region
    _
  $region13: #{rnn_model_forward.3} parent=0 // pred_fallthru
    _
  // Predicated region
  $region14: #{rnn_model_forward.3} parent=0 // pred_check
    _
  $region15: #{rnn_model_forward.3} parent=0 // pred_check_branch
    %24 = sbr.rel (0) target = $region17
  $region16: #{rnn_model_forward.3} parent=0 // pred_region
    _
  $region17: #{rnn_model_forward.3} parent=0 // pred_fallthru
    _
  // Predicated region
  $region18: #{rnn_model_forward.3} parent=0 // pred_check
    _
  $region19: #{rnn_model_forward.3} parent=0 // pred_check_branch
    %26 = sbr.rel (0) target = $region21
  $region20: #{rnn_model_forward.3} parent=0 // pred_region
    _
  $region21: #{rnn_model_forward.3} parent=0 // pred_fallthru
    _
  // Predicated region
  $region22: #{rnn_model_forward.3} parent=0 // pred_check
    _
  $region23: #{rnn_model_forward.3} parent=0 // pred_check_branch
    %28 = sbr.rel (0) target = $region25
  $region24: #{rnn_model_forward.3} parent=0 // pred_region
    _
  $region25: #{rnn_model_forward.3} parent=0 // pred_fallthru
    _
  // Predicated region
  $region26: #{rnn_model_forward.3} parent=0 // pred_check
    _
  $region27: #{rnn_model_forward.3} parent=0 // pred_check_branch
    %30 = sbr.rel (0) target = $region29
  $region28: #{rnn_model_forward.3} parent=0 // pred_region
    _
  $region29: #{rnn_model_forward.3} parent=0 // pred_fallthru
    _
  %s32 = smul.u32 0, 8
  %s33 = sld [smem:[#allocation4]]
  %p34 = scmp.lt.s32.totalorder %s32, %s33
  %p35 = scmp.eq.s32.totalorder 0, 0
  // Predicated region
  $region30: #{rnn_model_forward.3} parent=0 // pred_check
    %p36 = pneg %p35
  $region31: #{rnn_model_forward.3} parent=0 // pred_check_branch
    %38 = sbr.rel (%p36) target = $region33
  $region32: #{rnn_model_forward.3} parent=0 // pred_region
    %v39 = vld [vmem:[%s6] sm:$0x3]
    %vm40 = vcmask 254976
    %41 = vst.msk [vmem:[%s9] sm:$0x3] %vm40, %v39
    %v42 = vld [vmem:[%s7] sm:$0x3]
    %43 = vst.msk [vmem:[%s10] sm:$0x3] %vm40, %v42
  $region33: #{rnn_model_forward.3} parent=0 // pred_fallthru
    _
  // Predicated region
  $region34: #{rnn_model_forward.3} parent=0 // pred_check
    %p44 = pneg %p34
  $region35: #{rnn_model_forward.3} parent=0 // pred_check_branch
    %46 = sbr.rel (%p44) target = $region37
  $region36: #{rnn_model_forward.3} parent=0 // pred_region
    %v47 = vld [vmem:[%s1] sm:$0x1]
    %v48 = vld [vmem:[%s2] sm:$0xf]
    %v49 = vld [vmem:[%s2 + $0x4] sm:$0xf]
    %v50 = vld [vmem:[%s2 + $0x8] sm:$0xf]
    %v51 = vld [vmem:[%s2 + $0xc] sm:$0xf]
    %v52 = vld [vmem:[%s3] sm:$0x1]
    %v54 = vperm.slane %v52, 0
    %v60 = vunpack.c.l.b16 %v48
    %v61 = vunpack.c.l.b16 %v49
    %v62 = vunpack.c.l.b16 %v50
    %v63 = vunpack.c.l.b16 %v51
    %v64 = vpack.c.b16 %v61, %v60
    %v65 = vpack.c.b16 %v63, %v62
    %vm68 = vcmask 261120
    %v70 = vsel %vm68, %v47, 0
    %72 = vmatpush.bf16.msra.mxu0 0
    %73 = vmatpush.bf16.msra.mxu0 0
    %74 = vmatpush.bf16.msra.mxu0 0
    %75 = vmatpush.bf16.msra.mxu0 0
    %76 = vmatpush.bf16.msra.mxu0 0
    %77 = vmatpush.bf16.msra.mxu0 0
    %78 = vmatpush.bf16.msra.mxu0 %v65
    %79 = vmatpush.bf16.msra.mxu0 %v64
    %80 = vmatmul.bf16.gmra.mxu0 %v70
    %v81 = vpop.f32.mrf.mxu0
    %v82 = vadd.f32 %v54, %v81
    %v83 = vpop.f32.mrf.mxu0
    %84 = vdwg.mxu0
    %85 = vst [vmem:[#allocation2] sm:$0x3] %v82
    %s86 = scalar_lea.vmem %s1, 1
    %v87 = vld [vmem:[%s86] sm:$0x1]
    %v88 = vld [vmem:[%s2] sm:$0xf]
    %v89 = vld [vmem:[%s2 + $0x4] sm:$0xf]
    %v90 = vld [vmem:[%s2 + $0x8] sm:$0xf]
    %v91 = vld [vmem:[%s2 + $0xc] sm:$0xf]
    %v92 = vld [vmem:[%s3] sm:$0x1]
    %v94 = vperm.slane %v92, 0
    %v100 = vunpack.c.l.b16 %v88
    %v101 = vunpack.c.l.b16 %v89
    %v102 = vunpack.c.l.b16 %v90
    %v103 = vunpack.c.l.b16 %v91
    %v104 = vpack.c.b16 %v101, %v100
    %v105 = vpack.c.b16 %v103, %v102
    %v109 = vsel %vm68, %v87, 0
    %111 = vmatpush.bf16.msra.mxu0 0
    %112 = vmatpush.bf16.msra.mxu0 0
    %113 = vmatpush.bf16.msra.mxu0 0
    %114 = vmatpush.bf16.msra.mxu0 0
    %115 = vmatpush.bf16.msra.mxu0 0
    %116 = vmatpush.bf16.msra.mxu0 0
    %117 = vmatpush.bf16.msra.mxu0 %v105
    %118 = vmatpush.bf16.msra.mxu0 %v104
    %119 = vmatmul.bf16.gmra.mxu0 %v109
    %v120 = vpop.f32.mrf.mxu0
    %v121 = vadd.f32 %v94, %v120
    %v122 = vpop.f32.mrf.mxu0
    %123 = vdwg.mxu0
    %s124 = scalar_lea.vmem [#allocation2], 2
    %125 = vst [vmem:[%s124] sm:$0x3] %v121
    %s126 = scalar_lea.vmem %s1, 2
    %v127 = vld [vmem:[%s126] sm:$0x1]
    %v128 = vld [vmem:[%s2] sm:$0xf]
    %v129 = vld [vmem:[%s2 + $0x4] sm:$0xf]
    %v130 = vld [vmem:[%s2 + $0x8] sm:$0xf]
    %v131 = vld [vmem:[%s2 + $0xc] sm:$0xf]
    %v132 = vld [vmem:[%s3] sm:$0x1]
    %v134 = vperm.slane %v132, 0
    %v140 = vunpack.c.l.b16 %v128
    %v141 = vunpack.c.l.b16 %v129
    %v142 = vunpack.c.l.b16 %v130
    %v143 = vunpack.c.l.b16 %v131
    %v144 = vpack.c.b16 %v141, %v140
    %v145 = vpack.c.b16 %v143, %v142
    %v149 = vsel %vm68, %v127, 0
    %151 = vmatpush.bf16.msra.mxu0 0
    %152 = vmatpush.bf16.msra.mxu0 0
    %153 = vmatpush.bf16.msra.mxu0 0
    %154 = vmatpush.bf16.msra.mxu0 0
    %155 = vmatpush.bf16.msra.mxu0 0
    %156 = vmatpush.bf16.msra.mxu0 0
    %157 = vmatpush.bf16.msra.mxu0 %v145
    %158 = vmatpush.bf16.msra.mxu0 %v144
    %159 = vmatmul.bf16.gmra.mxu0 %v149
    %v160 = vpop.f32.mrf.mxu0
    %v161 = vadd.f32 %v134, %v160
    %v162 = vpop.f32.mrf.mxu0
    %163 = vdwg.mxu0
    %s164 = scalar_lea.vmem [#allocation2], 4
    %165 = vst [vmem:[%s164] sm:$0x3] %v161
    %s166 = scalar_lea.vmem %s1, 3
    %v167 = vld [vmem:[%s166] sm:$0x1]
    %v168 = vld [vmem:[%s2] sm:$0xf]
    %v169 = vld [vmem:[%s2 + $0x4] sm:$0xf]
    %v170 = vld [vmem:[%s2 + $0x8] sm:$0xf]
    %v171 = vld [vmem:[%s2 + $0xc] sm:$0xf]
    %v172 = vld [vmem:[%s3] sm:$0x1]
    %v174 = vperm.slane %v172, 0
    %v180 = vunpack.c.l.b16 %v168
    %v181 = vunpack.c.l.b16 %v169
    %v182 = vunpack.c.l.b16 %v170
    %v183 = vunpack.c.l.b16 %v171
    %v184 = vpack.c.b16 %v181, %v180
    %v185 = vpack.c.b16 %v183, %v182
    %v189 = vsel %vm68, %v167, 0
    %191 = vmatpush.bf16.msra.mxu0 0
    %192 = vmatpush.bf16.msra.mxu0 0
    %193 = vmatpush.bf16.msra.mxu0 0
    %194 = vmatpush.bf16.msra.mxu0 0
    %195 = vmatpush.bf16.msra.mxu0 0
    %196 = vmatpush.bf16.msra.mxu0 0
    %197 = vmatpush.bf16.msra.mxu0 %v185
    %198 = vmatpush.bf16.msra.mxu0 %v184
    %199 = vmatmul.bf16.gmra.mxu0 %v189
    %v200 = vpop.f32.mrf.mxu0
    %v201 = vadd.f32 %v174, %v200
    %v202 = vpop.f32.mrf.mxu0
    %203 = vdwg.mxu0
    %s204 = scalar_lea.vmem [#allocation2], 6
    %205 = vst [vmem:[%s204] sm:$0x3] %v201
    %s206 = scalar_lea.vmem %s1, 4
    %v207 = vld [vmem:[%s206] sm:$0x1]
    %v208 = vld [vmem:[%s2] sm:$0xf]
    %v209 = vld [vmem:[%s2 + $0x4] sm:$0xf]
    %v210 = vld [vmem:[%s2 + $0x8] sm:$0xf]
    %v211 = vld [vmem:[%s2 + $0xc] sm:$0xf]
    %v212 = vld [vmem:[%s3] sm:$0x1]
    %v214 = vperm.slane %v212, 0
    %v220 = vunpack.c.l.b16 %v208
    %v221 = vunpack.c.l.b16 %v209
    %v222 = vunpack.c.l.b16 %v210
    %v223 = vunpack.c.l.b16 %v211
    %v224 = vpack.c.b16 %v221, %v220
    %v225 = vpack.c.b16 %v223, %v222
    %v229 = vsel %vm68, %v207, 0
    %231 = vmatpush.bf16.msra.mxu0 0
    %232 = vmatpush.bf16.msra.mxu0 0
    %233 = vmatpush.bf16.msra.mxu0 0
    %234 = vmatpush.bf16.msra.mxu0 0
    %235 = vmatpush.bf16.msra.mxu0 0
    %236 = vmatpush.bf16.msra.mxu0 0
    %237 = vmatpush.bf16.msra.mxu0 %v225
    %238 = vmatpush.bf16.msra.mxu0 %v224
    %239 = vmatmul.bf16.gmra.mxu0 %v229
    %v240 = vpop.f32.mrf.mxu0
    %v241 = vadd.f32 %v214, %v240
    %v242 = vpop.f32.mrf.mxu0
    %243 = vdwg.mxu0
    %s244 = scalar_lea.vmem [#allocation2], 8
    %245 = vst [vmem:[%s244] sm:$0x3] %v241
    %s246 = scalar_lea.vmem %s1, 5
    %v247 = vld [vmem:[%s246] sm:$0x1]
    %v248 = vld [vmem:[%s2] sm:$0xf]
    %v249 = vld [vmem:[%s2 + $0x4] sm:$0xf]
    %v250 = vld [vmem:[%s2 + $0x8] sm:$0xf]
    %v251 = vld [vmem:[%s2 + $0xc] sm:$0xf]
    %v252 = vld [vmem:[%s3] sm:$0x1]
    %v254 = vperm.slane %v252, 0
    %v260 = vunpack.c.l.b16 %v248
    %v261 = vunpack.c.l.b16 %v249
    %v262 = vunpack.c.l.b16 %v250
    %v263 = vunpack.c.l.b16 %v251
    %v264 = vpack.c.b16 %v261, %v260
    %v265 = vpack.c.b16 %v263, %v262
    %v269 = vsel %vm68, %v247, 0
    %271 = vmatpush.bf16.msra.mxu0 0
    %272 = vmatpush.bf16.msra.mxu0 0
    %273 = vmatpush.bf16.msra.mxu0 0
    %274 = vmatpush.bf16.msra.mxu0 0
    %275 = vmatpush.bf16.msra.mxu0 0
    %276 = vmatpush.bf16.msra.mxu0 0
    %277 = vmatpush.bf16.msra.mxu0 %v265
    %278 = vmatpush.bf16.msra.mxu0 %v264
    %279 = vmatmul.bf16.gmra.mxu0 %v269
    %v280 = vpop.f32.mrf.mxu0
    %v281 = vadd.f32 %v254, %v280
    %v282 = vpop.f32.mrf.mxu0
    %283 = vdwg.mxu0
    %s284 = scalar_lea.vmem [#allocation2], 10
    %285 = vst [vmem:[%s284] sm:$0x3] %v281
    %s286 = scalar_lea.vmem %s1, 6
    %v287 = vld [vmem:[%s286] sm:$0x1]
    %v288 = vld [vmem:[%s2] sm:$0xf]
    %v289 = vld [vmem:[%s2 + $0x4] sm:$0xf]
    %v290 = vld [vmem:[%s2 + $0x8] sm:$0xf]
    %v291 = vld [vmem:[%s2 + $0xc] sm:$0xf]
    %v292 = vld [vmem:[%s3] sm:$0x1]
    %v294 = vperm.slane %v292, 0
    %v300 = vunpack.c.l.b16 %v288
    %v301 = vunpack.c.l.b16 %v289
    %v302 = vunpack.c.l.b16 %v290
    %v303 = vunpack.c.l.b16 %v291
    %v304 = vpack.c.b16 %v301, %v300
    %v305 = vpack.c.b16 %v303, %v302
    %v309 = vsel %vm68, %v287, 0
    %311 = vmatpush.bf16.msra.mxu0 0
    %312 = vmatpush.bf16.msra.mxu0 0
    %313 = vmatpush.bf16.msra.mxu0 0
    %314 = vmatpush.bf16.msra.mxu0 0
    %315 = vmatpush.bf16.msra.mxu0 0
    %316 = vmatpush.bf16.msra.mxu0 0
    %317 = vmatpush.bf16.msra.mxu0 %v305
    %318 = vmatpush.bf16.msra.mxu0 %v304
    %319 = vmatmul.bf16.gmra.mxu0 %v309
    %v320 = vpop.f32.mrf.mxu0
    %v321 = vadd.f32 %v294, %v320
    %v322 = vpop.f32.mrf.mxu0
    %323 = vdwg.mxu0
    %s324 = scalar_lea.vmem [#allocation2], 12
    %325 = vst [vmem:[%s324] sm:$0x3] %v321
    %s326 = scalar_lea.vmem %s1, 7
    %v327 = vld [vmem:[%s326] sm:$0x1]
    %v328 = vld [vmem:[%s2] sm:$0xf]
    %v329 = vld [vmem:[%s2 + $0x4] sm:$0xf]
    %v330 = vld [vmem:[%s2 + $0x8] sm:$0xf]
    %v331 = vld [vmem:[%s2 + $0xc] sm:$0xf]
    %v332 = vld [vmem:[%s3] sm:$0x1]
    %v334 = vperm.slane %v332, 0
    %v340 = vunpack.c.l.b16 %v328
    %v341 = vunpack.c.l.b16 %v329
    %v342 = vunpack.c.l.b16 %v330
    %v343 = vunpack.c.l.b16 %v331
    %v344 = vpack.c.b16 %v341, %v340
    %v345 = vpack.c.b16 %v343, %v342
    %v349 = vsel %vm68, %v327, 0
    %351 = vmatpush.bf16.msra.mxu0 0
    %352 = vmatpush.bf16.msra.mxu0 0
    %353 = vmatpush.bf16.msra.mxu0 0
    %354 = vmatpush.bf16.msra.mxu0 0
    %355 = vmatpush.bf16.msra.mxu0 0
    %356 = vmatpush.bf16.msra.mxu0 0
    %357 = vmatpush.bf16.msra.mxu0 %v345
    %358 = vmatpush.bf16.msra.mxu0 %v344
    %359 = vmatmul.bf16.gmra.mxu0 %v349
    %v360 = vpop.f32.mrf.mxu0
    %v361 = vadd.f32 %v334, %v360
    %v362 = vpop.f32.mrf.mxu0
    %363 = vdwg.mxu0
    %s364 = scalar_lea.vmem [#allocation2], 14
    %365 = vst [vmem:[%s364] sm:$0x3] %v361
    %v366 = vld [vmem:[%s4] sm:$0xf]
    %v367 = vld [vmem:[%s4 + $0x4] sm:$0xf]
    %v368 = vld [vmem:[%s4 + $0x8] sm:$0xf]
    %v369 = vld [vmem:[%s4 + $0xc] sm:$0xf]
    %v370 = vld [vmem:[%s5] sm:$0x3]
    %v371 = vld [vmem:[%s9] sm:$0x3]
    %v372 = vld [vmem:[%s10] sm:$0x3]
    %v373 = vld [vmem:[#allocation2] sm:$0x3]
    %v374 = vpack.c.bf16 %v371, %v371
    %v379 = vunpack.c.l.b16 %v366
    %v380 = vunpack.c.l.b16 %v367
    %v381 = vunpack.c.l.b16 %v368
    %v382 = vunpack.c.l.b16 %v369
    %v383 = vpack.c.b16 %v380, %v379
    %v384 = vpack.c.b16 %v382, %v381
    %v388 = vsel %vm68, %v374, 0
    %390 = vmatpush.bf16.msra.mxu0 0
    %391 = vmatpush.bf16.msra.mxu0 0
    %392 = vmatpush.bf16.msra.mxu0 0
    %393 = vmatpush.bf16.msra.mxu0 0
    %394 = vmatpush.bf16.msra.mxu0 0
    %395 = vmatpush.bf16.msra.mxu0 0
    %396 = vmatpush.bf16.msra.mxu0 %v384
    %397 = vmatpush.bf16.msra.mxu0 %v383
    %398 = vmatmul.bf16.gmra.mxu0 %v388
    %v399 = vpop.f32.mrf.mxu0
    %v400 = vadd.f32 0.0, %v399
    %v401 = vpop.f32.mrf.mxu0
    %402 = vdwg.mxu0
    %v403 = vadd.f32 %v373, %v400
    %v404 = vxor.u32 %v403, 2147483648
    %v405 = vmul.f32 %v404, 1.442695
    %v406 = vpow.pop %v405
    %v407 = vadd.f32 %v406, 1.0
    %v408 = vrcp.pop %v407
    %v409 = vmul.f32 %v407, %v408
    %v410 = vsub.f32 1.0, %v409
    %v411 = vmul.f32 %v408, %v410
    %v412 = vadd.f32 %v408, %v411
    %vm413 = vweird.f32 %v407
    %vm414 = vweird.f32 %v408
    %vm415 = vmor %vm413, %vm414
    %v416 = vsel %vm415, %v408, %v412
    %v417 = vand.u32 2147483647, %v407
    %vm418 = vcmp.eq.f32.partialorder %v417, 8.507059e+37
    %v419 = vand.u32 %v407, 2147483648
    %v420 = vor.u32 1.1754944e-38, %v419
    %v421 = vsel %vm418, %v420, %v416
    %v422 = vmul.f32 1.0, %v421
    %v423 = vtanh.pop %v403
    %425 = vrot.lane.b32.xlu0 %v372, 32
    %v426 = vpop.permute.xlu0 %425
    %v428 = vmul.f32 %v422, %v426
    %430 = vrot.lane.b32.xlu0 %v423, 32
    %v431 = vpop.permute.xlu0 %430
    %v433 = vmul.f32 %v422, %v431
    %435 = vrot.lane.b32.xlu0 %v433, 32
    %v436 = vpop.permute.xlu0 %435
    %v438 = vadd.f32 %v428, %v436
    %v439 = vtanh.pop %v438
    %441 = vrot.lane.b32.xlu0 %v439, 32
    %v442 = vpop.permute.xlu0 %441
    %v444 = vmul.f32 %v422, %v442
    %v445 = vstv %s32
    %vm446 = vcmp.gt.s32.totalorder %v370, %v445
    %v447 = vsel %vm446, 1, 0
    %448 = vset.pattern.permute.xlu0 0
    %449 = vperm.xlu0 %448, %v447
    %v450 = vpop.permute.xlu0 %449
    %vm451 = vcmp.eq.s32.totalorder %v450, 1
    %453 = vrot.lane.b32.xlu0 %v371, 64
    %v454 = vpop.permute.xlu0 %453
    %v456 = vsel %vm451, %v444, %v454
    %v457 = vsel %vm451, %v438, %v426
    %v458 = vsel %vm451, %v444, 0.0
    %v459 = vpack.c.bf16 %v458, %v458
    %v461 = vrot.slane %v459, 3
    %vm462 = vcmask 1040384
    %v465 = vsel %vm462, %v459, %v461
    %467 = vrot.lane.b32.xlu0 %v465, 64
    %v468 = vpop.permute.xlu0 %467
    %vm470 = vcmask 253952
    %471 = vst.msk [vmem:[%s8] sm:$0x1] %vm470, %v468
    %v472 = vld [vmem:[%s124] sm:$0x3]
    %v473 = vpack.c.bf16 %v456, %v456
    %475 = vrot.lane.b32.xlu0 %v473, 64
    %v476 = vpop.permute.xlu0 %475
    %v478 = vsel %vm68, %v476, 0
    %480 = vmatpush.bf16.msra.mxu0 0
    %481 = vmatpush.bf16.msra.mxu0 0
    %482 = vmatpush.bf16.msra.mxu0 0
    %483 = vmatpush.bf16.msra.mxu0 0
    %484 = vmatpush.bf16.msra.mxu0 0
    %485 = vmatpush.bf16.msra.mxu0 0
    %486 = vmatpush.bf16.msra.mxu0 %v384
    %487 = vmatpush.bf16.msra.mxu0 %v383
    %488 = vmatmul.bf16.gmra.mxu0 %v478
    %v489 = vpop.f32.mrf.mxu0
    %v490 = vadd.f32 0.0, %v489
    %v491 = vpop.f32.mrf.mxu0
    %492 = vdwg.mxu0
    %v493 = vadd.f32 %v472, %v490
    %v494 = vxor.u32 %v493, 2147483648
    %v495 = vmul.f32 %v494, 1.442695
    %v496 = vpow.pop %v495
    %v497 = vadd.f32 %v496, 1.0
    %v498 = vrcp.pop %v497
    %v499 = vmul.f32 %v497, %v498
    %v500 = vsub.f32 1.0, %v499
    %v501 = vmul.f32 %v498, %v500
    %v502 = vadd.f32 %v498, %v501
    %vm503 = vweird.f32 %v497
    %vm504 = vweird.f32 %v498
    %vm505 = vmor %vm503, %vm504
    %v506 = vsel %vm505, %v498, %v502
    %v507 = vand.u32 2147483647, %v497
    %vm508 = vcmp.eq.f32.partialorder %v507, 8.507059e+37
    %v509 = vand.u32 %v497, 2147483648
    %v510 = vor.u32 1.1754944e-38, %v509
    %v511 = vsel %vm508, %v510, %v506
    %v512 = vmul.f32 1.0, %v511
    %v513 = vtanh.pop %v493
    %v514 = vmul.f32 %v512, %v457
    %516 = vrot.lane.b32.xlu0 %v513, 32
    %v517 = vpop.permute.xlu0 %516
    %v519 = vmul.f32 %v512, %v517
    %521 = vrot.lane.b32.xlu0 %v519, 32
    %v522 = vpop.permute.xlu0 %521
    %v524 = vadd.f32 %v514, %v522
    %v525 = vtanh.pop %v524
    %527 = vrot.lane.b32.xlu0 %v525, 32
    %v528 = vpop.permute.xlu0 %527
    %v530 = vmul.f32 %v512, %v528
    %s531 = sadd.s32 %s32, 1
    %v532 = vstv %s531
    %vm533 = vcmp.gt.s32.totalorder %v370, %v532
    %v534 = vsel %vm533, 1, 0
    %535 = vset.pattern.permute.xlu0 0
    %536 = vperm.xlu0 %535, %v534
    %v537 = vpop.permute.xlu0 %536
    %vm538 = vcmp.eq.s32.totalorder %v537, 1
    %v539 = vsel %vm538, %v530, %v456
    %v540 = vsel %vm538, %v524, %v457
    %v541 = vsel %vm538, %v530, 0.0
    %v542 = vpack.c.bf16 %v541, %v541
    %v544 = vrot.slane %v542, 3
    %v547 = vsel %vm462, %v542, %v544
    %549 = vrot.lane.b32.xlu0 %v547, 64
    %v550 = vpop.permute.xlu0 %549
    %s552 = scalar_lea.vmem %s8, 1
    %553 = vst.msk [vmem:[%s552] sm:$0x1] %vm470, %v550
    %v554 = vld [vmem:[%s164] sm:$0x3]
    %v555 = vpack.c.bf16 %v539, %v539
    %557 = vrot.lane.b32.xlu0 %v555, 64
    %v558 = vpop.permute.xlu0 %557
    %v560 = vsel %vm68, %v558, 0
    %562 = vmatpush.bf16.msra.mxu0 0
    %563 = vmatpush.bf16.msra.mxu0 0
    %564 = vmatpush.bf16.msra.mxu0 0
    %565 = vmatpush.bf16.msra.mxu0 0
    %566 = vmatpush.bf16.msra.mxu0 0
    %567 = vmatpush.bf16.msra.mxu0 0
    %568 = vmatpush.bf16.msra.mxu0 %v384
    %569 = vmatpush.bf16.msra.mxu0 %v383
    %570 = vmatmul.bf16.gmra.mxu0 %v560
    %v571 = vpop.f32.mrf.mxu0
    %v572 = vadd.f32 0.0, %v571
    %v573 = vpop.f32.mrf.mxu0
    %574 = vdwg.mxu0
    %v575 = vadd.f32 %v554, %v572
    %v576 = vxor.u32 %v575, 2147483648
    %v577 = vmul.f32 %v576, 1.442695
    %v578 = vpow.pop %v577
    %v579 = vadd.f32 %v578, 1.0
    %v580 = vrcp.pop %v579
    %v581 = vmul.f32 %v579, %v580
    %v582 = vsub.f32 1.0, %v581
    %v583 = vmul.f32 %v580, %v582
    %v584 = vadd.f32 %v580, %v583
    %vm585 = vweird.f32 %v579
    %vm586 = vweird.f32 %v580
    %vm587 = vmor %vm585, %vm586
    %v588 = vsel %vm587, %v580, %v584
    %v589 = vand.u32 2147483647, %v579
    %vm590 = vcmp.eq.f32.partialorder %v589, 8.507059e+37
    %v591 = vand.u32 %v579, 2147483648
    %v592 = vor.u32 1.1754944e-38, %v591
    %v593 = vsel %vm590, %v592, %v588
    %v594 = vmul.f32 1.0, %v593
    %v595 = vtanh.pop %v575
    %v596 = vmul.f32 %v594, %v540
    %598 = vrot.lane.b32.xlu0 %v595, 32
    %v599 = vpop.permute.xlu0 %598
    %v601 = vmul.f32 %v594, %v599
    %603 = vrot.lane.b32.xlu0 %v601, 32
    %v604 = vpop.permute.xlu0 %603
    %v606 = vadd.f32 %v596, %v604
    %v607 = vtanh.pop %v606
    %609 = vrot.lane.b32.xlu0 %v607, 32
    %v610 = vpop.permute.xlu0 %609
    %v612 = vmul.f32 %v594, %v610
    %s613 = sadd.s32 %s32, 2
    %v614 = vstv %s613
    %vm615 = vcmp.gt.s32.totalorder %v370, %v614
    %v616 = vsel %vm615, 1, 0
    %617 = vset.pattern.permute.xlu0 0
    %618 = vperm.xlu0 %617, %v616
    %v619 = vpop.permute.xlu0 %618
    %vm620 = vcmp.eq.s32.totalorder %v619, 1
    %v621 = vsel %vm620, %v612, %v539
    %v622 = vsel %vm620, %v606, %v540
    %v623 = vsel %vm620, %v612, 0.0
    %v624 = vpack.c.bf16 %v623, %v623
    %v626 = vrot.slane %v624, 3
    %v629 = vsel %vm462, %v624, %v626
    %631 = vrot.lane.b32.xlu0 %v629, 64
    %v632 = vpop.permute.xlu0 %631
    %s634 = scalar_lea.vmem %s8, 2
    %635 = vst.msk [vmem:[%s634] sm:$0x1] %vm470, %v632
    %v636 = vld [vmem:[%s204] sm:$0x3]
    %v637 = vpack.c.bf16 %v621, %v621
    %639 = vrot.lane.b32.xlu0 %v637, 64
    %v640 = vpop.permute.xlu0 %639
    %v642 = vsel %vm68, %v640, 0
    %644 = vmatpush.bf16.msra.mxu0 0
    %645 = vmatpush.bf16.msra.mxu0 0
    %646 = vmatpush.bf16.msra.mxu0 0
    %647 = vmatpush.bf16.msra.mxu0 0
    %648 = vmatpush.bf16.msra.mxu0 0
    %649 = vmatpush.bf16.msra.mxu0 0
    %650 = vmatpush.bf16.msra.mxu0 %v384
    %651 = vmatpush.bf16.msra.mxu0 %v383
    %652 = vmatmul.bf16.gmra.mxu0 %v642
    %v653 = vpop.f32.mrf.mxu0
    %v654 = vadd.f32 0.0, %v653
    %v655 = vpop.f32.mrf.mxu0
    %656 = vdwg.mxu0
    %v657 = vadd.f32 %v636, %v654
    %v658 = vxor.u32 %v657, 2147483648
    %v659 = vmul.f32 %v658, 1.442695
    %v660 = vpow.pop %v659
    %v661 = vadd.f32 %v660, 1.0
    %v662 = vrcp.pop %v661
    %v663 = vmul.f32 %v661, %v662
    %v664 = vsub.f32 1.0, %v663
    %v665 = vmul.f32 %v662, %v664
    %v666 = vadd.f32 %v662, %v665
    %vm667 = vweird.f32 %v661
    %vm668 = vweird.f32 %v662
    %vm669 = vmor %vm667, %vm668
    %v670 = vsel %vm669, %v662, %v666
    %v671 = vand.u32 2147483647, %v661
    %vm672 = vcmp.eq.f32.partialorder %v671, 8.507059e+37
    %v673 = vand.u32 %v661, 2147483648
    %v674 = vor.u32 1.1754944e-38, %v673
    %v675 = vsel %vm672, %v674, %v670
    %v676 = vmul.f32 1.0, %v675
    %v677 = vtanh.pop %v657
    %v678 = vmul.f32 %v676, %v622
    %680 = vrot.lane.b32.xlu0 %v677, 32
    %v681 = vpop.permute.xlu0 %680
    %v683 = vmul.f32 %v676, %v681
    %685 = vrot.lane.b32.xlu0 %v683, 32
    %v686 = vpop.permute.xlu0 %685
    %v688 = vadd.f32 %v678, %v686
    %v689 = vtanh.pop %v688
    %691 = vrot.lane.b32.xlu0 %v689, 32
    %v692 = vpop.permute.xlu0 %691
    %v694 = vmul.f32 %v676, %v692
    %s695 = sadd.s32 %s32, 3
    %v696 = vstv %s695
    %vm697 = vcmp.gt.s32.totalorder %v370, %v696
    %v698 = vsel %vm697, 1, 0
    %699 = vset.pattern.permute.xlu0 0
    %700 = vperm.xlu0 %699, %v698
    %v701 = vpop.permute.xlu0 %700
    %vm702 = vcmp.eq.s32.totalorder %v701, 1
    %v703 = vsel %vm702, %v694, %v621
    %v704 = vsel %vm702, %v688, %v622
    %v705 = vsel %vm702, %v694, 0.0
    %v706 = vpack.c.bf16 %v705, %v705
    %v708 = vrot.slane %v706, 3
    %v711 = vsel %vm462, %v706, %v708
    %713 = vrot.lane.b32.xlu0 %v711, 64
    %v714 = vpop.permute.xlu0 %713
    %s716 = scalar_lea.vmem %s8, 3
    %717 = vst.msk [vmem:[%s716] sm:$0x1] %vm470, %v714
    %v718 = vld [vmem:[%s244] sm:$0x3]
    %v719 = vpack.c.bf16 %v703, %v703
    %721 = vrot.lane.b32.xlu0 %v719, 64
    %v722 = vpop.permute.xlu0 %721
    %v724 = vsel %vm68, %v722, 0
    %726 = vmatpush.bf16.msra.mxu0 0
    %727 = vmatpush.bf16.msra.mxu0 0
    %728 = vmatpush.bf16.msra.mxu0 0
    %729 = vmatpush.bf16.msra.mxu0 0
    %730 = vmatpush.bf16.msra.mxu0 0
    %731 = vmatpush.bf16.msra.mxu0 0
    %732 = vmatpush.bf16.msra.mxu0 %v384
    %733 = vmatpush.bf16.msra.mxu0 %v383
    %734 = vmatmul.bf16.gmra.mxu0 %v724
    %v735 = vpop.f32.mrf.mxu0
    %v736 = vadd.f32 0.0, %v735
    %v737 = vpop.f32.mrf.mxu0
    %738 = vdwg.mxu0
    %v739 = vadd.f32 %v718, %v736
    %v740 = vxor.u32 %v739, 2147483648
    %v741 = vmul.f32 %v740, 1.442695
    %v742 = vpow.pop %v741
    %v743 = vadd.f32 %v742, 1.0
    %v744 = vrcp.pop %v743
    %v745 = vmul.f32 %v743, %v744
    %v746 = vsub.f32 1.0, %v745
    %v747 = vmul.f32 %v744, %v746
    %v748 = vadd.f32 %v744, %v747
    %vm749 = vweird.f32 %v743
    %vm750 = vweird.f32 %v744
    %vm751 = vmor %vm749, %vm750
    %v752 = vsel %vm751, %v744, %v748
    %v753 = vand.u32 2147483647, %v743
    %vm754 = vcmp.eq.f32.partialorder %v753, 8.507059e+37
    %v755 = vand.u32 %v743, 2147483648
    %v756 = vor.u32 1.1754944e-38, %v755
    %v757 = vsel %vm754, %v756, %v752
    %v758 = vmul.f32 1.0, %v757
    %v759 = vtanh.pop %v739
    %v760 = vmul.f32 %v758, %v704
    %762 = vrot.lane.b32.xlu0 %v759, 32
    %v763 = vpop.permute.xlu0 %762
    %v765 = vmul.f32 %v758, %v763
    %767 = vrot.lane.b32.xlu0 %v765, 32
    %v768 = vpop.permute.xlu0 %767
    %v770 = vadd.f32 %v760, %v768
    %v771 = vtanh.pop %v770
    %773 = vrot.lane.b32.xlu0 %v771, 32
    %v774 = vpop.permute.xlu0 %773
    %v776 = vmul.f32 %v758, %v774
    %s777 = sadd.s32 %s32, 4
    %v778 = vstv %s777
    %vm779 = vcmp.gt.s32.totalorder %v370, %v778
    %v780 = vsel %vm779, 1, 0
    %781 = vset.pattern.permute.xlu0 0
    %782 = vperm.xlu0 %781, %v780
    %v783 = vpop.permute.xlu0 %782
    %vm784 = vcmp.eq.s32.totalorder %v783, 1
    %v785 = vsel %vm784, %v776, %v703
    %v786 = vsel %vm784, %v770, %v704
    %v787 = vsel %vm784, %v776, 0.0
    %v788 = vpack.c.bf16 %v787, %v787
    %v790 = vrot.slane %v788, 3
    %v793 = vsel %vm462, %v788, %v790
    %795 = vrot.lane.b32.xlu0 %v793, 64
    %v796 = vpop.permute.xlu0 %795
    %s798 = scalar_lea.vmem %s8, 4
    %799 = vst.msk [vmem:[%s798] sm:$0x1] %vm470, %v796
    %v800 = vld [vmem:[%s284] sm:$0x3]
    %v801 = vpack.c.bf16 %v785, %v785
    %803 = vrot.lane.b32.xlu0 %v801, 64
    %v804 = vpop.permute.xlu0 %803
    %v806 = vsel %vm68, %v804, 0
    %808 = vmatpush.bf16.msra.mxu0 0
    %809 = vmatpush.bf16.msra.mxu0 0
    %810 = vmatpush.bf16.msra.mxu0 0
    %811 = vmatpush.bf16.msra.mxu0 0
    %812 = vmatpush.bf16.msra.mxu0 0
    %813 = vmatpush.bf16.msra.mxu0 0
    %814 = vmatpush.bf16.msra.mxu0 %v384
    %815 = vmatpush.bf16.msra.mxu0 %v383
    %816 = vmatmul.bf16.gmra.mxu0 %v806
    %v817 = vpop.f32.mrf.mxu0
    %v818 = vadd.f32 0.0, %v817
    %v819 = vpop.f32.mrf.mxu0
    %820 = vdwg.mxu0
    %v821 = vadd.f32 %v800, %v818
    %v822 = vxor.u32 %v821, 2147483648
    %v823 = vmul.f32 %v822, 1.442695
    %v824 = vpow.pop %v823
    %v825 = vadd.f32 %v824, 1.0
    %v826 = vrcp.pop %v825
    %v827 = vmul.f32 %v825, %v826
    %v828 = vsub.f32 1.0, %v827
    %v829 = vmul.f32 %v826, %v828
    %v830 = vadd.f32 %v826, %v829
    %vm831 = vweird.f32 %v825
    %vm832 = vweird.f32 %v826
    %vm833 = vmor %vm831, %vm832
    %v834 = vsel %vm833, %v826, %v830
    %v835 = vand.u32 2147483647, %v825
    %vm836 = vcmp.eq.f32.partialorder %v835, 8.507059e+37
    %v837 = vand.u32 %v825, 2147483648
    %v838 = vor.u32 1.1754944e-38, %v837
    %v839 = vsel %vm836, %v838, %v834
    %v840 = vmul.f32 1.0, %v839
    %v841 = vtanh.pop %v821
    %v842 = vmul.f32 %v840, %v786
    %844 = vrot.lane.b32.xlu0 %v841, 32
    %v845 = vpop.permute.xlu0 %844
    %v847 = vmul.f32 %v840, %v845
    %849 = vrot.lane.b32.xlu0 %v847, 32
    %v850 = vpop.permute.xlu0 %849
    %v852 = vadd.f32 %v842, %v850
    %v853 = vtanh.pop %v852
    %855 = vrot.lane.b32.xlu0 %v853, 32
    %v856 = vpop.permute.xlu0 %855
    %v858 = vmul.f32 %v840, %v856
    %s859 = sadd.s32 %s32, 5
    %v860 = vstv %s859
    %vm861 = vcmp.gt.s32.totalorder %v370, %v860
    %v862 = vsel %vm861, 1, 0
    %863 = vset.pattern.permute.xlu0 0
    %864 = vperm.xlu0 %863, %v862
    %v865 = vpop.permute.xlu0 %864
    %vm866 = vcmp.eq.s32.totalorder %v865, 1
    %v867 = vsel %vm866, %v858, %v785
    %v868 = vsel %vm866, %v852, %v786
    %v869 = vsel %vm866, %v858, 0.0
    %v870 = vpack.c.bf16 %v869, %v869
    %v872 = vrot.slane %v870, 3
    %v875 = vsel %vm462, %v870, %v872
    %877 = vrot.lane.b32.xlu0 %v875, 64
    %v878 = vpop.permute.xlu0 %877
    %s880 = scalar_lea.vmem %s8, 5
    %881 = vst.msk [vmem:[%s880] sm:$0x1] %vm470, %v878
    %v882 = vld [vmem:[%s324] sm:$0x3]
    %v883 = vpack.c.bf16 %v867, %v867
    %885 = vrot.lane.b32.xlu0 %v883, 64
    %v886 = vpop.permute.xlu0 %885
    %v888 = vsel %vm68, %v886, 0
    %890 = vmatpush.bf16.msra.mxu0 0
    %891 = vmatpush.bf16.msra.mxu0 0
    %892 = vmatpush.bf16.msra.mxu0 0
    %893 = vmatpush.bf16.msra.mxu0 0
    %894 = vmatpush.bf16.msra.mxu0 0
    %895 = vmatpush.bf16.msra.mxu0 0
    %896 = vmatpush.bf16.msra.mxu0 %v384
    %897 = vmatpush.bf16.msra.mxu0 %v383
    %898 = vmatmul.bf16.gmra.mxu0 %v888
    %v899 = vpop.f32.mrf.mxu0
    %v900 = vadd.f32 0.0, %v899
    %v901 = vpop.f32.mrf.mxu0
    %902 = vdwg.mxu0
    %v903 = vadd.f32 %v882, %v900
    %v904 = vxor.u32 %v903, 2147483648
    %v905 = vmul.f32 %v904, 1.442695
    %v906 = vpow.pop %v905
    %v907 = vadd.f32 %v906, 1.0
    %v908 = vrcp.pop %v907
    %v909 = vmul.f32 %v907, %v908
    %v910 = vsub.f32 1.0, %v909
    %v911 = vmul.f32 %v908, %v910
    %v912 = vadd.f32 %v908, %v911
    %vm913 = vweird.f32 %v907
    %vm914 = vweird.f32 %v908
    %vm915 = vmor %vm913, %vm914
    %v916 = vsel %vm915, %v908, %v912
    %v917 = vand.u32 2147483647, %v907
    %vm918 = vcmp.eq.f32.partialorder %v917, 8.507059e+37
    %v919 = vand.u32 %v907, 2147483648
    %v920 = vor.u32 1.1754944e-38, %v919
    %v921 = vsel %vm918, %v920, %v916
    %v922 = vmul.f32 1.0, %v921
    %v923 = vtanh.pop %v903
    %v924 = vmul.f32 %v922, %v868
    %926 = vrot.lane.b32.xlu0 %v923, 32
    %v927 = vpop.permute.xlu0 %926
    %v929 = vmul.f32 %v922, %v927
    %931 = vrot.lane.b32.xlu0 %v929, 32
    %v932 = vpop.permute.xlu0 %931
    %v934 = vadd.f32 %v924, %v932
    %v935 = vtanh.pop %v934
    %937 = vrot.lane.b32.xlu0 %v935, 32
    %v938 = vpop.permute.xlu0 %937
    %v940 = vmul.f32 %v922, %v938
    %s941 = sadd.s32 %s32, 6
    %v942 = vstv %s941
    %vm943 = vcmp.gt.s32.totalorder %v370, %v942
    %v944 = vsel %vm943, 1, 0
    %945 = vset.pattern.permute.xlu0 0
    %946 = vperm.xlu0 %945, %v944
    %v947 = vpop.permute.xlu0 %946
    %vm948 = vcmp.eq.s32.totalorder %v947, 1
    %v949 = vsel %vm948, %v940, %v867
    %v950 = vsel %vm948, %v934, %v868
    %v951 = vsel %vm948, %v940, 0.0
    %v952 = vpack.c.bf16 %v951, %v951
    %v954 = vrot.slane %v952, 3
    %v957 = vsel %vm462, %v952, %v954
    %959 = vrot.lane.b32.xlu0 %v957, 64
    %v960 = vpop.permute.xlu0 %959
    %s962 = scalar_lea.vmem %s8, 6
    %963 = vst.msk [vmem:[%s962] sm:$0x1] %vm470, %v960
    %v964 = vld [vmem:[%s364] sm:$0x3]
    %v965 = vpack.c.bf16 %v949, %v949
    %967 = vrot.lane.b32.xlu0 %v965, 64
    %v968 = vpop.permute.xlu0 %967
    %v970 = vsel %vm68, %v968, 0
    %972 = vmatpush.bf16.msra.mxu0 0
    %973 = vmatpush.bf16.msra.mxu0 0
    %974 = vmatpush.bf16.msra.mxu0 0
    %975 = vmatpush.bf16.msra.mxu0 0
    %976 = vmatpush.bf16.msra.mxu0 0
    %977 = vmatpush.bf16.msra.mxu0 0
    %978 = vmatpush.bf16.msra.mxu0 %v384
    %979 = vmatpush.bf16.msra.mxu0 %v383
    %980 = vmatmul.bf16.gmra.mxu0 %v970
    %v981 = vpop.f32.mrf.mxu0
    %v982 = vadd.f32 0.0, %v981
    %v983 = vpop.f32.mrf.mxu0
    %984 = vdwg.mxu0
    %v985 = vadd.f32 %v964, %v982
    %v986 = vxor.u32 %v985, 2147483648
    %v987 = vmul.f32 %v986, 1.442695
    %v988 = vpow.pop %v987
    %v989 = vadd.f32 %v988, 1.0
    %v990 = vrcp.pop %v989
    %v991 = vmul.f32 %v989, %v990
    %v992 = vsub.f32 1.0, %v991
    %v993 = vmul.f32 %v990, %v992
    %v994 = vadd.f32 %v990, %v993
    %vm995 = vweird.f32 %v989
    %vm996 = vweird.f32 %v990
    %vm997 = vmor %vm995, %vm996
    %v998 = vsel %vm997, %v990, %v994
    %v999 = vand.u32 2147483647, %v989
    %vm1000 = vcmp.eq.f32.partialorder %v999, 8.507059e+37
    %v1001 = vand.u32 %v989, 2147483648
    %v1002 = vor.u32 1.1754944e-38, %v1001
    %v1003 = vsel %vm1000, %v1002, %v998
    %v1004 = vmul.f32 1.0, %v1003
    %v1005 = vtanh.pop %v985
    %v1006 = vmul.f32 %v1004, %v950
    %1008 = vrot.lane.b32.xlu0 %v1005, 32
    %v1009 = vpop.permute.xlu0 %1008
    %v1011 = vmul.f32 %v1004, %v1009
    %1013 = vrot.lane.b32.xlu0 %v1011, 32
    %v1014 = vpop.permute.xlu0 %1013
    %v1016 = vadd.f32 %v1006, %v1014
    %v1017 = vtanh.pop %v1016
    %1019 = vrot.lane.b32.xlu0 %v1017, 32
    %v1020 = vpop.permute.xlu0 %1019
    %v1022 = vmul.f32 %v1004, %v1020
    %s1023 = sadd.s32 %s32, 7
    %v1024 = vstv %s1023
    %vm1025 = vcmp.gt.s32.totalorder %v370, %v1024
    %v1026 = vsel %vm1025, 1, 0
    %1027 = vset.pattern.permute.xlu0 0
    %1028 = vperm.xlu0 %1027, %v1026
    %v1029 = vpop.permute.xlu0 %1028
    %vm1030 = vcmp.eq.s32.totalorder %v1029, 1
    %v1031 = vsel %vm1030, %v1022, %v949
    %v1032 = vsel %vm1030, %v1016, %v950
    %v1033 = vsel %vm1030, %v1022, 0.0
    %v1034 = vpack.c.bf16 %v1033, %v1033
    %v1036 = vrot.slane %v1034, 3
    %v1039 = vsel %vm462, %v1034, %v1036
    %1041 = vrot.lane.b32.xlu0 %v1039, 64
    %v1042 = vpop.permute.xlu0 %1041
    %s1044 = scalar_lea.vmem %s8, 7
    %1045 = vst.msk [vmem:[%s1044] sm:$0x1] %vm470, %v1042
    %1047 = vrot.lane.b32.xlu0 %v1031, 64
    %v1048 = vpop.permute.xlu0 %1047
    %vm1050 = vcmask 254976
    %1051 = vst.msk [vmem:[%s9] sm:$0x3] %vm1050, %v1048
    %1053 = vrot.lane.b32.xlu0 %v1032, 96
    %v1054 = vpop.permute.xlu0 %1053
    %1056 = vst.msk [vmem:[%s10] sm:$0x3] %vm1050, %v1054
  $region37: #{rnn_model_forward.3} parent=0 // pred_fallthru
    _
  %p1057 = scmp.ge.s32.totalorder %s32, %s33
  // Predicated region
  $region38: #{rnn_model_forward.3} parent=0 // pred_check
    %p1058 = pneg %p1057
  $region39: #{rnn_model_forward.3} parent=0 // pred_check_branch
    %1060 = sbr.rel (%p1058) target = $region41
  $region40: #{rnn_model_forward.3} parent=0 // pred_region
    %vm1061 = vcmask 253952
    %1062 = vst.msk [vmem:[%s8] sm:$0x1] %vm1061, 0
    %1063 = vst.msk [vmem:[%s8 + $0x1] sm:$0x1] %vm1061, 0
    %1064 = vst.msk [vmem:[%s8 + $0x2] sm:$0x1] %vm1061, 0
    %1065 = vst.msk [vmem:[%s8 + $0x3] sm:$0x1] %vm1061, 0
    %1066 = vst.msk [vmem:[%s8 + $0x4] sm:$0x1] %vm1061, 0
    %1067 = vst.msk [vmem:[%s8 + $0x5] sm:$0x1] %vm1061, 0
    %1068 = vst.msk [vmem:[%s8 + $0x6] sm:$0x1] %vm1061, 0
    %1069 = vst.msk [vmem:[%s8 + $0x7] sm:$0x1] %vm1061, 0
  $region41: #{rnn_model_forward.3} parent=0 // pred_fallthru
    _
  // Predicated region
  $region42: #{rnn_model_forward.3} parent=0 // pred_check
    _
  $region43: #{rnn_model_forward.3} parent=0 // pred_check_branch
    %1071 = sbr.rel (0) target = $region45
  $region44: #{rnn_model_forward.3} parent=0 // pred_region
    _
  $region45: #{rnn_model_forward.3} parent=0 // pred_fallthru
    _
  // Predicated region
  $region46: #{rnn_model_forward.3} parent=0 // pred_check
    _
  $region47: #{rnn_model_forward.3} parent=0 // pred_check_branch
    %1073 = sbr.rel (0) target = $region49
  $region48: #{rnn_model_forward.3} parent=0 // pred_region
    _
  $region49: #{rnn_model_forward.3} parent=0 // pred_fallthru
    _
  // Predicated region
  $region50: #{rnn_model_forward.3} parent=0 // pred_check
    _
  $region51: #{rnn_model_forward.3} parent=0 // pred_check_branch
    %1075 = sbr.rel (0) target = $region53
  $region52: #{rnn_model_forward.3} parent=0 // pred_region
    _
  $region53: #{rnn_model_forward.3} parent=0 // pred_fallthru
    _
  // Predicated region
  $region54: #{rnn_model_forward.3} parent=0 // pred_check
    _
  $region55: #{rnn_model_forward.3} parent=0 // pred_check_branch
    %1077 = sbr.rel (0) target = $region57
  $region56: #{rnn_model_forward.3} parent=0 // pred_region
    _
  $region57: #{rnn_model_forward.3} parent=0 // pred_fallthru
    _
  // Predicated region
  $region58: #{rnn_model_forward.3} parent=0 // pred_check
    _
  $region59: #{rnn_model_forward.3} parent=0 // pred_check_branch
    %1079 = sbr.rel (0) target = $region61
  $region60: #{rnn_model_forward.3} parent=0 // pred_region
    _
  $region61: #{rnn_model_forward.3} parent=0 // pred_fallthru
    _
  // Predicated region
  $region62: #{rnn_model_forward.3} parent=0 // pred_check
    _
  $region63: #{rnn_model_forward.3} parent=0 // pred_check_branch
    %1081 = sbr.rel (0) target = $region65
  $region64: #{rnn_model_forward.3} parent=0 // pred_region
    _
  $region65: #{rnn_model_forward.3} parent=0 // pred_fallthru
    _

</llo_original>
